<compile_context>
chip_gen: v7x
topology: tpu7x:2x2x1
jax: 0.10.0
libtpu: 0.0.40
codegen_flags: <defaults>
</compile_context>

<pallas_src>
import math

import jax
import jax.numpy as jnp
from jax.experimental import pallas as pl
from jax.experimental.pallas import tpu as pltpu


def _round_up(v, m):
    return ((v + m - 1) // m) * m


# ----------------------------------------------------------------------------
# Pallas kernel: grouped, K-tiled matmul (bf16 in, f32 accumulate) + bias
# ----------------------------------------------------------------------------
def _matmul_bias_kernel(x_ref, w_ref, b_ref, o_ref, acc_ref):
    @pl.when(pl.program_id(2) == 0)
    def _():
        acc_ref[...] = jnp.zeros_like(acc_ref)

    acc_ref[...] += jnp.dot(x_ref[...], w_ref[...],
                            preferred_element_type=jnp.float32)

    @pl.when(pl.program_id(2) == pl.num_programs(2) - 1)
    def _():
        o_ref[...] = acc_ref[...] + b_ref[...]


def grouped_matmul_bias(x3d, w3d, bias2d):
    """x3d: [G, M, K], w3d: [G, K, N], bias2d: [G, N] -> [G, M, N] float32.

    * inputs cast to bf16 (f32 accumulation on the MXU),
    * N zero-padded to a multiple of 128 so stores are lane-dense,
    * K zero-padded to a multiple of 128 and tiled with a VMEM accumulator.
    """
    G, M, K = x3d.shape
    _, _, N = w3d.shape

    Np = _round_up(N, 128)
    Kp = _round_up(K, 128)
    if Kp > 1024:          # tile the reduction so VMEM use stays bounded
        TK = 512
        Kp = _round_up(Kp, TK)
    else:
        TK = Kp
    TM = min(256, _round_up(M, 8))

    x3d = jnp.pad(x3d, ((0, 0), (0, 0), (0, Kp - K))).astype(jnp.bfloat16)
    w3d = jnp.pad(w3d, ((0, 0), (0, Kp - K), (0, Np - N))).astype(jnp.bfloat16)
    b3d = jnp.pad(bias2d, ((0, 0), (0, Np - N))).reshape(G, 1, Np).astype(jnp.float32)

    out = pl.pallas_call(
        _matmul_bias_kernel,
        out_shape=jax.ShapeDtypeStruct((G, M, Np), jnp.float32),
        grid=(G, pl.cdiv(M, TM), Kp // TK),
        in_specs=[
            pl.BlockSpec((None, TM, TK), lambda g, i, k: (g, i, k)),
            pl.BlockSpec((None, TK, Np), lambda g, i, k: (g, k, 0)),
            pl.BlockSpec((None, 1, Np), lambda g, i, k: (g, 0, 0)),
        ],
        out_specs=pl.BlockSpec((None, TM, Np), lambda g, i, k: (g, i, 0)),
        scratch_shapes=[pltpu.VMEM((TM, Np), jnp.float32)],
        compiler_params=pltpu.CompilerParams(
            dimension_semantics=("parallel", "parallel", "arbitrary")),
    )(x3d, w3d, b3d)
    return out[..., :N]


# ----------------------------------------------------------------------------
# Glue: im2col for the (regular) offset conv, bilinear deformable sampling
# ----------------------------------------------------------------------------
def _im2col_nhwc(x, k, stride, pad, dilation):
    # TODO(synk): im2col for the regular offset conv stays host-side; an
    # in-kernel kh/kw grid axis would remove the 9x activation duplication.
    n, h, w, c = x.shape
    xp = jnp.pad(x, ((0, 0), (pad, pad), (pad, pad), (0, 0)))
    ho = (h + 2 * pad - dilation * (k - 1) - 1) // stride + 1
    wo = (w + 2 * pad - dilation * (k - 1) - 1) // stride + 1
    cols = []
    for di in range(k):
        for dj in range(k):
            oi, oj = di * dilation, dj * dilation
            cols.append(xp[:, oi:oi + (ho - 1) * stride + 1:stride,
                           oj:oj + (wo - 1) * stride + 1:stride, :])
    return jnp.concatenate(cols, axis=-1), (n, ho, wo)


def offset_conv(p, x_nhwc):
    cols, (n, ho, wo) = _im2col_nhwc(
        x_nhwc, p["ksize"], p["stride"], p["pad"], p["dilation"])
    kk = cols.shape[-1]
    cout = p["w"].shape[-1]
    w2d = p["w"].reshape(kk, cout)                       # [kh,kw,cin,cout] -> [K,N]
    out = grouped_matmul_bias(cols.reshape(1, n * ho * wo, kk),
                              w2d[None], p["b"][None])
    return out.reshape(n, ho, wo, cout)


def deform_sample(x_nhwc, offsets, k, stride, pad, dilation):
    """Bilinear deformable-im2col sampling.

    x_nhwc:  [B, H, W, C]; offsets: [B, Ho, Wo, k*k, 2] with (dy, dx) per tap.
    Returns [B, Ho, Wo, k*k, C]; out-of-bounds corners contribute zero.
    """
    # TODO(synk): data-dependent bilinear gather has no clean Pallas TPU
    # equivalent (would need DMA gather); kept in XLA.
    B, H, W, C = x_nhwc.shape
    _, Ho, Wo, KK, _ = offsets.shape

    ky, kx = jnp.meshgrid(jnp.arange(k), jnp.arange(k), indexing="ij")
    ky = (ky.reshape(-1) * dilation).astype(jnp.float32)          # [KK]
    kx = (kx.reshape(-1) * dilation).astype(jnp.float32)

    base_y = (jnp.arange(Ho, dtype=jnp.float32) * stride - pad)[:, None] + ky[None, :]
    base_x = (jnp.arange(Wo, dtype=jnp.float32) * stride - pad)[:, None] + kx[None, :]

    py = base_y[None, :, None, :] + offsets[..., 0]               # [B,Ho,Wo,KK]
    px = base_x[None, None, :, :] + offsets[..., 1]

    y0f = jnp.floor(py)
    x0f = jnp.floor(px)
    ly = py - y0f
    lx = px - x0f
    y0 = y0f.astype(jnp.int32)
    x0 = x0f.astype(jnp.int32)

    x_flat = x_nhwc.reshape(B, H * W, C)

    def corner(yi, xi, wgt):
        valid = (yi >= 0) & (yi < H) & (xi >= 0) & (xi < W)
        idx = (jnp.clip(yi, 0, H - 1) * W + jnp.clip(xi, 0, W - 1)).reshape(B, -1)
        g = jnp.take_along_axis(x_flat, idx[:, :, None], axis=1)  # [B, Ho*Wo*KK, C]
        g = g.reshape(B, Ho, Wo, KK, C)
        return g * (wgt * valid.astype(wgt.dtype))[..., None]

    return (corner(y0,     x0,     (1.0 - ly) * (1.0 - lx))
            + corner(y0,     x0 + 1, (1.0 - ly) * lx)
            + corner(y0 + 1, x0,     ly * (1.0 - lx))
            + corner(y0 + 1, x0 + 1, ly * lx))


# ----------------------------------------------------------------------------
# DeformConv forward
# ----------------------------------------------------------------------------
def deform_conv_forward(p, x_nchw):
    k, stride, pad, dil = p["ksize"], p["stride"], p["pad"], p["dilation"]
    G = p["groups"]
    x = jnp.transpose(x_nchw, (0, 2, 3, 1))                 # NCHW -> NHWC
    B, H, W, C = x.shape
    Cg = C // G

    # 1) offset network: regular 3x3 conv + bias -> [B, Ho, Wo, 2*k*k]
    off = offset_conv(p["offset"], x)
    _, Ho, Wo, _ = off.shape
    off = off.reshape(B, Ho, Wo, k * k, 2)                  # (..., tap, (dy, dx))

    # 2) deformable bilinear sampling -> [B, Ho, Wo, k*k, C]
    sampled = deform_sample(x, off, k, stride, pad, dil)

    # 3) grouped conv as grouped matmul over sampled columns (Pallas kernel)
    cols = sampled.reshape(B, Ho, Wo, k * k, G, Cg)
    cols = jnp.transpose(cols, (4, 0, 1, 2, 3, 5)).reshape(G, B * Ho * Wo, k * k * Cg)
    w = p["weight"].reshape(G, k * k * Cg, Cg)              # [G,kh,kw,Cg_in,Cg_out]
    bias = jnp.zeros((G, Cg), jnp.float32)                  # DeformConv2d(bias=False)
    out = grouped_matmul_bias(cols, w, bias)                # [G, B*Ho*Wo, Cg]

    out = out.reshape(G, B, Ho, Wo, Cg)
    out = jnp.transpose(out, (1, 2, 3, 0, 4)).reshape(B, Ho, Wo, C)
    return jnp.transpose(out, (0, 3, 1, 2))                 # NHWC -> NCHW


# ----------------------------------------------------------------------------
# Deterministic synthetic parameters
# ----------------------------------------------------------------------------
def make_deform_conv(key, in_channels, groups, ksize=3, pad=1, stride=1, dilation=1):
    assert in_channels % groups == 0
    cg = in_channels // groups
    k_ow, k_ob, k_dw = jax.random.split(key, 3)
    off_cout = 2 * ksize * ksize
    off_w = jax.random.normal(k_ow, (ksize, ksize, in_channels, off_cout), jnp.float32)
    off_w = off_w * (1.0 / math.sqrt(in_channels * ksize * ksize))
    off_b = jax.random.normal(k_ob, (off_cout,), jnp.float32) * 0.1
    dw = jax.random.normal(k_dw, (groups, ksize, ksize, cg, cg), jnp.float32)
    dw = dw * (1.0 / math.sqrt(cg * ksize * ksize))
    return dict(
        groups=groups, ksize=ksize, pad=pad, stride=stride, dilation=dilation,
        offset=dict(w=off_w, b=off_b, ksize=ksize, pad=pad,
                    stride=stride, dilation=dilation),
        weight=dw,
    )


# ----------------------------------------------------------------------------
if __name__ == "__main__":
    IN_CH, GROUPS = 64, 2
    B, H, W = 2, 16, 16

    kp, kx = jax.random.split(jax.random.PRNGKey(0))
    params = make_deform_conv(kp, IN_CH, GROUPS)
    x = jax.random.normal(kx, (B, IN_CH, H, W), jnp.float32)

    fwd = jax.jit(lambda inp: deform_conv_forward(params, inp))
    out = fwd(x)
    jax.block_until_ready(out)

    assert out.shape == (B, IN_CH, H, W), out.shape
    assert bool(jnp.all(jnp.isfinite(out)))
    print("KERNEL_OK")
</pallas_src>

<mosaic_0001>
module attributes {stable_mosaic.version = 11 : i64} {
  func.func @_matmul_bias_kernel(%arg0: i32, %arg1: i32, %arg2: i32, %arg3: memref<1x256x640xbf16, #tpu.memory_space<vmem>>, %arg4: memref<1x640x128xbf16, #tpu.memory_space<vmem>>, %arg5: memref<1x1x128xf32, #tpu.memory_space<vmem>>, %arg6: memref<1x256x128xf32, #tpu.memory_space<vmem>>, %arg7: memref<256x128xf32, #tpu.memory_space<vmem>>) attributes {dimension_semantics = [#tpu.dimension_semantics<parallel>, #tpu.dimension_semantics<parallel>, #tpu.dimension_semantics<arbitrary>], iteration_bounds = array<i64: 1, 2, 1>, scalar_prefetch = 0 : i64, scratch_operands = 1 : i64, tpu.core_type = #tpu.core_type<tc>, window_params = [{transform_indices = @transform_0, window_bounds = array<i64: 1, 256, 640>}, {transform_indices = @transform_1, window_bounds = array<i64: 1, 640, 128>}, {transform_indices = @transform_2, window_bounds = array<i64: 1, 1, 128>}, {transform_indices = @transform_3, window_bounds = array<i64: 1, 256, 128>}]} {
    %c0_i32 = arith.constant 0 : i32
    %0 = arith.cmpi eq, %arg2, %c0_i32 : i32
    %1 = arith.extui %0 : i1 to i32
    %c0_i32_0 = arith.constant 0 : i32
    %2 = arith.cmpi ne, %1, %c0_i32_0 : i32
    scf.if %2 {
      %cst_12 = arith.constant 0.000000e+00 : f32
      %14 = vector.broadcast %cst_12 : f32 to vector<256x128xf32>
      %c0_13 = arith.constant 0 : index
      %c0_14 = arith.constant 0 : index
      %15 = vector.load %arg7[%c0_13, %c0_14] : memref<256x128xf32, #tpu.memory_space<vmem>>, vector<256x128xf32>
      tpu.vector_store %arg7[%c0_13, %c0_14], %14 {strides = array<i32>} : memref<256x128xf32, #tpu.memory_space<vmem>>, vector<256x128xf32>,
    } else {
    }
    %c0 = arith.constant 0 : index
    %c0_1 = arith.constant 0 : index
    %3 = vector.load %arg7[%c0, %c0_1] : memref<256x128xf32, #tpu.memory_space<vmem>>, vector<256x128xf32>
    %c0_2 = arith.constant 0 : index
    %c0_3 = arith.constant 0 : index
    %c0_4 = arith.constant 0 : index
    %4 = vector.load %arg3[%c0_2, %c0_3, %c0_4] : memref<1x256x640xbf16, #tpu.memory_space<vmem>>, vector<1x256x640xbf16>
    %5 = vector.shape_cast %4 : vector<1x256x640xbf16> to vector<256x640xbf16>
    %c0_5 = arith.constant 0 : index
    %c0_6 = arith.constant 0 : index
    %c0_7 = arith.constant 0 : index
    %6 = vector.load %arg4[%c0_5, %c0_6, %c0_7] : memref<1x640x128xbf16, #tpu.memory_space<vmem>>, vector<1x640x128xbf16>
    %7 = vector.shape_cast %6 : vector<1x640x128xbf16> to vector<640x128xbf16>
    %cst = arith.constant dense<0.000000e+00> : vector<256x128xf32>
    %8 = tpu.matmul %5, %7, %cst {dimension_numbers = #tpu.dot_dimension_numbers<[1], [0], [0], [1], [0, 0, 1, 1], [], []>} : vector<256x640xbf16>, vector<640x128xbf16>, vector<256x128xf32> -> vector<256x128xf32>
    %9 = arith.addf %3, %8 : vector<256x128xf32>
    %c0_8 = arith.constant 0 : index
    %c0_9 = arith.constant 0 : index
    %10 = vector.load %arg7[%c0_8, %c0_9] : memref<256x128xf32, #tpu.memory_space<vmem>>, vector<256x128xf32>
    tpu.vector_store %arg7[%c0_8, %c0_9], %9 {strides = array<i32>} : memref<256x128xf32, #tpu.memory_space<vmem>>, vector<256x128xf32>,
    %c0_i32_10 = arith.constant 0 : i32
    %11 = arith.cmpi eq, %arg2, %c0_i32_10 : i32
    %12 = arith.extui %11 : i1 to i32
    %c0_i32_11 = arith.constant 0 : i32
    %13 = arith.cmpi ne, %12, %c0_i32_11 : i32
    scf.if %13 {
      %c0_12 = arith.constant 0 : index
      %c0_13 = arith.constant 0 : index
      %14 = vector.load %arg7[%c0_12, %c0_13] : memref<256x128xf32, #tpu.memory_space<vmem>>, vector<256x128xf32>
      %c0_14 = arith.constant 0 : index
      %c0_15 = arith.constant 0 : index
      %c0_16 = arith.constant 0 : index
      %15 = vector.load %arg5[%c0_14, %c0_15, %c0_16] : memref<1x1x128xf32, #tpu.memory_space<vmem>>, vector<1x1x128xf32>
      %16 = vector.shape_cast %15 : vector<1x1x128xf32> to vector<1x128xf32>
      %17 = vector.broadcast %16 : vector<1x128xf32> to vector<256x128xf32>
      %18 = arith.addf %14, %17 : vector<256x128xf32>
      %c0_17 = arith.constant 0 : index
      %c0_18 = arith.constant 0 : index
      %c0_19 = arith.constant 0 : index
      %19 = vector.load %arg6[%c0_17, %c0_18, %c0_19] : memref<1x256x128xf32, #tpu.memory_space<vmem>>, vector<1x256x128xf32>
      %20 = vector.shape_cast %19 : vector<1x256x128xf32> to vector<256x128xf32>
      %21 = vector.shape_cast %18 : vector<256x128xf32> to vector<1x256x128xf32>
      tpu.vector_store %arg6[%c0_17, %c0_18, %c0_19], %21 {strides = array<i32>} : memref<1x256x128xf32, #tpu.memory_space<vmem>>, vector<1x256x128xf32>,
    } else {
    }
    return
  }
  func.func @transform_0(%arg0: i32, %arg1: i32, %arg2: i32) -> (i32, i32, i32) {
    %c0_i32 = arith.constant 0 : i32
    return %arg0, %arg1, %arg2 : i32, i32, i32
  }
  func.func @transform_1(%arg0: i32, %arg1: i32, %arg2: i32) -> (i32, i32, i32) {
    %c0_i32 = arith.constant 0 : i32
    %c0_i32_0 = arith.constant 0 : i32
    return %arg0, %arg2, %c0_i32 : i32, i32, i32
  }
  func.func @transform_2(%arg0: i32, %arg1: i32, %arg2: i32) -> (i32, i32, i32) {
    %c0_i32 = arith.constant 0 : i32
    %c0_i32_0 = arith.constant 0 : i32
    %c0_i32_1 = arith.constant 0 : i32
    return %arg0, %c0_i32, %c0_i32_0 : i32, i32, i32
  }
  func.func @transform_3(%arg0: i32, %arg1: i32, %arg2: i32) -> (i32, i32, i32) {
    %c0_i32 = arith.constant 0 : i32
    %c0_i32_0 = arith.constant 0 : i32
    return %arg0, %arg1, %c0_i32 : i32, i32, i32
  }
}

module attributes {stable_mosaic.version = 11 : i64} {
  func.func @_matmul_bias_kernel(%arg0: i32, %arg1: i32, %arg2: i32, %arg3: memref<1x256x384xbf16, #tpu.memory_space<vmem>>, %arg4: memref<1x384x128xbf16, #tpu.memory_space<vmem>>, %arg5: memref<1x1x128xf32, #tpu.memory_space<vmem>>, %arg6: memref<1x256x128xf32, #tpu.memory_space<vmem>>, %arg7: memref<256x128xf32, #tpu.memory_space<vmem>>) attributes {dimension_semantics = [#tpu.dimension_semantics<parallel>, #tpu.dimension_semantics<parallel>, #tpu.dimension_semantics<arbitrary>], iteration_bounds = array<i64: 2, 2, 1>, scalar_prefetch = 0 : i64, scratch_operands = 1 : i64, tpu.core_type = #tpu.core_type<tc>, window_params = [{transform_indices = @transform_0, window_bounds = array<i64: 1, 256, 384>}, {transform_indices = @transform_1, window_bounds = array<i64: 1, 384, 128>}, {transform_indices = @transform_2, window_bounds = array<i64: 1, 1, 128>}, {transform_indices = @transform_3, window_bounds = array<i64: 1, 256, 128>}]} {
    %c0_i32 = arith.constant 0 : i32
    %0 = arith.cmpi eq, %arg2, %c0_i32 : i32
    %1 = arith.extui %0 : i1 to i32
    %c0_i32_0 = arith.constant 0 : i32
    %2 = arith.cmpi ne, %1, %c0_i32_0 : i32
    scf.if %2 {
      %cst_12 = arith.constant 0.000000e+00 : f32
      %14 = vector.broadcast %cst_12 : f32 to vector<256x128xf32>
      %c0_13 = arith.constant 0 : index
      %c0_14 = arith.constant 0 : index
      %15 = vector.load %arg7[%c0_13, %c0_14] : memref<256x128xf32, #tpu.memory_space<vmem>>, vector<256x128xf32>
      tpu.vector_store %arg7[%c0_13, %c0_14], %14 {strides = array<i32>} : memref<256x128xf32, #tpu.memory_space<vmem>>, vector<256x128xf32>,
    } else {
    }
    %c0 = arith.constant 0 : index
    %c0_1 = arith.constant 0 : index
    %3 = vector.load %arg7[%c0, %c0_1] : memref<256x128xf32, #tpu.memory_space<vmem>>, vector<256x128xf32>
    %c0_2 = arith.constant 0 : index
    %c0_3 = arith.constant 0 : index
    %c0_4 = arith.constant 0 : index
    %4 = vector.load %arg3[%c0_2, %c0_3, %c0_4] : memref<1x256x384xbf16, #tpu.memory_space<vmem>>, vector<1x256x384xbf16>
    %5 = vector.shape_cast %4 : vector<1x256x384xbf16> to vector<256x384xbf16>
    %c0_5 = arith.constant 0 : index
    %c0_6 = arith.constant 0 : index
    %c0_7 = arith.constant 0 : index
    %6 = vector.load %arg4[%c0_5, %c0_6, %c0_7] : memref<1x384x128xbf16, #tpu.memory_space<vmem>>, vector<1x384x128xbf16>
    %7 = vector.shape_cast %6 : vector<1x384x128xbf16> to vector<384x128xbf16>
    %cst = arith.constant dense<0.000000e+00> : vector<256x128xf32>
    %8 = tpu.matmul %5, %7, %cst {dimension_numbers = #tpu.dot_dimension_numbers<[1], [0], [0], [1], [0, 0, 1, 1], [], []>} : vector<256x384xbf16>, vector<384x128xbf16>, vector<256x128xf32> -> vector<256x128xf32>
    %9 = arith.addf %3, %8 : vector<256x128xf32>
    %c0_8 = arith.constant 0 : index
    %c0_9 = arith.constant 0 : index
    %10 = vector.load %arg7[%c0_8, %c0_9] : memref<256x128xf32, #tpu.memory_space<vmem>>, vector<256x128xf32>
    tpu.vector_store %arg7[%c0_8, %c0_9], %9 {strides = array<i32>} : memref<256x128xf32, #tpu.memory_space<vmem>>, vector<256x128xf32>,
    %c0_i32_10 = arith.constant 0 : i32
    %11 = arith.cmpi eq, %arg2, %c0_i32_10 : i32
    %12 = arith.extui %11 : i1 to i32
    %c0_i32_11 = arith.constant 0 : i32
    %13 = arith.cmpi ne, %12, %c0_i32_11 : i32
    scf.if %13 {
      %c0_12 = arith.constant 0 : index
      %c0_13 = arith.constant 0 : index
      %14 = vector.load %arg7[%c0_12, %c0_13] : memref<256x128xf32, #tpu.memory_space<vmem>>, vector<256x128xf32>
      %c0_14 = arith.constant 0 : index
      %c0_15 = arith.constant 0 : index
      %c0_16 = arith.constant 0 : index
      %15 = vector.load %arg5[%c0_14, %c0_15, %c0_16] : memref<1x1x128xf32, #tpu.memory_space<vmem>>, vector<1x1x128xf32>
      %16 = vector.shape_cast %15 : vector<1x1x128xf32> to vector<1x128xf32>
      %17 = vector.broadcast %16 : vector<1x128xf32> to vector<256x128xf32>
      %18 = arith.addf %14, %17 : vector<256x128xf32>
      %c0_17 = arith.constant 0 : index
      %c0_18 = arith.constant 0 : index
      %c0_19 = arith.constant 0 : index
      %19 = vector.load %arg6[%c0_17, %c0_18, %c0_19] : memref<1x256x128xf32, #tpu.memory_space<vmem>>, vector<1x256x128xf32>
      %20 = vector.shape_cast %19 : vector<1x256x128xf32> to vector<256x128xf32>
      %21 = vector.shape_cast %18 : vector<256x128xf32> to vector<1x256x128xf32>
      tpu.vector_store %arg6[%c0_17, %c0_18, %c0_19], %21 {strides = array<i32>} : memref<1x256x128xf32, #tpu.memory_space<vmem>>, vector<1x256x128xf32>,
    } else {
    }
    return
  }
  func.func @transform_0(%arg0: i32, %arg1: i32, %arg2: i32) -> (i32, i32, i32) {
    %c0_i32 = arith.constant 0 : i32
    return %arg0, %arg1, %arg2 : i32, i32, i32
  }
  func.func @transform_1(%arg0: i32, %arg1: i32, %arg2: i32) -> (i32, i32, i32) {
    %c0_i32 = arith.constant 0 : i32
    %c0_i32_0 = arith.constant 0 : i32
    return %arg0, %arg2, %c0_i32 : i32, i32, i32
  }
  func.func @transform_2(%arg0: i32, %arg1: i32, %arg2: i32) -> (i32, i32, i32) {
    %c0_i32 = arith.constant 0 : i32
    %c0_i32_0 = arith.constant 0 : i32
    %c0_i32_1 = arith.constant 0 : i32
    return %arg0, %c0_i32, %c0_i32_0 : i32, i32, i32
  }
  func.func @transform_3(%arg0: i32, %arg1: i32, %arg2: i32) -> (i32, i32, i32) {
    %c0_i32 = arith.constant 0 : i32
    %c0_i32_0 = arith.constant 0 : i32
    return %arg0, %arg1, %c0_i32 : i32, i32, i32
  }
}

</mosaic_0001>

<llo_original>
// kernel: _lambda_.2
$region0: #{_lambda_.2}
  #allocation0 [shape = 'u32[]', space=smem, size = 0x4, offset = 0x4, fixed_abs, tag = 'smem constant byte address 0x4 - core index']
  #allocation1 [shape = 'u32[144,128]{1,0:T(1,128)}', space=vmem, size = 0x12000, scoped, tag = 'internal scratch']
  #allocation2 [shape = 'f32[256,128]{1,0:T(8,128)}', space=vmem, size = 0x20000, scoped, tag = 'scratch operand']
  %s0 = inlined_call_operand.vmem [shape: bf16[1,512,640], index: 0, kind: input, shape index: {}]
  %s1 = inlined_call_operand.vmem [shape: bf16[1,640,128], index: 1, kind: input, shape index: {}]
  %s2 = inlined_call_operand.vmem [shape: f32[1,1,128], index: 2, kind: input, shape index: {}]
  %s3 = inlined_call_operand.vmem [shape: f32[1,512,128], index: 3, kind: output, shape index: {}]
  %s4 = sld [smem:[#allocation0]]
  $region53: #{_lambda_.2} parent=0
    _
  %s6 = ssub.s32 1, %s4
  %s7 = scalar_select 0, %s6, %s4
  loop: start=0, step=1, limit=4
  $region2: #{_lambda_.2} parent=0 // loop_pre_header
    _
  $region3: #{_lambda_.2} parent=0 // loop_header
    %s9 = sphi 0, %s13
    %p10 = scmp.ge.s32.totalorder %s9, 4
    %s16 = sphi 0, %s35
    %s17 = sphi 0, %s31
    %s18 = sphi 0, %s27
    %s19 = sphi 0, %s16
    %s20 = sphi 0, %s17
    %s21 = sphi 0, %s18
    %s22 = sphi 0, %s19
    %s23 = sphi 0, %s20
    %s24 = sphi 0, %s21
    %s42 = sphi 0, %s44
    %s45 = sphi 0, %s42
    %s46 = sphi 0, %s45
    %s62 = sphi 0, %s46
    %s70 = sphi 0, %s72
    %s73 = sphi 0, %s70
    %s74 = sphi 0, %s73
    %s90 = sphi 0, %s74
    %s96 = sphi 0, %s98
    %s99 = sphi 0, %s96
    %s100 = sphi 0, %s99
    %s116 = sphi 0, %s100
    %s124 = sphi 0, %s126
    %s127 = sphi 0, %s124
    %s128 = sphi 0, %s127
    %s144 = sphi 0, %s128
  $region4: #{_lambda_.2} parent=0 // loop_header_branch
    %12 = sbr.rel (%p10) target = $region8
  $region5: #{_lambda_.2} parent=0 // loop_body
    %s14 = ssub.s32 %s9, 1
    %s15 = ssub.s32 %s9, 2
    %s25 = sadd.s32 1, %s18
    %p26 = scmp.ge.s32.totalorder %s25, 1
    %s27 = scalar_select %p26, 0, %s25
    %s28 = sadd.s32 1, %s17
    %s29 = scalar_select %p26, %s28, %s17
    %p30 = scmp.ge.s32.totalorder %s29, 2
    %s31 = scalar_select %p30, 0, %s29
    %s32 = sadd.s32 1, %s16
    %s33 = scalar_select %p30, %s32, %s16
    %p34 = scmp.ge.s32.totalorder %s33, 1
    %s35 = scalar_select %p34, 0, %s33
    %s36 = ssub.s32 %s16, %s35
    %s37 = ssub.s32 %s17, %s31
    %s38 = sor.u32 %s36, %s37
    %s39 = ssub.s32 %s18, %s27
    %s40 = sor.u32 %s38, %s39
    %p41 = scmp.eq.s32.totalorder %s40, 0
    %s43 = sadd.s32 %s42, 1
    %s44 = scalar_select %p41, %s42, %s43
    %p47 = pneg %p41
    %p48 = scmp.eq.s32.totalorder %s9, 1
    %p49 = por %p47, %p48
    %p50 = scmp.ne.s32.totalorder %s42, %s45
    %p51 = scmp.eq.s32.totalorder %s9, 0
    %p52 = por %p50, %p51
    %p53 = scmp.ne.s32.totalorder %s42, %s45
    %p54 = scmp.eq.s32.totalorder %s14, 1
    %p55 = por %p53, %p54
    %p56 = scmp.ne.s32.totalorder %s45, %s46
    %p57 = scmp.eq.s32.totalorder %s14, 0
    %p58 = por %p56, %p57
    %p59 = scmp.ne.s32.totalorder %s45, %s46
    %p60 = scmp.eq.s32.totalorder %s15, 1
    %p61 = por %p59, %p60
    %p63 = scmp.ne.s32.totalorder %s46, %s62
    %p64 = scmp.eq.s32.totalorder %s15, 0
    %p65 = por %p63, %p64
    %s66 = ssub.s32 %s16, %s35
    %s67 = ssub.s32 %s18, %s27
    %s68 = sor.u32 %s66, %s67
    %p69 = scmp.eq.s32.totalorder %s68, 0
    %s71 = sadd.s32 %s70, 1
    %s72 = scalar_select %p69, %s70, %s71
    %p75 = pneg %p69
    %p76 = scmp.eq.s32.totalorder %s9, 1
    %p77 = por %p75, %p76
    %p78 = scmp.ne.s32.totalorder %s70, %s73
    %p79 = scmp.eq.s32.totalorder %s9, 0
    %p80 = por %p78, %p79
    %p81 = scmp.ne.s32.totalorder %s70, %s73
    %p82 = scmp.eq.s32.totalorder %s14, 1
    %p83 = por %p81, %p82
    %p84 = scmp.ne.s32.totalorder %s73, %s74
    %p85 = scmp.eq.s32.totalorder %s14, 0
    %p86 = por %p84, %p85
    %p87 = scmp.ne.s32.totalorder %s73, %s74
    %p88 = scmp.eq.s32.totalorder %s15, 1
    %p89 = por %p87, %p88
    %p91 = scmp.ne.s32.totalorder %s74, %s90
    %p92 = scmp.eq.s32.totalorder %s15, 0
    %p93 = por %p91, %p92
    %s94 = ssub.s32 %s16, %s35
    %p95 = scmp.eq.s32.totalorder %s94, 0
    %s97 = sadd.s32 %s96, 1
    %s98 = scalar_select %p95, %s96, %s97
    %p101 = pneg %p95
    %p102 = scmp.eq.s32.totalorder %s9, 1
    %p103 = por %p101, %p102
    %p104 = scmp.ne.s32.totalorder %s96, %s99
    %p105 = scmp.eq.s32.totalorder %s9, 0
    %p106 = por %p104, %p105
    %p107 = scmp.ne.s32.totalorder %s96, %s99
    %p108 = scmp.eq.s32.totalorder %s14, 1
    %p109 = por %p107, %p108
    %p110 = scmp.ne.s32.totalorder %s99, %s100
    %p111 = scmp.eq.s32.totalorder %s14, 0
    %p112 = por %p110, %p111
    %p113 = scmp.ne.s32.totalorder %s99, %s100
    %p114 = scmp.eq.s32.totalorder %s15, 1
    %p115 = por %p113, %p114
    %p117 = scmp.ne.s32.totalorder %s100, %s116
    %p118 = scmp.eq.s32.totalorder %s15, 0
    %p119 = por %p117, %p118
    %s120 = ssub.s32 %s16, %s35
    %s121 = ssub.s32 %s17, %s31
    %s122 = sor.u32 %s120, %s121
    %p123 = scmp.eq.s32.totalorder %s122, 0
    %s125 = sadd.s32 %s124, 1
    %s126 = scalar_select %p123, %s124, %s125
    %p129 = pneg %p123
    %p130 = scmp.eq.s32.totalorder %s9, 1
    %p131 = por %p129, %p130
    %p132 = scmp.ne.s32.totalorder %s124, %s127
    %p133 = scmp.eq.s32.totalorder %s9, 0
    %p134 = por %p132, %p133
    %p135 = scmp.ne.s32.totalorder %s124, %s127
    %p136 = scmp.eq.s32.totalorder %s14, 1
    %p137 = por %p135, %p136
    %p138 = scmp.ne.s32.totalorder %s127, %s128
    %p139 = scmp.eq.s32.totalorder %s14, 0
    %p140 = por %p138, %p139
    %p141 = scmp.ne.s32.totalorder %s127, %s128
    %p142 = scmp.eq.s32.totalorder %s15, 1
    %p143 = por %p141, %p142
    %p145 = scmp.ne.s32.totalorder %s128, %s144
    %p146 = scmp.eq.s32.totalorder %s15, 0
    %p147 = por %p145, %p146
    %p148 = scmp.le.s32.totalorder 1, %s9
    %p149 = scmp.lt.s32.totalorder %s9, 3
    %p150 = pnand %p148, %p149
    %p151 = pneg %p150
    // Predicated region
    $region9: #{_lambda_.2} parent=5 // pred_check
      _
    $region10: #{_lambda_.2} parent=5 // pred_check_branch
      %153 = sbr.rel (%p150) target = $region12
    $region11: #{_lambda_.2} parent=5 // pred_region
      %s154 = ssub.s32 %s9, 1
      // Predicated region
      $region13: #{_lambda_.2} parent=11 // pred_check
        %p155 = pneg %p86
      $region14: #{_lambda_.2} parent=11 // pred_check_branch
        %157 = sbr.rel (%p155) target = $region16
      $region15: #{_lambda_.2} parent=11 // pred_region
        %s158 = smul.u32 80, %s21
        %p159 = scmp.lt.s32.totalorder %s19, 0
        %s160 = scalar_select %p159, %s19, 0
        %p161 = scmp.lt.s32.totalorder %s158, 79
        %s162 = scalar_select %p161, %s158, 79
        %s163 = smul.addr %s160, 80
        %s164 = sadd.s32 %s162, %s163
        %s165 = smul.addr %s164, 4
        %s166 = scalar_lea.vmem %s1, %s165
        %s167 = smul.u32 80, %s21
      $region16: #{_lambda_.2} parent=11 // pred_fallthru
        _
      // Predicated region
      $region17: #{_lambda_.2} parent=11 // pred_check
        %p168 = pneg %p112
      $region18: #{_lambda_.2} parent=11 // pred_check_branch
        %170 = sbr.rel (%p168) target = $region20
      $region19: #{_lambda_.2} parent=11 // pred_region
        %p171 = scmp.lt.s32.totalorder %s19, 0
        %s172 = scalar_select %p171, %s19, 0
        %s173 = scalar_lea.vmem %s2, %s172
      $region20: #{_lambda_.2} parent=11 // pred_fallthru
        _
    $region12: #{_lambda_.2} parent=5 // pred_fallthru
      _
    %p174 = scmp.lt.s32.totalorder %s9, 2
    // Predicated region
    $region21: #{_lambda_.2} parent=5 // pred_check
      %p175 = pneg %p174
    $region22: #{_lambda_.2} parent=5 // pred_check_branch
      %177 = sbr.rel (%p175) target = $region24
    $region23: #{_lambda_.2} parent=5 // pred_region
      // Predicated region
      $region25: #{_lambda_.2} parent=23 // pred_check
        %p178 = pneg %p52
      $region26: #{_lambda_.2} parent=23 // pred_check_branch
        %180 = sbr.rel (%p178) target = $region28
      $region27: #{_lambda_.2} parent=23 // pred_region
        %s181 = smul.u32 32, %s17
        %s182 = smul.u32 5, %s18
        %p183 = scmp.lt.s32.totalorder %s16, 0
        %s184 = scalar_select %p183, %s16, 0
        %p185 = scmp.lt.s32.totalorder %s181, 63
        %s186 = scalar_select %p185, %s181, 63
        %p187 = scmp.lt.s32.totalorder %s182, 4
        %s188 = scalar_select %p187, %s182, 4
        %s189 = smul.addr %s186, 5
        %s190 = sadd.s32 %s188, %s189
        %s191 = smul.addr %s184, 320
        %s192 = sadd.s32 %s190, %s191
        %s193 = smul.addr %s192, 4
        %s194 = scalar_lea.vmem %s0, %s193
        %s195 = smul.u32 32, %s17
        %s196 = smul.u32 5, %s18
      $region28: #{_lambda_.2} parent=23 // pred_fallthru
        _
    $region24: #{_lambda_.2} parent=5 // pred_fallthru
      _
    %p197 = scmp.le.s32.totalorder 1, %s9
    %p198 = scmp.lt.s32.totalorder %s9, 3
    %p199 = pnand %p197, %p198
    %p200 = pneg %p199
    // Predicated region
    $region29: #{_lambda_.2} parent=5 // pred_check
      _
    $region30: #{_lambda_.2} parent=5 // pred_check_branch
      %202 = sbr.rel (%p199) target = $region32
    $region31: #{_lambda_.2} parent=5 // pred_region
      %s203 = ssub.s32 %s9, 1
      %s204 = smul.u32 32, %s20
      %s205 = smul.u32 5, %s21
      %p206 = scmp.lt.s32.totalorder %s19, 0
      %s207 = scalar_select %p206, %s19, 0
      %p208 = scmp.lt.s32.totalorder %s204, 63
      %s209 = scalar_select %p208, %s204, 63
      %p210 = scmp.lt.s32.totalorder %s205, 4
      %s211 = scalar_select %p210, %s205, 4
      %s212 = smul.addr %s209, 5
      %s213 = sadd.s32 %s211, %s212
      %s214 = smul.addr %s207, 320
      %s215 = sadd.s32 %s213, %s214
      %s216 = smul.addr %s215, 4
      %s217 = scalar_lea.vmem %s0, %s216
      %p218 = pneg %p58
      %p219 = pneg %p55
      %s220 = smul.u32 80, %s21
      %p221 = scmp.lt.s32.totalorder %s19, 0
      %s222 = scalar_select %p221, %s19, 0
      %p223 = scmp.lt.s32.totalorder %s220, 79
      %s224 = scalar_select %p223, %s220, 79
      %s225 = smul.addr %s222, 80
      %s226 = sadd.s32 %s224, %s225
      %s227 = smul.addr %s226, 4
      %s228 = scalar_lea.vmem %s1, %s227
      %p229 = pneg %p86
      %p230 = pneg %p83
      %p231 = scmp.lt.s32.totalorder %s19, 0
      %s232 = scalar_select %p231, %s19, 0
      %s233 = scalar_lea.vmem %s2, %s232
      %p234 = pneg %p112
      %p235 = pneg %p109
      %p236 = pneg %p140
      %p237 = pneg %p137
      %s238 = smul.u32 32, %s20
      %p239 = scmp.lt.s32.totalorder %s19, 0
      %s240 = scalar_select %p239, %s19, 0
      %p241 = scmp.lt.s32.totalorder %s238, 63
      %s242 = scalar_select %p241, %s238, 63
      %s243 = smul.addr %s240, 64
      %s244 = sadd.s32 %s242, %s243
      %s245 = smul.addr %s244, 8
      %s246 = scalar_lea.vmem %s3, %s245
      %s247 = smul.u32 32, %s20
      %s248 = smul.u32 5, %s21
      %p249 = scmp.lt.s32.totalorder %s19, 0
      %s250 = scalar_select %p249, %s19, 0
      %p251 = scmp.lt.s32.totalorder %s247, 63
      %s252 = scalar_select %p251, %s247, 63
      %p253 = scmp.lt.s32.totalorder %s248, 4
      %s254 = scalar_select %p253, %s248, 4
      %s255 = smul.addr %s252, 5
      %s256 = sadd.s32 %s254, %s255
      %s257 = smul.addr %s250, 320
      %s258 = sadd.s32 %s256, %s257
      %s259 = smul.addr %s258, 4
      %s260 = scalar_lea.vmem %s0, %s259
      %s261 = smul.u32 32, %s20
      %s262 = smul.u32 5, %s21
      %s263 = smul.u32 80, %s21
      %p264 = scmp.lt.s32.totalorder %s19, 0
      %s265 = scalar_select %p264, %s19, 0
      %p266 = scmp.lt.s32.totalorder %s263, 79
      %s267 = scalar_select %p266, %s263, 79
      %s268 = smul.addr %s265, 80
      %s269 = sadd.s32 %s267, %s268
      %s270 = smul.addr %s269, 4
      %s271 = scalar_lea.vmem %s1, %s270
      %s272 = smul.u32 80, %s21
      %p273 = scmp.lt.s32.totalorder %s19, 0
      %s274 = scalar_select %p273, %s19, 0
      %s275 = scalar_lea.vmem %s2, %s274
      %s276 = smul.u32 32, %s20
      %p277 = scmp.lt.s32.totalorder %s19, 0
      %s278 = scalar_select %p277, %s19, 0
      %p279 = scmp.lt.s32.totalorder %s276, 63
      %s280 = scalar_select %p279, %s276, 63
      %s281 = smul.addr %s278, 64
      %s282 = sadd.s32 %s280, %s281
      %s283 = smul.addr %s282, 8
      %s284 = scalar_lea.vmem %s3, %s283
      %s285 = smul.u32 32, %s20
      %p287 = scmp.eq.s32.totalorder %s21, 0
      // Predicated region
      $region33: #{_lambda_.2} parent=31 // pred_check
        %p288 = pneg %p287
      $region34: #{_lambda_.2} parent=31 // pred_check_branch
        %290 = sbr.rel (%p288) target = $region36
      $region35: #{_lambda_.2} parent=31 // pred_region
        %291 = vst [vmem:[#allocation2] sm:$0xff] 0.0
        %292 = vst [vmem:[#allocation2 + $0x8] sm:$0xff] 0.0
        %293 = vst [vmem:[#allocation2 + $0x10] sm:$0xff] 0.0
        %294 = vst [vmem:[#allocation2 + $0x18] sm:$0xff] 0.0
        %295 = vst [vmem:[#allocation2 + $0x20] sm:$0xff] 0.0
        %296 = vst [vmem:[#allocation2 + $0x28] sm:$0xff] 0.0
        %297 = vst [vmem:[#allocation2 + $0x30] sm:$0xff] 0.0
        %298 = vst [vmem:[#allocation2 + $0x38] sm:$0xff] 0.0
        %299 = vst [vmem:[#allocation2 + $0x40] sm:$0xff] 0.0
        %300 = vst [vmem:[#allocation2 + $0x48] sm:$0xff] 0.0
        %301 = vst [vmem:[#allocation2 + $0x50] sm:$0xff] 0.0
        %302 = vst [vmem:[#allocation2 + $0x58] sm:$0xff] 0.0
        %303 = vst [vmem:[#allocation2 + $0x60] sm:$0xff] 0.0
        %304 = vst [vmem:[#allocation2 + $0x68] sm:$0xff] 0.0
        %305 = vst [vmem:[#allocation2 + $0x70] sm:$0xff] 0.0
        %306 = vst [vmem:[#allocation2 + $0x78] sm:$0xff] 0.0
        %307 = vst [vmem:[#allocation2 + $0x80] sm:$0xff] 0.0
        %308 = vst [vmem:[#allocation2 + $0x88] sm:$0xff] 0.0
        %309 = vst [vmem:[#allocation2 + $0x90] sm:$0xff] 0.0
        %310 = vst [vmem:[#allocation2 + $0x98] sm:$0xff] 0.0
        %311 = vst [vmem:[#allocation2 + $0xa0] sm:$0xff] 0.0
        %312 = vst [vmem:[#allocation2 + $0xa8] sm:$0xff] 0.0
        %313 = vst [vmem:[#allocation2 + $0xb0] sm:$0xff] 0.0
        %314 = vst [vmem:[#allocation2 + $0xb8] sm:$0xff] 0.0
        %315 = vst [vmem:[#allocation2 + $0xc0] sm:$0xff] 0.0
        %316 = vst [vmem:[#allocation2 + $0xc8] sm:$0xff] 0.0
        %317 = vst [vmem:[#allocation2 + $0xd0] sm:$0xff] 0.0
        %318 = vst [vmem:[#allocation2 + $0xd8] sm:$0xff] 0.0
        %319 = vst [vmem:[#allocation2 + $0xe0] sm:$0xff] 0.0
        %320 = vst [vmem:[#allocation2 + $0xe8] sm:$0xff] 0.0
        %321 = vst [vmem:[#allocation2 + $0xf0] sm:$0xff] 0.0
        %322 = vst [vmem:[#allocation2 + $0xf8] sm:$0xff] 0.0
      $region36: #{_lambda_.2} parent=31 // pred_fallthru
        _
      %v323 = vld [vmem:[#allocation2] sm:$0xff]
      %v324 = vld [vmem:[#allocation2 + $0x8] sm:$0xff]
      %v325 = vld [vmem:[#allocation2 + $0x10] sm:$0xff]
      %v326 = vld [vmem:[#allocation2 + $0x18] sm:$0xff]
      %v327 = vld [vmem:[#allocation2 + $0x20] sm:$0xff]
      %v328 = vld [vmem:[#allocation2 + $0x28] sm:$0xff]
      %v329 = vld [vmem:[#allocation2 + $0x30] sm:$0xff]
      %v330 = vld [vmem:[#allocation2 + $0x38] sm:$0xff]
      %v331 = vld [vmem:[#allocation2 + $0x40] sm:$0xff]
      %v332 = vld [vmem:[#allocation2 + $0x48] sm:$0xff]
      %v333 = vld [vmem:[#allocation2 + $0x50] sm:$0xff]
      %v334 = vld [vmem:[#allocation2 + $0x58] sm:$0xff]
      %v335 = vld [vmem:[#allocation2 + $0x60] sm:$0xff]
      %v336 = vld [vmem:[#allocation2 + $0x68] sm:$0xff]
      %v337 = vld [vmem:[#allocation2 + $0x70] sm:$0xff]
      %v338 = vld [vmem:[#allocation2 + $0x78] sm:$0xff]
      %v339 = vld [vmem:[#allocation2 + $0x80] sm:$0xff]
      %v340 = vld [vmem:[#allocation2 + $0x88] sm:$0xff]
      %v341 = vld [vmem:[#allocation2 + $0x90] sm:$0xff]
      %v342 = vld [vmem:[#allocation2 + $0x98] sm:$0xff]
      %v343 = vld [vmem:[#allocation2 + $0xa0] sm:$0xff]
      %v344 = vld [vmem:[#allocation2 + $0xa8] sm:$0xff]
      %v345 = vld [vmem:[#allocation2 + $0xb0] sm:$0xff]
      %v346 = vld [vmem:[#allocation2 + $0xb8] sm:$0xff]
      %v347 = vld [vmem:[#allocation2 + $0xc0] sm:$0xff]
      %v348 = vld [vmem:[#allocation2 + $0xc8] sm:$0xff]
      %v349 = vld [vmem:[#allocation2 + $0xd0] sm:$0xff]
      %v350 = vld [vmem:[#allocation2 + $0xd8] sm:$0xff]
      %v351 = vld [vmem:[#allocation2 + $0xe0] sm:$0xff]
      %v352 = vld [vmem:[#allocation2 + $0xe8] sm:$0xff]
      %v353 = vld [vmem:[#allocation2 + $0xf0] sm:$0xff]
      %v354 = vld [vmem:[#allocation2 + $0xf8] sm:$0xff]
      %v355 = vld [vmem:[%s260] sm:$0xff]
      %v356 = vld [vmem:[%s260 + $0x8] sm:$0xff]
      %v357 = vld [vmem:[%s260 + $0x10] sm:$0xf]
      %v358 = vld [vmem:[%s260 + $0x14] sm:$0xff]
      %v359 = vld [vmem:[%s260 + $0x1c] sm:$0xff]
      %v360 = vld [vmem:[%s260 + $0x24] sm:$0xf]
      %v361 = vld [vmem:[%s260 + $0x28] sm:$0xff]
      %v362 = vld [vmem:[%s260 + $0x30] sm:$0xff]
      %v363 = vld [vmem:[%s260 + $0x38] sm:$0xf]
      %v364 = vld [vmem:[%s260 + $0x3c] sm:$0xff]
      %v365 = vld [vmem:[%s260 + $0x44] sm:$0xff]
      %v366 = vld [vmem:[%s260 + $0x4c] sm:$0xf]
      %v367 = vld [vmem:[%s260 + $0x50] sm:$0xff]
      %v368 = vld [vmem:[%s260 + $0x58] sm:$0xff]
      %v369 = vld [vmem:[%s260 + $0x60] sm:$0xf]
      %v370 = vld [vmem:[%s260 + $0x64] sm:$0xff]
      %v371 = vld [vmem:[%s260 + $0x6c] sm:$0xff]
      %v372 = vld [vmem:[%s260 + $0x74] sm:$0xf]
      %v373 = vld [vmem:[%s260 + $0x78] sm:$0xff]
      %v374 = vld [vmem:[%s260 + $0x80] sm:$0xff]
      %v375 = vld [vmem:[%s260 + $0x88] sm:$0xf]
      %v376 = vld [vmem:[%s260 + $0x8c] sm:$0xff]
      %v377 = vld [vmem:[%s260 + $0x94] sm:$0xff]
      %v378 = vld [vmem:[%s260 + $0x9c] sm:$0xf]
      %v379 = vld [vmem:[%s260 + $0xa0] sm:$0xff]
      %v380 = vld [vmem:[%s260 + $0xa8] sm:$0xff]
      %v381 = vld [vmem:[%s260 + $0xb0] sm:$0xf]
      %v382 = vld [vmem:[%s260 + $0xb4] sm:$0xff]
      %v383 = vld [vmem:[%s260 + $0xbc] sm:$0xff]
      %v384 = vld [vmem:[%s260 + $0xc4] sm:$0xf]
      %v385 = vld [vmem:[%s260 + $0xc8] sm:$0xff]
      %v386 = vld [vmem:[%s260 + $0xd0] sm:$0xff]
      %v387 = vld [vmem:[%s260 + $0xd8] sm:$0xf]
      %v388 = vld [vmem:[%s260 + $0xdc] sm:$0xff]
      %v389 = vld [vmem:[%s260 + $0xe4] sm:$0xff]
      %v390 = vld [vmem:[%s260 + $0xec] sm:$0xf]
      %v391 = vld [vmem:[%s260 + $0xf0] sm:$0xff]
      %v392 = vld [vmem:[%s260 + $0xf8] sm:$0xff]
      %v393 = vld [vmem:[%s260 + $0x100] sm:$0xf]
      %v394 = vld [vmem:[%s260 + $0x104] sm:$0xff]
      %v395 = vld [vmem:[%s260 + $0x10c] sm:$0xff]
      %v396 = vld [vmem:[%s260 + $0x114] sm:$0xf]
      %v397 = vld [vmem:[%s260 + $0x118] sm:$0xff]
      %v398 = vld [vmem:[%s260 + $0x120] sm:$0xff]
      %v399 = vld [vmem:[%s260 + $0x128] sm:$0xf]
      %v400 = vld [vmem:[%s260 + $0x12c] sm:$0xff]
      %v401 = vld [vmem:[%s260 + $0x134] sm:$0xff]
      %v402 = vld [vmem:[%s260 + $0x13c] sm:$0xf]
      %v403 = vld [vmem:[%s260 + $0x140] sm:$0xff]
      %v404 = vld [vmem:[%s260 + $0x148] sm:$0xff]
      %v405 = vld [vmem:[%s260 + $0x150] sm:$0xf]
      %v406 = vld [vmem:[%s260 + $0x154] sm:$0xff]
      %v407 = vld [vmem:[%s260 + $0x15c] sm:$0xff]
      %v408 = vld [vmem:[%s260 + $0x164] sm:$0xf]
      %v409 = vld [vmem:[%s260 + $0x168] sm:$0xff]
      %v410 = vld [vmem:[%s260 + $0x170] sm:$0xff]
      %v411 = vld [vmem:[%s260 + $0x178] sm:$0xf]
      %v412 = vld [vmem:[%s260 + $0x17c] sm:$0xff]
      %v413 = vld [vmem:[%s260 + $0x184] sm:$0xff]
      %v414 = vld [vmem:[%s260 + $0x18c] sm:$0xf]
      %v415 = vld [vmem:[%s260 + $0x190] sm:$0xff]
      %v416 = vld [vmem:[%s260 + $0x198] sm:$0xff]
      %v417 = vld [vmem:[%s260 + $0x1a0] sm:$0xf]
      %v418 = vld [vmem:[%s260 + $0x1a4] sm:$0xff]
      %v419 = vld [vmem:[%s260 + $0x1ac] sm:$0xff]
      %v420 = vld [vmem:[%s260 + $0x1b4] sm:$0xf]
      %v421 = vld [vmem:[%s260 + $0x1b8] sm:$0xff]
      %v422 = vld [vmem:[%s260 + $0x1c0] sm:$0xff]
      %v423 = vld [vmem:[%s260 + $0x1c8] sm:$0xf]
      %v424 = vld [vmem:[%s260 + $0x1cc] sm:$0xff]
      %v425 = vld [vmem:[%s260 + $0x1d4] sm:$0xff]
      %v426 = vld [vmem:[%s260 + $0x1dc] sm:$0xf]
      %v427 = vld [vmem:[%s260 + $0x1e0] sm:$0xff]
      %v428 = vld [vmem:[%s260 + $0x1e8] sm:$0xff]
      %v429 = vld [vmem:[%s260 + $0x1f0] sm:$0xf]
      %v430 = vld [vmem:[%s260 + $0x1f4] sm:$0xff]
      %v431 = vld [vmem:[%s260 + $0x1fc] sm:$0xff]
      %v432 = vld [vmem:[%s260 + $0x204] sm:$0xf]
      %v433 = vld [vmem:[%s260 + $0x208] sm:$0xff]
      %v434 = vld [vmem:[%s260 + $0x210] sm:$0xff]
      %v435 = vld [vmem:[%s260 + $0x218] sm:$0xf]
      %v436 = vld [vmem:[%s260 + $0x21c] sm:$0xff]
      %v437 = vld [vmem:[%s260 + $0x224] sm:$0xff]
      %v438 = vld [vmem:[%s260 + $0x22c] sm:$0xf]
      %v439 = vld [vmem:[%s260 + $0x230] sm:$0xff]
      %v440 = vld [vmem:[%s260 + $0x238] sm:$0xff]
      %v441 = vld [vmem:[%s260 + $0x240] sm:$0xf]
      %v442 = vld [vmem:[%s260 + $0x244] sm:$0xff]
      %v443 = vld [vmem:[%s260 + $0x24c] sm:$0xff]
      %v444 = vld [vmem:[%s260 + $0x254] sm:$0xf]
      %v445 = vld [vmem:[%s260 + $0x258] sm:$0xff]
      %v446 = vld [vmem:[%s260 + $0x260] sm:$0xff]
      %v447 = vld [vmem:[%s260 + $0x268] sm:$0xf]
      %v448 = vld [vmem:[%s260 + $0x26c] sm:$0xff]
      %v449 = vld [vmem:[%s260 + $0x274] sm:$0xff]
      %v450 = vld [vmem:[%s260 + $0x27c] sm:$0xf]
      %v451 = vld [vmem:[%s271] sm:$0xf]
      %v452 = vld [vmem:[%s271 + $0x4] sm:$0xf]
      %v453 = vld [vmem:[%s271 + $0x8] sm:$0xf]
      %v454 = vld [vmem:[%s271 + $0xc] sm:$0xf]
      %v455 = vld [vmem:[%s271 + $0x10] sm:$0xf]
      %v456 = vld [vmem:[%s271 + $0x14] sm:$0xf]
      %v457 = vld [vmem:[%s271 + $0x18] sm:$0xf]
      %v458 = vld [vmem:[%s271 + $0x1c] sm:$0xf]
      %v459 = vld [vmem:[%s271 + $0x20] sm:$0xf]
      %v460 = vld [vmem:[%s271 + $0x24] sm:$0xf]
      %v461 = vld [vmem:[%s271 + $0x28] sm:$0xf]
      %v462 = vld [vmem:[%s271 + $0x2c] sm:$0xf]
      %v463 = vld [vmem:[%s271 + $0x30] sm:$0xf]
      %v464 = vld [vmem:[%s271 + $0x34] sm:$0xf]
      %v465 = vld [vmem:[%s271 + $0x38] sm:$0xf]
      %v466 = vld [vmem:[%s271 + $0x3c] sm:$0xf]
      %v467 = vld [vmem:[%s271 + $0x40] sm:$0xf]
      %v468 = vld [vmem:[%s271 + $0x44] sm:$0xf]
      %v469 = vld [vmem:[%s271 + $0x48] sm:$0xf]
      %v470 = vld [vmem:[%s271 + $0x4c] sm:$0xf]
      %v471 = vld [vmem:[%s271 + $0x50] sm:$0xf]
      %v472 = vld [vmem:[%s271 + $0x54] sm:$0xf]
      %v473 = vld [vmem:[%s271 + $0x58] sm:$0xf]
      %v474 = vld [vmem:[%s271 + $0x5c] sm:$0xf]
      %v475 = vld [vmem:[%s271 + $0x60] sm:$0xf]
      %v476 = vld [vmem:[%s271 + $0x64] sm:$0xf]
      %v477 = vld [vmem:[%s271 + $0x68] sm:$0xf]
      %v478 = vld [vmem:[%s271 + $0x6c] sm:$0xf]
      %v479 = vld [vmem:[%s271 + $0x70] sm:$0xf]
      %v480 = vld [vmem:[%s271 + $0x74] sm:$0xf]
      %v481 = vld [vmem:[%s271 + $0x78] sm:$0xf]
      %v482 = vld [vmem:[%s271 + $0x7c] sm:$0xf]
      %v483 = vld [vmem:[%s271 + $0x80] sm:$0xf]
      %v484 = vld [vmem:[%s271 + $0x84] sm:$0xf]
      %v485 = vld [vmem:[%s271 + $0x88] sm:$0xf]
      %v486 = vld [vmem:[%s271 + $0x8c] sm:$0xf]
      %v487 = vld [vmem:[%s271 + $0x90] sm:$0xf]
      %v488 = vld [vmem:[%s271 + $0x94] sm:$0xf]
      %v489 = vld [vmem:[%s271 + $0x98] sm:$0xf]
      %v490 = vld [vmem:[%s271 + $0x9c] sm:$0xf]
      %v491 = vld [vmem:[%s271 + $0xa0] sm:$0xf]
      %v492 = vld [vmem:[%s271 + $0xa4] sm:$0xf]
      %v493 = vld [vmem:[%s271 + $0xa8] sm:$0xf]
      %v494 = vld [vmem:[%s271 + $0xac] sm:$0xf]
      %v495 = vld [vmem:[%s271 + $0xb0] sm:$0xf]
      %v496 = vld [vmem:[%s271 + $0xb4] sm:$0xf]
      %v497 = vld [vmem:[%s271 + $0xb8] sm:$0xf]
      %v498 = vld [vmem:[%s271 + $0xbc] sm:$0xf]
      %v499 = vld [vmem:[%s271 + $0xc0] sm:$0xf]
      %v500 = vld [vmem:[%s271 + $0xc4] sm:$0xf]
      %v501 = vld [vmem:[%s271 + $0xc8] sm:$0xf]
      %v502 = vld [vmem:[%s271 + $0xcc] sm:$0xf]
      %v503 = vld [vmem:[%s271 + $0xd0] sm:$0xf]
      %v504 = vld [vmem:[%s271 + $0xd4] sm:$0xf]
      %v505 = vld [vmem:[%s271 + $0xd8] sm:$0xf]
      %v506 = vld [vmem:[%s271 + $0xdc] sm:$0xf]
      %v507 = vld [vmem:[%s271 + $0xe0] sm:$0xf]
      %v508 = vld [vmem:[%s271 + $0xe4] sm:$0xf]
      %v509 = vld [vmem:[%s271 + $0xe8] sm:$0xf]
      %v510 = vld [vmem:[%s271 + $0xec] sm:$0xf]
      %v511 = vld [vmem:[%s271 + $0xf0] sm:$0xf]
      %v512 = vld [vmem:[%s271 + $0xf4] sm:$0xf]
      %v513 = vld [vmem:[%s271 + $0xf8] sm:$0xf]
      %v514 = vld [vmem:[%s271 + $0xfc] sm:$0xf]
      %v515 = vld [vmem:[%s271 + $0x100] sm:$0xf]
      %v516 = vld [vmem:[%s271 + $0x104] sm:$0xf]
      %v517 = vld [vmem:[%s271 + $0x108] sm:$0xf]
      %v518 = vld [vmem:[%s271 + $0x10c] sm:$0xf]
      %v519 = vld [vmem:[%s271 + $0x110] sm:$0xf]
      %v520 = vld [vmem:[%s271 + $0x114] sm:$0xf]
      %v521 = vld [vmem:[%s271 + $0x118] sm:$0xf]
      %v522 = vld [vmem:[%s271 + $0x11c] sm:$0xf]
      %v523 = vld [vmem:[%s271 + $0x120] sm:$0xf]
      %v524 = vld [vmem:[%s271 + $0x124] sm:$0xf]
      %v525 = vld [vmem:[%s271 + $0x128] sm:$0xf]
      %v526 = vld [vmem:[%s271 + $0x12c] sm:$0xf]
      %v527 = vld [vmem:[%s271 + $0x130] sm:$0xf]
      %v528 = vld [vmem:[%s271 + $0x134] sm:$0xf]
      %v529 = vld [vmem:[%s271 + $0x138] sm:$0xf]
      %v530 = vld [vmem:[%s271 + $0x13c] sm:$0xf]
      %v627 = vunpack.c.l.b16 %v355
      %v628 = vunpack.c.h.b16 %v355
      %v629 = vunpack.c.l.b16 %v356
      %v630 = vunpack.c.h.b16 %v356
      %v631 = vunpack.c.l.b16 %v357
      %v632 = vunpack.c.l.b16 %v358
      %v633 = vunpack.c.h.b16 %v358
      %v634 = vunpack.c.l.b16 %v359
      %v635 = vunpack.c.h.b16 %v359
      %v636 = vunpack.c.l.b16 %v360
      %v637 = vunpack.c.l.b16 %v361
      %v638 = vunpack.c.h.b16 %v361
      %v639 = vunpack.c.l.b16 %v362
      %v640 = vunpack.c.h.b16 %v362
      %v641 = vunpack.c.l.b16 %v363
      %v642 = vunpack.c.l.b16 %v364
      %v643 = vunpack.c.h.b16 %v364
      %v644 = vunpack.c.l.b16 %v365
      %v645 = vunpack.c.h.b16 %v365
      %v646 = vunpack.c.l.b16 %v366
      %v647 = vunpack.c.l.b16 %v367
      %v648 = vunpack.c.h.b16 %v367
      %v649 = vunpack.c.l.b16 %v368
      %v650 = vunpack.c.h.b16 %v368
      %v651 = vunpack.c.l.b16 %v369
      %v652 = vunpack.c.l.b16 %v370
      %v653 = vunpack.c.h.b16 %v370
      %v654 = vunpack.c.l.b16 %v371
      %v655 = vunpack.c.h.b16 %v371
      %v656 = vunpack.c.l.b16 %v372
      %v657 = vunpack.c.l.b16 %v373
      %v658 = vunpack.c.h.b16 %v373
      %v659 = vunpack.c.l.b16 %v374
      %v660 = vunpack.c.h.b16 %v374
      %v661 = vunpack.c.l.b16 %v375
      %v662 = vunpack.c.l.b16 %v376
      %v663 = vunpack.c.h.b16 %v376
      %v664 = vunpack.c.l.b16 %v377
      %v665 = vunpack.c.h.b16 %v377
      %v666 = vunpack.c.l.b16 %v378
      %v667 = vunpack.c.l.b16 %v379
      %v668 = vunpack.c.h.b16 %v379
      %v669 = vunpack.c.l.b16 %v380
      %v670 = vunpack.c.h.b16 %v380
      %v671 = vunpack.c.l.b16 %v381
      %v672 = vunpack.c.l.b16 %v382
      %v673 = vunpack.c.h.b16 %v382
      %v674 = vunpack.c.l.b16 %v383
      %v675 = vunpack.c.h.b16 %v383
      %v676 = vunpack.c.l.b16 %v384
      %v677 = vunpack.c.l.b16 %v385
      %v678 = vunpack.c.h.b16 %v385
      %v679 = vunpack.c.l.b16 %v386
      %v680 = vunpack.c.h.b16 %v386
      %v681 = vunpack.c.l.b16 %v387
      %v682 = vunpack.c.l.b16 %v388
      %v683 = vunpack.c.h.b16 %v388
      %v684 = vunpack.c.l.b16 %v389
      %v685 = vunpack.c.h.b16 %v389
      %v686 = vunpack.c.l.b16 %v390
      %v687 = vunpack.c.l.b16 %v391
      %v688 = vunpack.c.h.b16 %v391
      %v689 = vunpack.c.l.b16 %v392
      %v690 = vunpack.c.h.b16 %v392
      %v691 = vunpack.c.l.b16 %v393
      %v692 = vunpack.c.l.b16 %v394
      %v693 = vunpack.c.h.b16 %v394
      %v694 = vunpack.c.l.b16 %v395
      %v695 = vunpack.c.h.b16 %v395
      %v696 = vunpack.c.l.b16 %v396
      %v697 = vunpack.c.l.b16 %v397
      %v698 = vunpack.c.h.b16 %v397
      %v699 = vunpack.c.l.b16 %v398
      %v700 = vunpack.c.h.b16 %v398
      %v701 = vunpack.c.l.b16 %v399
      %v702 = vunpack.c.l.b16 %v400
      %v703 = vunpack.c.h.b16 %v400
      %v704 = vunpack.c.l.b16 %v401
      %v705 = vunpack.c.h.b16 %v401
      %v706 = vunpack.c.l.b16 %v402
      %v707 = vunpack.c.l.b16 %v403
      %v708 = vunpack.c.h.b16 %v403
      %v709 = vunpack.c.l.b16 %v404
      %v710 = vunpack.c.h.b16 %v404
      %v711 = vunpack.c.l.b16 %v405
      %v712 = vunpack.c.l.b16 %v406
      %v713 = vunpack.c.h.b16 %v406
      %v714 = vunpack.c.l.b16 %v407
      %v715 = vunpack.c.h.b16 %v407
      %v716 = vunpack.c.l.b16 %v408
      %v717 = vunpack.c.l.b16 %v409
      %v718 = vunpack.c.h.b16 %v409
      %v719 = vunpack.c.l.b16 %v410
      %v720 = vunpack.c.h.b16 %v410
      %v721 = vunpack.c.l.b16 %v411
      %v722 = vunpack.c.l.b16 %v412
      %v723 = vunpack.c.h.b16 %v412
      %v724 = vunpack.c.l.b16 %v413
      %v725 = vunpack.c.h.b16 %v413
      %v726 = vunpack.c.l.b16 %v414
      %v727 = vunpack.c.l.b16 %v415
      %v728 = vunpack.c.h.b16 %v415
      %v729 = vunpack.c.l.b16 %v416
      %v730 = vunpack.c.h.b16 %v416
      %v731 = vunpack.c.l.b16 %v417
      %v732 = vunpack.c.l.b16 %v418
      %v733 = vunpack.c.h.b16 %v418
      %v734 = vunpack.c.l.b16 %v419
      %v735 = vunpack.c.h.b16 %v419
      %v736 = vunpack.c.l.b16 %v420
      %v737 = vunpack.c.l.b16 %v421
      %v738 = vunpack.c.h.b16 %v421
      %v739 = vunpack.c.l.b16 %v422
      %v740 = vunpack.c.h.b16 %v422
      %v741 = vunpack.c.l.b16 %v423
      %v742 = vunpack.c.l.b16 %v424
      %v743 = vunpack.c.h.b16 %v424
      %v744 = vunpack.c.l.b16 %v425
      %v745 = vunpack.c.h.b16 %v425
      %v746 = vunpack.c.l.b16 %v426
      %v747 = vunpack.c.l.b16 %v427
      %v748 = vunpack.c.h.b16 %v427
      %v749 = vunpack.c.l.b16 %v428
      %v750 = vunpack.c.h.b16 %v428
      %v751 = vunpack.c.l.b16 %v429
      %v752 = vunpack.c.l.b16 %v430
      %v753 = vunpack.c.h.b16 %v430
      %v754 = vunpack.c.l.b16 %v431
      %v755 = vunpack.c.h.b16 %v431
      %v756 = vunpack.c.l.b16 %v432
      %v757 = vunpack.c.l.b16 %v433
      %v758 = vunpack.c.h.b16 %v433
      %v759 = vunpack.c.l.b16 %v434
      %v760 = vunpack.c.h.b16 %v434
      %v761 = vunpack.c.l.b16 %v435
      %v762 = vunpack.c.l.b16 %v436
      %v763 = vunpack.c.h.b16 %v436
      %v764 = vunpack.c.l.b16 %v437
      %v765 = vunpack.c.h.b16 %v437
      %v766 = vunpack.c.l.b16 %v438
      %v767 = vunpack.c.l.b16 %v439
      %v768 = vunpack.c.h.b16 %v439
      %v769 = vunpack.c.l.b16 %v440
      %v770 = vunpack.c.h.b16 %v440
      %v771 = vunpack.c.l.b16 %v441
      %v772 = vunpack.c.l.b16 %v442
      %v773 = vunpack.c.h.b16 %v442
      %v774 = vunpack.c.l.b16 %v443
      %v775 = vunpack.c.h.b16 %v443
      %v776 = vunpack.c.l.b16 %v444
      %v777 = vunpack.c.l.b16 %v445
      %v778 = vunpack.c.h.b16 %v445
      %v779 = vunpack.c.l.b16 %v446
      %v780 = vunpack.c.h.b16 %v446
      %v781 = vunpack.c.l.b16 %v447
      %v782 = vunpack.c.l.b16 %v448
      %v783 = vunpack.c.h.b16 %v448
      %v784 = vunpack.c.l.b16 %v449
      %v785 = vunpack.c.h.b16 %v449
      %v786 = vunpack.c.l.b16 %v450
      %v787 = vpack.c.b16 %v632, %v627
      %v788 = vpack.c.b16 %v633, %v628
      %v789 = vpack.c.b16 %v634, %v629
      %v790 = vpack.c.b16 %v635, %v630
      %v791 = vpack.c.b16 %v636, %v631
      %v792 = vpack.c.b16 %v642, %v637
      %v793 = vpack.c.b16 %v643, %v638
      %v794 = vpack.c.b16 %v644, %v639
      %v795 = vpack.c.b16 %v645, %v640
      %v796 = vpack.c.b16 %v646, %v641
      %v797 = vpack.c.b16 %v652, %v647
      %v798 = vpack.c.b16 %v653, %v648
      %v799 = vpack.c.b16 %v654, %v649
      %v800 = vpack.c.b16 %v655, %v650
      %v801 = vpack.c.b16 %v656, %v651
      %v802 = vpack.c.b16 %v662, %v657
      %v803 = vpack.c.b16 %v663, %v658
      %v804 = vpack.c.b16 %v664, %v659
      %v805 = vpack.c.b16 %v665, %v660
      %v806 = vpack.c.b16 %v666, %v661
      %v807 = vpack.c.b16 %v672, %v667
      %v808 = vpack.c.b16 %v673, %v668
      %v809 = vpack.c.b16 %v674, %v669
      %v810 = vpack.c.b16 %v675, %v670
      %v811 = vpack.c.b16 %v676, %v671
      %v812 = vpack.c.b16 %v682, %v677
      %v813 = vpack.c.b16 %v683, %v678
      %v814 = vpack.c.b16 %v684, %v679
      %v815 = vpack.c.b16 %v685, %v680
      %v816 = vpack.c.b16 %v686, %v681
      %v817 = vpack.c.b16 %v692, %v687
      %v818 = vpack.c.b16 %v693, %v688
      %v819 = vpack.c.b16 %v694, %v689
      %v820 = vpack.c.b16 %v695, %v690
      %v821 = vpack.c.b16 %v696, %v691
      %v822 = vpack.c.b16 %v702, %v697
      %v823 = vpack.c.b16 %v703, %v698
      %v824 = vpack.c.b16 %v704, %v699
      %v825 = vpack.c.b16 %v705, %v700
      %v826 = vpack.c.b16 %v706, %v701
      %v827 = vpack.c.b16 %v712, %v707
      %v828 = vpack.c.b16 %v713, %v708
      %v829 = vpack.c.b16 %v714, %v709
      %v830 = vpack.c.b16 %v715, %v710
      %v831 = vpack.c.b16 %v716, %v711
      %v832 = vpack.c.b16 %v722, %v717
      %v833 = vpack.c.b16 %v723, %v718
      %v834 = vpack.c.b16 %v724, %v719
      %v835 = vpack.c.b16 %v725, %v720
      %v836 = vpack.c.b16 %v726, %v721
      %v837 = vpack.c.b16 %v732, %v727
      %v838 = vpack.c.b16 %v733, %v728
      %v839 = vpack.c.b16 %v734, %v729
      %v840 = vpack.c.b16 %v735, %v730
      %v841 = vpack.c.b16 %v736, %v731
      %v842 = vpack.c.b16 %v742, %v737
      %v843 = vpack.c.b16 %v743, %v738
      %v844 = vpack.c.b16 %v744, %v739
      %v845 = vpack.c.b16 %v745, %v740
      %v846 = vpack.c.b16 %v746, %v741
      %v847 = vpack.c.b16 %v752, %v747
      %v848 = vpack.c.b16 %v753, %v748
      %v849 = vpack.c.b16 %v754, %v749
      %v850 = vpack.c.b16 %v755, %v750
      %v851 = vpack.c.b16 %v756, %v751
      %v852 = vpack.c.b16 %v762, %v757
      %v853 = vpack.c.b16 %v763, %v758
      %v854 = vpack.c.b16 %v764, %v759
      %v855 = vpack.c.b16 %v765, %v760
      %v856 = vpack.c.b16 %v766, %v761
      %v857 = vpack.c.b16 %v772, %v767
      %v858 = vpack.c.b16 %v773, %v768
      %v859 = vpack.c.b16 %v774, %v769
      %v860 = vpack.c.b16 %v775, %v770
      %v861 = vpack.c.b16 %v776, %v771
      %v862 = vpack.c.b16 %v782, %v777
      %v863 = vpack.c.b16 %v783, %v778
      %v864 = vpack.c.b16 %v784, %v779
      %v865 = vpack.c.b16 %v785, %v780
      %v866 = vpack.c.b16 %v786, %v781
      %v1027 = vunpack.c.l.b16 %v451
      %v1028 = vunpack.c.l.b16 %v452
      %v1029 = vunpack.c.l.b16 %v453
      %v1030 = vunpack.c.l.b16 %v454
      %v1031 = vunpack.c.l.b16 %v455
      %v1032 = vunpack.c.l.b16 %v456
      %v1033 = vunpack.c.l.b16 %v457
      %v1034 = vunpack.c.l.b16 %v458
      %v1035 = vunpack.c.l.b16 %v459
      %v1036 = vunpack.c.l.b16 %v460
      %v1037 = vunpack.c.l.b16 %v461
      %v1038 = vunpack.c.l.b16 %v462
      %v1039 = vunpack.c.l.b16 %v463
      %v1040 = vunpack.c.l.b16 %v464
      %v1041 = vunpack.c.l.b16 %v465
      %v1042 = vunpack.c.l.b16 %v466
      %v1043 = vunpack.c.l.b16 %v467
      %v1044 = vunpack.c.l.b16 %v468
      %v1045 = vunpack.c.l.b16 %v469
      %v1046 = vunpack.c.l.b16 %v470
      %v1047 = vunpack.c.l.b16 %v471
      %v1048 = vunpack.c.l.b16 %v472
      %v1049 = vunpack.c.l.b16 %v473
      %v1050 = vunpack.c.l.b16 %v474
      %v1051 = vunpack.c.l.b16 %v475
      %v1052 = vunpack.c.l.b16 %v476
      %v1053 = vunpack.c.l.b16 %v477
      %v1054 = vunpack.c.l.b16 %v478
      %v1055 = vunpack.c.l.b16 %v479
      %v1056 = vunpack.c.l.b16 %v480
      %v1057 = vunpack.c.l.b16 %v481
      %v1058 = vunpack.c.l.b16 %v482
      %v1059 = vunpack.c.l.b16 %v483
      %v1060 = vunpack.c.l.b16 %v484
      %v1061 = vunpack.c.l.b16 %v485
      %v1062 = vunpack.c.l.b16 %v486
      %v1063 = vunpack.c.l.b16 %v487
      %v1064 = vunpack.c.l.b16 %v488
      %v1065 = vunpack.c.l.b16 %v489
      %v1066 = vunpack.c.l.b16 %v490
      %v1067 = vunpack.c.l.b16 %v491
      %v1068 = vunpack.c.l.b16 %v492
      %v1069 = vunpack.c.l.b16 %v493
      %v1070 = vunpack.c.l.b16 %v494
      %v1071 = vunpack.c.l.b16 %v495
      %v1072 = vunpack.c.l.b16 %v496
      %v1073 = vunpack.c.l.b16 %v497
      %v1074 = vunpack.c.l.b16 %v498
      %v1075 = vunpack.c.l.b16 %v499
      %v1076 = vunpack.c.l.b16 %v500
      %v1077 = vunpack.c.l.b16 %v501
      %v1078 = vunpack.c.l.b16 %v502
      %v1079 = vunpack.c.l.b16 %v503
      %v1080 = vunpack.c.l.b16 %v504
      %v1081 = vunpack.c.l.b16 %v505
      %v1082 = vunpack.c.l.b16 %v506
      %v1083 = vunpack.c.l.b16 %v507
      %v1084 = vunpack.c.l.b16 %v508
      %v1085 = vunpack.c.l.b16 %v509
      %v1086 = vunpack.c.l.b16 %v510
      %v1087 = vunpack.c.l.b16 %v511
      %v1088 = vunpack.c.l.b16 %v512
      %v1089 = vunpack.c.l.b16 %v513
      %v1090 = vunpack.c.l.b16 %v514
      %v1091 = vunpack.c.l.b16 %v515
      %v1092 = vunpack.c.l.b16 %v516
      %v1093 = vunpack.c.l.b16 %v517
      %v1094 = vunpack.c.l.b16 %v518
      %v1095 = vunpack.c.l.b16 %v519
      %v1096 = vunpack.c.l.b16 %v520
      %v1097 = vunpack.c.l.b16 %v521
      %v1098 = vunpack.c.l.b16 %v522
      %v1099 = vunpack.c.l.b16 %v523
      %v1100 = vunpack.c.l.b16 %v524
      %v1101 = vunpack.c.l.b16 %v525
      %v1102 = vunpack.c.l.b16 %v526
      %v1103 = vunpack.c.l.b16 %v527
      %v1104 = vunpack.c.l.b16 %v528
      %v1105 = vunpack.c.l.b16 %v529
      %v1106 = vunpack.c.l.b16 %v530
      %v1107 = vpack.c.b16 %v1028, %v1027
      %v1108 = vpack.c.b16 %v1030, %v1029
      %v1109 = vpack.c.b16 %v1032, %v1031
      %v1110 = vpack.c.b16 %v1034, %v1033
      %v1111 = vpack.c.b16 %v1036, %v1035
      %v1112 = vpack.c.b16 %v1038, %v1037
      %v1113 = vpack.c.b16 %v1040, %v1039
      %v1114 = vpack.c.b16 %v1042, %v1041
      %v1115 = vpack.c.b16 %v1044, %v1043
      %v1116 = vpack.c.b16 %v1046, %v1045
      %v1117 = vpack.c.b16 %v1048, %v1047
      %v1118 = vpack.c.b16 %v1050, %v1049
      %v1119 = vpack.c.b16 %v1052, %v1051
      %v1120 = vpack.c.b16 %v1054, %v1053
      %v1121 = vpack.c.b16 %v1056, %v1055
      %v1122 = vpack.c.b16 %v1058, %v1057
      %v1123 = vpack.c.b16 %v1060, %v1059
      %v1124 = vpack.c.b16 %v1062, %v1061
      %v1125 = vpack.c.b16 %v1064, %v1063
      %v1126 = vpack.c.b16 %v1066, %v1065
      %v1127 = vpack.c.b16 %v1068, %v1067
      %v1128 = vpack.c.b16 %v1070, %v1069
      %v1129 = vpack.c.b16 %v1072, %v1071
      %v1130 = vpack.c.b16 %v1074, %v1073
      %v1131 = vpack.c.b16 %v1076, %v1075
      %v1132 = vpack.c.b16 %v1078, %v1077
      %v1133 = vpack.c.b16 %v1080, %v1079
      %v1134 = vpack.c.b16 %v1082, %v1081
      %v1135 = vpack.c.b16 %v1084, %v1083
      %v1136 = vpack.c.b16 %v1086, %v1085
      %v1137 = vpack.c.b16 %v1088, %v1087
      %v1138 = vpack.c.b16 %v1090, %v1089
      %v1139 = vpack.c.b16 %v1092, %v1091
      %v1140 = vpack.c.b16 %v1094, %v1093
      %v1141 = vpack.c.b16 %v1096, %v1095
      %v1142 = vpack.c.b16 %v1098, %v1097
      %v1143 = vpack.c.b16 %v1100, %v1099
      %v1144 = vpack.c.b16 %v1102, %v1101
      %v1145 = vpack.c.b16 %v1104, %v1103
      %v1146 = vpack.c.b16 %v1106, %v1105
      %1187 = vmatprep.subr.bf16.mxu0 0
      %1188 = vmatpush1.bf16.msra.mxu0 %v1107
      %1189 = vmatprep.subr.bf16.mxu0 0
      %1190 = vmatpush1.bf16.msra.mxu0 %v1108
      %1191 = vmatprep.subr.bf16.mxu0 0
      %1192 = vmatpush1.bf16.msra.mxu0 %v1109
      %1193 = vmatprep.subr.bf16.mxu0 0
      %1194 = vmatpush1.bf16.msra.mxu0 %v1110
      %1195 = vmatprep.subr.bf16.mxu0 0
      %1196 = vmatpush1.bf16.msra.mxu0 %v1111
      %1197 = vmatprep.subr.bf16.mxu0 0
      %1198 = vmatpush1.bf16.msra.mxu0 %v1112
      %1199 = vmatprep.subr.bf16.mxu0 0
      %1200 = vmatpush1.bf16.msra.mxu0 %v1113
      %1201 = vmatprep.subr.bf16.mxu0 0
      %1202 = vmatpush1.bf16.msra.mxu0 %v1114
      %1203 = vmatprep.subr.bf16.mxu0 0
      %1204 = vmatpush1.bf16.msra.mxu0 %v1115
      %1205 = vmatprep.subr.bf16.mxu0 0
      %1206 = vmatpush1.bf16.msra.mxu0 %v1116
      %1207 = vmatprep.subr.bf16.mxu0 0
      %1208 = vmatpush1.bf16.msra.mxu0 %v1117
      %1209 = vmatprep.subr.bf16.mxu0 0
      %1210 = vmatpush1.bf16.msra.mxu0 %v1118
      %1211 = vmatprep.subr.bf16.mxu0 0
      %1212 = vmatpush1.bf16.msra.mxu0 %v1119
      %1213 = vmatprep.subr.bf16.mxu0 0
      %1214 = vmatpush1.bf16.msra.mxu0 %v1120
      %1215 = vmatprep.subr.bf16.mxu0 0
      %1216 = vmatpush1.bf16.msra.mxu0 %v1121
      %1217 = vmatprep.subr.bf16.mxu0 0
      %1218 = vmatpush1.bf16.msra.mxu0 %v1122
      %1219 = vmatprep.mubr.bf16.mxu0 %v788
      %1220 = vmatmul.mubr.bf16.gmra.mrb[0].mxu0 %v787
      %v1221 = vpop.f32.mrb[0].mxu0
      %v1222 = vadd.f32 0.0, %v1221
      %v1223 = vpop.f32.mrb[0].mxu0
      %v1224 = vpop.f32.mrb[0].mxu0
      %v1225 = vadd.f32 0.0, %v1224
      %v1226 = vpop.f32.mrb[0].mxu0
      %1227 = vmatprep.mubr.bf16.mxu0 %v793
      %1228 = vmatmul.mubr.bf16.gmra.mrb[0].mxu0 %v792
      %v1229 = vpop.f32.mrb[0].mxu0
      %v1230 = vadd.f32 0.0, %v1229
      %v1231 = vpop.f32.mrb[0].mxu0
      %v1232 = vpop.f32.mrb[0].mxu0
      %v1233 = vadd.f32 0.0, %v1232
      %v1234 = vpop.f32.mrb[0].mxu0
      %1235 = vmatprep.mubr.bf16.mxu0 %v798
      %1236 = vmatmul.mubr.bf16.gmra.mrb[0].mxu0 %v797
      %v1237 = vpop.f32.mrb[0].mxu0
      %v1238 = vadd.f32 0.0, %v1237
      %v1239 = vpop.f32.mrb[0].mxu0
      %v1240 = vpop.f32.mrb[0].mxu0
      %v1241 = vadd.f32 0.0, %v1240
      %v1242 = vpop.f32.mrb[0].mxu0
      %1243 = vmatprep.mubr.bf16.mxu0 %v803
      %1244 = vmatmul.mubr.bf16.gmra.mrb[0].mxu0 %v802
      %v1245 = vpop.f32.mrb[0].mxu0
      %v1246 = vadd.f32 0.0, %v1245
      %v1247 = vpop.f32.mrb[0].mxu0
      %v1248 = vpop.f32.mrb[0].mxu0
      %v1249 = vadd.f32 0.0, %v1248
      %v1250 = vpop.f32.mrb[0].mxu0
      %1251 = vmatprep.mubr.bf16.mxu0 %v808
      %1252 = vmatmul.mubr.bf16.gmra.mrb[0].mxu0 %v807
      %v1253 = vpop.f32.mrb[0].mxu0
      %v1254 = vadd.f32 0.0, %v1253
      %v1255 = vpop.f32.mrb[0].mxu0
      %v1256 = vpop.f32.mrb[0].mxu0
      %v1257 = vadd.f32 0.0, %v1256
      %v1258 = vpop.f32.mrb[0].mxu0
      %1259 = vmatprep.mubr.bf16.mxu0 %v813
      %1260 = vmatmul.mubr.bf16.gmra.mrb[0].mxu0 %v812
      %v1261 = vpop.f32.mrb[0].mxu0
      %v1262 = vadd.f32 0.0, %v1261
      %v1263 = vpop.f32.mrb[0].mxu0
      %v1264 = vpop.f32.mrb[0].mxu0
      %v1265 = vadd.f32 0.0, %v1264
      %v1266 = vpop.f32.mrb[0].mxu0
      %1267 = vmatprep.mubr.bf16.mxu0 %v818
      %1268 = vmatmul.mubr.bf16.gmra.mrb[0].mxu0 %v817
      %v1269 = vpop.f32.mrb[0].mxu0
      %v1270 = vadd.f32 0.0, %v1269
      %v1271 = vpop.f32.mrb[0].mxu0
      %v1272 = vpop.f32.mrb[0].mxu0
      %v1273 = vadd.f32 0.0, %v1272
      %v1274 = vpop.f32.mrb[0].mxu0
      %1275 = vmatprep.mubr.bf16.mxu0 %v823
      %1276 = vmatmul.mubr.bf16.gmra.mrb[0].mxu0 %v822
      %v1277 = vpop.f32.mrb[0].mxu0
      %v1278 = vadd.f32 0.0, %v1277
      %v1279 = vpop.f32.mrb[0].mxu0
      %v1280 = vpop.f32.mrb[0].mxu0
      %v1281 = vadd.f32 0.0, %v1280
      %v1282 = vpop.f32.mrb[0].mxu0
      %1283 = vmatprep.mubr.bf16.mxu0 %v828
      %1284 = vmatmul.mubr.bf16.gmra.mrb[0].mxu0 %v827
      %v1285 = vpop.f32.mrb[0].mxu0
      %v1286 = vadd.f32 0.0, %v1285
      %v1287 = vpop.f32.mrb[0].mxu0
      %v1288 = vpop.f32.mrb[0].mxu0
      %v1289 = vadd.f32 0.0, %v1288
      %v1290 = vpop.f32.mrb[0].mxu0
      %1291 = vmatprep.mubr.bf16.mxu0 %v833
      %1292 = vmatmul.mubr.bf16.gmra.mrb[0].mxu0 %v832
      %v1293 = vpop.f32.mrb[0].mxu0
      %v1294 = vadd.f32 0.0, %v1293
      %v1295 = vpop.f32.mrb[0].mxu0
      %v1296 = vpop.f32.mrb[0].mxu0
      %v1297 = vadd.f32 0.0, %v1296
      %v1298 = vpop.f32.mrb[0].mxu0
      %1299 = vmatprep.mubr.bf16.mxu0 %v838
      %1300 = vmatmul.mubr.bf16.gmra.mrb[0].mxu0 %v837
      %v1301 = vpop.f32.mrb[0].mxu0
      %v1302 = vadd.f32 0.0, %v1301
      %v1303 = vpop.f32.mrb[0].mxu0
      %v1304 = vpop.f32.mrb[0].mxu0
      %v1305 = vadd.f32 0.0, %v1304
      %v1306 = vpop.f32.mrb[0].mxu0
      %1307 = vmatprep.mubr.bf16.mxu0 %v843
      %1308 = vmatmul.mubr.bf16.gmra.mrb[0].mxu0 %v842
      %v1309 = vpop.f32.mrb[0].mxu0
      %v1310 = vadd.f32 0.0, %v1309
      %v1311 = vpop.f32.mrb[0].mxu0
      %v1312 = vpop.f32.mrb[0].mxu0
      %v1313 = vadd.f32 0.0, %v1312
      %v1314 = vpop.f32.mrb[0].mxu0
      %1315 = vmatprep.mubr.bf16.mxu0 %v848
      %1316 = vmatmul.mubr.bf16.gmra.mrb[0].mxu0 %v847
      %v1317 = vpop.f32.mrb[0].mxu0
      %v1318 = vadd.f32 0.0, %v1317
      %v1319 = vpop.f32.mrb[0].mxu0
      %v1320 = vpop.f32.mrb[0].mxu0
      %v1321 = vadd.f32 0.0, %v1320
      %v1322 = vpop.f32.mrb[0].mxu0
      %1323 = vmatprep.mubr.bf16.mxu0 %v853
      %1324 = vmatmul.mubr.bf16.gmra.mrb[0].mxu0 %v852
      %v1325 = vpop.f32.mrb[0].mxu0
      %v1326 = vadd.f32 0.0, %v1325
      %v1327 = vpop.f32.mrb[0].mxu0
      %v1328 = vpop.f32.mrb[0].mxu0
      %v1329 = vadd.f32 0.0, %v1328
      %v1330 = vpop.f32.mrb[0].mxu0
      %1331 = vmatprep.mubr.bf16.mxu0 %v858
      %1332 = vmatmul.mubr.bf16.gmra.mrb[0].mxu0 %v857
      %v1333 = vpop.f32.mrb[0].mxu0
      %v1334 = vadd.f32 0.0, %v1333
      %v1335 = vpop.f32.mrb[0].mxu0
      %v1336 = vpop.f32.mrb[0].mxu0
      %v1337 = vadd.f32 0.0, %v1336
      %v1338 = vpop.f32.mrb[0].mxu0
      %1339 = vmatprep.mubr.bf16.mxu0 %v863
      %1340 = vmatmul.mubr.bf16.gmra.mrb[0].mxu0 %v862
      %v1341 = vpop.f32.mrb[0].mxu0
      %v1342 = vadd.f32 0.0, %v1341
      %v1343 = vpop.f32.mrb[0].mxu0
      %v1344 = vpop.f32.mrb[0].mxu0
      %v1345 = vadd.f32 0.0, %v1344
      %v1346 = vpop.f32.mrb[0].mxu0
      %1347 = vdwg.mxu0
      %1348 = vmatprep.subr.bf16.mxu0 0
      %1349 = vmatpush1.bf16.msra.mxu0 %v1123
      %1350 = vmatprep.subr.bf16.mxu0 0
      %1351 = vmatpush1.bf16.msra.mxu0 %v1124
      %1352 = vmatprep.subr.bf16.mxu0 0
      %1353 = vmatpush1.bf16.msra.mxu0 %v1125
      %1354 = vmatprep.subr.bf16.mxu0 0
      %1355 = vmatpush1.bf16.msra.mxu0 %v1126
      %1356 = vmatprep.subr.bf16.mxu0 0
      %1357 = vmatpush1.bf16.msra.mxu0 %v1127
      %1358 = vmatprep.subr.bf16.mxu0 0
      %1359 = vmatpush1.bf16.msra.mxu0 %v1128
      %1360 = vmatprep.subr.bf16.mxu0 0
      %1361 = vmatpush1.bf16.msra.mxu0 %v1129
      %1362 = vmatprep.subr.bf16.mxu0 0
      %1363 = vmatpush1.bf16.msra.mxu0 %v1130
      %1364 = vmatprep.subr.bf16.mxu0 0
      %1365 = vmatpush1.bf16.msra.mxu0 %v1131
      %1366 = vmatprep.subr.bf16.mxu0 0
      %1367 = vmatpush1.bf16.msra.mxu0 %v1132
      %1368 = vmatprep.subr.bf16.mxu0 0
      %1369 = vmatpush1.bf16.msra.mxu0 %v1133
      %1370 = vmatprep.subr.bf16.mxu0 0
      %1371 = vmatpush1.bf16.msra.mxu0 %v1134
      %1372 = vmatprep.subr.bf16.mxu0 0
      %1373 = vmatpush1.bf16.msra.mxu0 %v1135
      %1374 = vmatprep.subr.bf16.mxu0 0
      %1375 = vmatpush1.bf16.msra.mxu0 %v1136
      %1376 = vmatprep.subr.bf16.mxu0 0
      %1377 = vmatpush1.bf16.msra.mxu0 %v1137
      %1378 = vmatprep.subr.bf16.mxu0 0
      %1379 = vmatpush1.bf16.msra.mxu0 %v1138
      %1380 = vmatprep.mubr.bf16.mxu0 %v790
      %1381 = vmatmul.mubr.bf16.gmra.mrb[0].mxu0 %v789
      %v1382 = vpop.f32.mrb[0].mxu0
      %v1383 = vadd.f32 %v1222, %v1382
      %v1384 = vpop.f32.mrb[0].mxu0
      %v1385 = vpop.f32.mrb[0].mxu0
      %v1386 = vadd.f32 %v1225, %v1385
      %v1387 = vpop.f32.mrb[0].mxu0
      %1388 = vmatprep.mubr.bf16.mxu0 %v795
      %1389 = vmatmul.mubr.bf16.gmra.mrb[0].mxu0 %v794
      %v1390 = vpop.f32.mrb[0].mxu0
      %v1391 = vadd.f32 %v1230, %v1390
      %v1392 = vpop.f32.mrb[0].mxu0
      %v1393 = vpop.f32.mrb[0].mxu0
      %v1394 = vadd.f32 %v1233, %v1393
      %v1395 = vpop.f32.mrb[0].mxu0
      %1396 = vmatprep.mubr.bf16.mxu0 %v800
      %1397 = vmatmul.mubr.bf16.gmra.mrb[0].mxu0 %v799
      %v1398 = vpop.f32.mrb[0].mxu0
      %v1399 = vadd.f32 %v1238, %v1398
      %v1400 = vpop.f32.mrb[0].mxu0
      %v1401 = vpop.f32.mrb[0].mxu0
      %v1402 = vadd.f32 %v1241, %v1401
      %v1403 = vpop.f32.mrb[0].mxu0
      %1404 = vmatprep.mubr.bf16.mxu0 %v805
      %1405 = vmatmul.mubr.bf16.gmra.mrb[0].mxu0 %v804
      %v1406 = vpop.f32.mrb[0].mxu0
      %v1407 = vadd.f32 %v1246, %v1406
      %v1408 = vpop.f32.mrb[0].mxu0
      %v1409 = vpop.f32.mrb[0].mxu0
      %v1410 = vadd.f32 %v1249, %v1409
      %v1411 = vpop.f32.mrb[0].mxu0
      %1412 = vmatprep.mubr.bf16.mxu0 %v810
      %1413 = vmatmul.mubr.bf16.gmra.mrb[0].mxu0 %v809
      %v1414 = vpop.f32.mrb[0].mxu0
      %v1415 = vadd.f32 %v1254, %v1414
      %v1416 = vpop.f32.mrb[0].mxu0
      %v1417 = vpop.f32.mrb[0].mxu0
      %v1418 = vadd.f32 %v1257, %v1417
      %v1419 = vpop.f32.mrb[0].mxu0
      %1420 = vmatprep.mubr.bf16.mxu0 %v815
      %1421 = vmatmul.mubr.bf16.gmra.mrb[0].mxu0 %v814
      %v1422 = vpop.f32.mrb[0].mxu0
      %v1423 = vadd.f32 %v1262, %v1422
      %v1424 = vpop.f32.mrb[0].mxu0
      %v1425 = vpop.f32.mrb[0].mxu0
      %v1426 = vadd.f32 %v1265, %v1425
      %v1427 = vpop.f32.mrb[0].mxu0
      %1428 = vmatprep.mubr.bf16.mxu0 %v820
      %1429 = vmatmul.mubr.bf16.gmra.mrb[0].mxu0 %v819
      %v1430 = vpop.f32.mrb[0].mxu0
      %v1431 = vadd.f32 %v1270, %v1430
      %v1432 = vpop.f32.mrb[0].mxu0
      %v1433 = vpop.f32.mrb[0].mxu0
      %v1434 = vadd.f32 %v1273, %v1433
      %v1435 = vpop.f32.mrb[0].mxu0
      %1436 = vmatprep.mubr.bf16.mxu0 %v825
      %1437 = vmatmul.mubr.bf16.gmra.mrb[0].mxu0 %v824
      %v1438 = vpop.f32.mrb[0].mxu0
      %v1439 = vadd.f32 %v1278, %v1438
      %v1440 = vpop.f32.mrb[0].mxu0
      %v1441 = vpop.f32.mrb[0].mxu0
      %v1442 = vadd.f32 %v1281, %v1441
      %v1443 = vpop.f32.mrb[0].mxu0
      %1444 = vmatprep.mubr.bf16.mxu0 %v830
      %1445 = vmatmul.mubr.bf16.gmra.mrb[0].mxu0 %v829
      %v1446 = vpop.f32.mrb[0].mxu0
      %v1447 = vadd.f32 %v1286, %v1446
      %v1448 = vpop.f32.mrb[0].mxu0
      %v1449 = vpop.f32.mrb[0].mxu0
      %v1450 = vadd.f32 %v1289, %v1449
      %v1451 = vpop.f32.mrb[0].mxu0
      %1452 = vmatprep.mubr.bf16.mxu0 %v835
      %1453 = vmatmul.mubr.bf16.gmra.mrb[0].mxu0 %v834
      %v1454 = vpop.f32.mrb[0].mxu0
      %v1455 = vadd.f32 %v1294, %v1454
      %v1456 = vpop.f32.mrb[0].mxu0
      %v1457 = vpop.f32.mrb[0].mxu0
      %v1458 = vadd.f32 %v1297, %v1457
      %v1459 = vpop.f32.mrb[0].mxu0
      %1460 = vmatprep.mubr.bf16.mxu0 %v840
      %1461 = vmatmul.mubr.bf16.gmra.mrb[0].mxu0 %v839
      %v1462 = vpop.f32.mrb[0].mxu0
      %v1463 = vadd.f32 %v1302, %v1462
      %v1464 = vpop.f32.mrb[0].mxu0
      %v1465 = vpop.f32.mrb[0].mxu0
      %v1466 = vadd.f32 %v1305, %v1465
      %v1467 = vpop.f32.mrb[0].mxu0
      %1468 = vmatprep.mubr.bf16.mxu0 %v845
      %1469 = vmatmul.mubr.bf16.gmra.mrb[0].mxu0 %v844
      %v1470 = vpop.f32.mrb[0].mxu0
      %v1471 = vadd.f32 %v1310, %v1470
      %v1472 = vpop.f32.mrb[0].mxu0
      %v1473 = vpop.f32.mrb[0].mxu0
      %v1474 = vadd.f32 %v1313, %v1473
      %v1475 = vpop.f32.mrb[0].mxu0
      %1476 = vmatprep.mubr.bf16.mxu0 %v850
      %1477 = vmatmul.mubr.bf16.gmra.mrb[0].mxu0 %v849
      %v1478 = vpop.f32.mrb[0].mxu0
      %v1479 = vadd.f32 %v1318, %v1478
      %v1480 = vpop.f32.mrb[0].mxu0
      %v1481 = vpop.f32.mrb[0].mxu0
      %v1482 = vadd.f32 %v1321, %v1481
      %v1483 = vpop.f32.mrb[0].mxu0
      %1484 = vmatprep.mubr.bf16.mxu0 %v855
      %1485 = vmatmul.mubr.bf16.gmra.mrb[0].mxu0 %v854
      %v1486 = vpop.f32.mrb[0].mxu0
      %v1487 = vadd.f32 %v1326, %v1486
      %v1488 = vpop.f32.mrb[0].mxu0
      %v1489 = vpop.f32.mrb[0].mxu0
      %v1490 = vadd.f32 %v1329, %v1489
      %v1491 = vpop.f32.mrb[0].mxu0
      %1492 = vmatprep.mubr.bf16.mxu0 %v860
      %1493 = vmatmul.mubr.bf16.gmra.mrb[0].mxu0 %v859
      %v1494 = vpop.f32.mrb[0].mxu0
      %v1495 = vadd.f32 %v1334, %v1494
      %v1496 = vpop.f32.mrb[0].mxu0
      %v1497 = vpop.f32.mrb[0].mxu0
      %v1498 = vadd.f32 %v1337, %v1497
      %v1499 = vpop.f32.mrb[0].mxu0
      %1500 = vmatprep.mubr.bf16.mxu0 %v865
      %1501 = vmatmul.mubr.bf16.gmra.mrb[0].mxu0 %v864
      %v1502 = vpop.f32.mrb[0].mxu0
      %v1503 = vadd.f32 %v1342, %v1502
      %v1504 = vpop.f32.mrb[0].mxu0
      %v1505 = vpop.f32.mrb[0].mxu0
      %v1506 = vadd.f32 %v1345, %v1505
      %v1507 = vpop.f32.mrb[0].mxu0
      %1508 = vdwg.mxu0
      %1509 = vmatprep.subr.bf16.mxu0 0
      %1510 = vmatpush1.bf16.msra.mxu0 %v1139
      %1511 = vmatprep.subr.bf16.mxu0 0
      %1512 = vmatpush1.bf16.msra.mxu0 %v1140
      %1513 = vmatprep.subr.bf16.mxu0 0
      %1514 = vmatpush1.bf16.msra.mxu0 %v1141
      %1515 = vmatprep.subr.bf16.mxu0 0
      %1516 = vmatpush1.bf16.msra.mxu0 %v1142
      %1517 = vmatprep.subr.bf16.mxu0 0
      %1518 = vmatpush1.bf16.msra.mxu0 %v1143
      %1519 = vmatprep.subr.bf16.mxu0 0
      %1520 = vmatpush1.bf16.msra.mxu0 %v1144
      %1521 = vmatprep.subr.bf16.mxu0 0
      %1522 = vmatpush1.bf16.msra.mxu0 %v1145
      %1523 = vmatprep.subr.bf16.mxu0 0
      %1524 = vmatpush1.bf16.msra.mxu0 %v1146
      %1525 = vmatprep.subr.bf16.mxu0 0
      %1526 = vmatpush1.bf16.msra.mxu0 0
      %1527 = vmatprep.subr.bf16.mxu0 0
      %1528 = vmatpush1.bf16.msra.mxu0 0
      %1529 = vmatprep.subr.bf16.mxu0 0
      %1530 = vmatpush1.bf16.msra.mxu0 0
      %1531 = vmatprep.subr.bf16.mxu0 0
      %1532 = vmatpush1.bf16.msra.mxu0 0
      %1533 = vmatprep.subr.bf16.mxu0 0
      %1534 = vmatpush1.bf16.msra.mxu0 0
      %1535 = vmatprep.subr.bf16.mxu0 0
      %1536 = vmatpush1.bf16.msra.mxu0 0
      %1537 = vmatprep.subr.bf16.mxu0 0
      %1538 = vmatpush1.bf16.msra.mxu0 0
      %1539 = vmatprep.subr.bf16.mxu0 0
      %1540 = vmatpush1.bf16.msra.mxu0 0
      %1541 = vmatprep.mubr.bf16.mxu0 0
      %1542 = vmatmul.mubr.bf16.gmra.mrb[0].mxu0 %v791
      %v1543 = vpop.f32.mrb[0].mxu0
      %v1544 = vadd.f32 %v1383, %v1543
      %v1545 = vpop.f32.mrb[0].mxu0
      %v1546 = vpop.f32.mrb[0].mxu0
      %v1547 = vadd.f32 %v1386, %v1546
      %v1548 = vpop.f32.mrb[0].mxu0
      %1549 = vmatprep.mubr.bf16.mxu0 0
      %1550 = vmatmul.mubr.bf16.gmra.mrb[0].mxu0 %v796
      %v1551 = vpop.f32.mrb[0].mxu0
      %v1552 = vadd.f32 %v1391, %v1551
      %v1553 = vpop.f32.mrb[0].mxu0
      %v1554 = vpop.f32.mrb[0].mxu0
      %v1555 = vadd.f32 %v1394, %v1554
      %v1556 = vpop.f32.mrb[0].mxu0
      %1557 = vmatprep.mubr.bf16.mxu0 0
      %1558 = vmatmul.mubr.bf16.gmra.mrb[0].mxu0 %v801
      %v1559 = vpop.f32.mrb[0].mxu0
      %v1560 = vadd.f32 %v1399, %v1559
      %v1561 = vpop.f32.mrb[0].mxu0
      %v1562 = vpop.f32.mrb[0].mxu0
      %v1563 = vadd.f32 %v1402, %v1562
      %v1564 = vpop.f32.mrb[0].mxu0
      %1565 = vmatprep.mubr.bf16.mxu0 0
      %1566 = vmatmul.mubr.bf16.gmra.mrb[0].mxu0 %v806
      %v1567 = vpop.f32.mrb[0].mxu0
      %v1568 = vadd.f32 %v1407, %v1567
      %v1569 = vpop.f32.mrb[0].mxu0
      %v1570 = vpop.f32.mrb[0].mxu0
      %v1571 = vadd.f32 %v1410, %v1570
      %v1572 = vpop.f32.mrb[0].mxu0
      %1573 = vmatprep.mubr.bf16.mxu0 0
      %1574 = vmatmul.mubr.bf16.gmra.mrb[0].mxu0 %v811
      %v1575 = vpop.f32.mrb[0].mxu0
      %v1576 = vadd.f32 %v1415, %v1575
      %v1577 = vpop.f32.mrb[0].mxu0
      %v1578 = vpop.f32.mrb[0].mxu0
      %v1579 = vadd.f32 %v1418, %v1578
      %v1580 = vpop.f32.mrb[0].mxu0
      %1581 = vmatprep.mubr.bf16.mxu0 0
      %1582 = vmatmul.mubr.bf16.gmra.mrb[0].mxu0 %v816
      %v1583 = vpop.f32.mrb[0].mxu0
      %v1584 = vadd.f32 %v1423, %v1583
      %v1585 = vpop.f32.mrb[0].mxu0
      %v1586 = vpop.f32.mrb[0].mxu0
      %v1587 = vadd.f32 %v1426, %v1586
      %v1588 = vpop.f32.mrb[0].mxu0
      %1589 = vmatprep.mubr.bf16.mxu0 0
      %1590 = vmatmul.mubr.bf16.gmra.mrb[0].mxu0 %v821
      %v1591 = vpop.f32.mrb[0].mxu0
      %v1592 = vadd.f32 %v1431, %v1591
      %v1593 = vpop.f32.mrb[0].mxu0
      %v1594 = vpop.f32.mrb[0].mxu0
      %v1595 = vadd.f32 %v1434, %v1594
      %v1596 = vpop.f32.mrb[0].mxu0
      %1597 = vmatprep.mubr.bf16.mxu0 0
      %1598 = vmatmul.mubr.bf16.gmra.mrb[0].mxu0 %v826
      %v1599 = vpop.f32.mrb[0].mxu0
      %v1600 = vadd.f32 %v1439, %v1599
      %v1601 = vpop.f32.mrb[0].mxu0
      %v1602 = vpop.f32.mrb[0].mxu0
      %v1603 = vadd.f32 %v1442, %v1602
      %v1604 = vpop.f32.mrb[0].mxu0
      %1605 = vmatprep.mubr.bf16.mxu0 0
      %1606 = vmatmul.mubr.bf16.gmra.mrb[0].mxu0 %v831
      %v1607 = vpop.f32.mrb[0].mxu0
      %v1608 = vadd.f32 %v1447, %v1607
      %v1609 = vpop.f32.mrb[0].mxu0
      %v1610 = vpop.f32.mrb[0].mxu0
      %v1611 = vadd.f32 %v1450, %v1610
      %v1612 = vpop.f32.mrb[0].mxu0
      %1613 = vmatprep.mubr.bf16.mxu0 0
      %1614 = vmatmul.mubr.bf16.gmra.mrb[0].mxu0 %v836
      %v1615 = vpop.f32.mrb[0].mxu0
      %v1616 = vadd.f32 %v1455, %v1615
      %v1617 = vpop.f32.mrb[0].mxu0
      %v1618 = vpop.f32.mrb[0].mxu0
      %v1619 = vadd.f32 %v1458, %v1618
      %v1620 = vpop.f32.mrb[0].mxu0
      %1621 = vmatprep.mubr.bf16.mxu0 0
      %1622 = vmatmul.mubr.bf16.gmra.mrb[0].mxu0 %v841
      %v1623 = vpop.f32.mrb[0].mxu0
      %v1624 = vadd.f32 %v1463, %v1623
      %v1625 = vpop.f32.mrb[0].mxu0
      %v1626 = vpop.f32.mrb[0].mxu0
      %v1627 = vadd.f32 %v1466, %v1626
      %v1628 = vpop.f32.mrb[0].mxu0
      %1629 = vmatprep.mubr.bf16.mxu0 0
      %1630 = vmatmul.mubr.bf16.gmra.mrb[0].mxu0 %v846
      %v1631 = vpop.f32.mrb[0].mxu0
      %v1632 = vadd.f32 %v1471, %v1631
      %v1633 = vpop.f32.mrb[0].mxu0
      %v1634 = vpop.f32.mrb[0].mxu0
      %v1635 = vadd.f32 %v1474, %v1634
      %v1636 = vpop.f32.mrb[0].mxu0
      %1637 = vmatprep.mubr.bf16.mxu0 0
      %1638 = vmatmul.mubr.bf16.gmra.mrb[0].mxu0 %v851
      %v1639 = vpop.f32.mrb[0].mxu0
      %v1640 = vadd.f32 %v1479, %v1639
      %v1641 = vpop.f32.mrb[0].mxu0
      %v1642 = vpop.f32.mrb[0].mxu0
      %v1643 = vadd.f32 %v1482, %v1642
      %v1644 = vpop.f32.mrb[0].mxu0
      %1645 = vmatprep.mubr.bf16.mxu0 0
      %1646 = vmatmul.mubr.bf16.gmra.mrb[0].mxu0 %v856
      %v1647 = vpop.f32.mrb[0].mxu0
      %v1648 = vadd.f32 %v1487, %v1647
      %v1649 = vpop.f32.mrb[0].mxu0
      %v1650 = vpop.f32.mrb[0].mxu0
      %v1651 = vadd.f32 %v1490, %v1650
      %v1652 = vpop.f32.mrb[0].mxu0
      %1653 = vmatprep.mubr.bf16.mxu0 0
      %1654 = vmatmul.mubr.bf16.gmra.mrb[0].mxu0 %v861
      %v1655 = vpop.f32.mrb[0].mxu0
      %v1656 = vadd.f32 %v1495, %v1655
      %v1657 = vpop.f32.mrb[0].mxu0
      %v1658 = vpop.f32.mrb[0].mxu0
      %v1659 = vadd.f32 %v1498, %v1658
      %v1660 = vpop.f32.mrb[0].mxu0
      %1661 = vmatprep.mubr.bf16.mxu0 0
      %1662 = vmatmul.mubr.bf16.gmra.mrb[0].mxu0 %v866
      %v1663 = vpop.f32.mrb[0].mxu0
      %v1664 = vadd.f32 %v1503, %v1663
      %v1665 = vpop.f32.mrb[0].mxu0
      %v1666 = vpop.f32.mrb[0].mxu0
      %v1667 = vadd.f32 %v1506, %v1666
      %v1668 = vpop.f32.mrb[0].mxu0
      %1669 = vdwg.mxu0
      %v1670 = vadd.f32 %v323, %v1544
      %v1671 = vadd.f32 %v324, %v1547
      %v1672 = vadd.f32 %v325, %v1552
      %v1673 = vadd.f32 %v326, %v1555
      %v1674 = vadd.f32 %v327, %v1560
      %v1675 = vadd.f32 %v328, %v1563
      %v1676 = vadd.f32 %v329, %v1568
      %v1677 = vadd.f32 %v330, %v1571
      %v1678 = vadd.f32 %v331, %v1576
      %v1679 = vadd.f32 %v332, %v1579
      %v1680 = vadd.f32 %v333, %v1584
      %v1681 = vadd.f32 %v334, %v1587
      %v1682 = vadd.f32 %v335, %v1592
      %v1683 = vadd.f32 %v336, %v1595
      %v1684 = vadd.f32 %v337, %v1600
      %v1685 = vadd.f32 %v338, %v1603
      %v1686 = vadd.f32 %v339, %v1608
      %v1687 = vadd.f32 %v340, %v1611
      %v1688 = vadd.f32 %v341, %v1616
      %v1689 = vadd.f32 %v342, %v1619
      %v1690 = vadd.f32 %v343, %v1624
      %v1691 = vadd.f32 %v344, %v1627
      %v1692 = vadd.f32 %v345, %v1632
      %v1693 = vadd.f32 %v346, %v1635
      %v1694 = vadd.f32 %v347, %v1640
      %v1695 = vadd.f32 %v348, %v1643
      %v1696 = vadd.f32 %v349, %v1648
      %v1697 = vadd.f32 %v350, %v1651
      %v1698 = vadd.f32 %v351, %v1656
      %v1699 = vadd.f32 %v352, %v1659
      %v1700 = vadd.f32 %v353, %v1664
      %v1701 = vadd.f32 %v354, %v1667
      %1702 = vst [vmem:[#allocation2] sm:$0xff] %v1670
      %1703 = vst [vmem:[#allocation2 + $0x8] sm:$0xff] %v1671
      %1704 = vst [vmem:[#allocation2 + $0x10] sm:$0xff] %v1672
      %1705 = vst [vmem:[#allocation2 + $0x18] sm:$0xff] %v1673
      %1706 = vst [vmem:[#allocation2 + $0x20] sm:$0xff] %v1674
      %1707 = vst [vmem:[#allocation2 + $0x28] sm:$0xff] %v1675
      %1708 = vst [vmem:[#allocation2 + $0x30] sm:$0xff] %v1676
      %1709 = vst [vmem:[#allocation2 + $0x38] sm:$0xff] %v1677
      %1710 = vst [vmem:[#allocation2 + $0x40] sm:$0xff] %v1678
      %1711 = vst [vmem:[#allocation2 + $0x48] sm:$0xff] %v1679
      %1712 = vst [vmem:[#allocation2 + $0x50] sm:$0xff] %v1680
      %1713 = vst [vmem:[#allocation2 + $0x58] sm:$0xff] %v1681
      %1714 = vst [vmem:[#allocation2 + $0x60] sm:$0xff] %v1682
      %1715 = vst [vmem:[#allocation2 + $0x68] sm:$0xff] %v1683
      %1716 = vst [vmem:[#allocation2 + $0x70] sm:$0xff] %v1684
      %1717 = vst [vmem:[#allocation2 + $0x78] sm:$0xff] %v1685
      %1718 = vst [vmem:[#allocation2 + $0x80] sm:$0xff] %v1686
      %1719 = vst [vmem:[#allocation2 + $0x88] sm:$0xff] %v1687
      %1720 = vst [vmem:[#allocation2 + $0x90] sm:$0xff] %v1688
      %1721 = vst [vmem:[#allocation2 + $0x98] sm:$0xff] %v1689
      %1722 = vst [vmem:[#allocation2 + $0xa0] sm:$0xff] %v1690
      %1723 = vst [vmem:[#allocation2 + $0xa8] sm:$0xff] %v1691
      %1724 = vst [vmem:[#allocation2 + $0xb0] sm:$0xff] %v1692
      %1725 = vst [vmem:[#allocation2 + $0xb8] sm:$0xff] %v1693
      %1726 = vst [vmem:[#allocation2 + $0xc0] sm:$0xff] %v1694
      %1727 = vst [vmem:[#allocation2 + $0xc8] sm:$0xff] %v1695
      %1728 = vst [vmem:[#allocation2 + $0xd0] sm:$0xff] %v1696
      %1729 = vst [vmem:[#allocation2 + $0xd8] sm:$0xff] %v1697
      %1730 = vst [vmem:[#allocation2 + $0xe0] sm:$0xff] %v1698
      %1731 = vst [vmem:[#allocation2 + $0xe8] sm:$0xff] %v1699
      %1732 = vst [vmem:[#allocation2 + $0xf0] sm:$0xff] %v1700
      %1733 = vst [vmem:[#allocation2 + $0xf8] sm:$0xff] %v1701
      // Predicated region
      $region37: #{_lambda_.2} parent=31 // pred_check
        %p1734 = pneg %p287
      $region38: #{_lambda_.2} parent=31 // pred_check_branch
        %1736 = sbr.rel (%p1734) target = $region40
      $region39: #{_lambda_.2} parent=31 // pred_region
        %v1737 = vld [vmem:[#allocation2] sm:$0xff]
        %v1738 = vld [vmem:[#allocation2 + $0x8] sm:$0xff]
        %v1739 = vld [vmem:[#allocation2 + $0x10] sm:$0xff]
        %v1740 = vld [vmem:[#allocation2 + $0x18] sm:$0xff]
        %v1741 = vld [vmem:[#allocation2 + $0x20] sm:$0xff]
        %v1742 = vld [vmem:[#allocation2 + $0x28] sm:$0xff]
        %v1743 = vld [vmem:[#allocation2 + $0x30] sm:$0xff]
        %v1744 = vld [vmem:[#allocation2 + $0x38] sm:$0xff]
        %v1745 = vld [vmem:[#allocation2 + $0x40] sm:$0xff]
        %v1746 = vld [vmem:[#allocation2 + $0x48] sm:$0xff]
        %v1747 = vld [vmem:[#allocation2 + $0x50] sm:$0xff]
        %v1748 = vld [vmem:[#allocation2 + $0x58] sm:$0xff]
        %v1749 = vld [vmem:[#allocation2 + $0x60] sm:$0xff]
        %v1750 = vld [vmem:[#allocation2 + $0x68] sm:$0xff]
        %v1751 = vld [vmem:[#allocation2 + $0x70] sm:$0xff]
        %v1752 = vld [vmem:[#allocation2 + $0x78] sm:$0xff]
        %v1753 = vld [vmem:[#allocation2 + $0x80] sm:$0xff]
        %v1754 = vld [vmem:[#allocation2 + $0x88] sm:$0xff]
        %v1755 = vld [vmem:[#allocation2 + $0x90] sm:$0xff]
        %v1756 = vld [vmem:[#allocation2 + $0x98] sm:$0xff]
        %v1757 = vld [vmem:[#allocation2 + $0xa0] sm:$0xff]
        %v1758 = vld [vmem:[#allocation2 + $0xa8] sm:$0xff]
        %v1759 = vld [vmem:[#allocation2 + $0xb0] sm:$0xff]
        %v1760 = vld [vmem:[#allocation2 + $0xb8] sm:$0xff]
        %v1761 = vld [vmem:[#allocation2 + $0xc0] sm:$0xff]
        %v1762 = vld [vmem:[#allocation2 + $0xc8] sm:$0xff]
        %v1763 = vld [vmem:[#allocation2 + $0xd0] sm:$0xff]
        %v1764 = vld [vmem:[#allocation2 + $0xd8] sm:$0xff]
        %v1765 = vld [vmem:[#allocation2 + $0xe0] sm:$0xff]
        %v1766 = vld [vmem:[#allocation2 + $0xe8] sm:$0xff]
        %v1767 = vld [vmem:[#allocation2 + $0xf0] sm:$0xff]
        %v1768 = vld [vmem:[#allocation2 + $0xf8] sm:$0xff]
        %v1769 = vld [vmem:[%s275] sm:$0x1]
        %v1771 = vlaneseq
        %v1772 = vshrl.u32 %v1771, 7
        %v1773 = vsub.s32 0, %v1772
        %v1774 = vrot.slane %v1769, %v1773
        %v1776 = vadd.f32 %v1737, %v1774
        %v1777 = vadd.f32 %v1738, %v1774
        %v1778 = vadd.f32 %v1739, %v1774
        %v1779 = vadd.f32 %v1740, %v1774
        %v1780 = vadd.f32 %v1741, %v1774
        %v1781 = vadd.f32 %v1742, %v1774
        %v1782 = vadd.f32 %v1743, %v1774
        %v1783 = vadd.f32 %v1744, %v1774
        %v1784 = vadd.f32 %v1745, %v1774
        %v1785 = vadd.f32 %v1746, %v1774
        %v1786 = vadd.f32 %v1747, %v1774
        %v1787 = vadd.f32 %v1748, %v1774
        %v1788 = vadd.f32 %v1749, %v1774
        %v1789 = vadd.f32 %v1750, %v1774
        %v1790 = vadd.f32 %v1751, %v1774
        %v1791 = vadd.f32 %v1752, %v1774
        %v1792 = vadd.f32 %v1753, %v1774
        %v1793 = vadd.f32 %v1754, %v1774
        %v1794 = vadd.f32 %v1755, %v1774
        %v1795 = vadd.f32 %v1756, %v1774
        %v1796 = vadd.f32 %v1757, %v1774
        %v1797 = vadd.f32 %v1758, %v1774
        %v1798 = vadd.f32 %v1759, %v1774
        %v1799 = vadd.f32 %v1760, %v1774
        %v1800 = vadd.f32 %v1761, %v1774
        %v1801 = vadd.f32 %v1762, %v1774
        %v1802 = vadd.f32 %v1763, %v1774
        %v1803 = vadd.f32 %v1764, %v1774
        %v1804 = vadd.f32 %v1765, %v1774
        %v1805 = vadd.f32 %v1766, %v1774
        %v1806 = vadd.f32 %v1767, %v1774
        %v1807 = vadd.f32 %v1768, %v1774
        %1808 = vst [vmem:[%s284] sm:$0xff] %v1776
        %1809 = vst [vmem:[%s284 + $0x8] sm:$0xff] %v1777
        %1810 = vst [vmem:[%s284 + $0x10] sm:$0xff] %v1778
        %1811 = vst [vmem:[%s284 + $0x18] sm:$0xff] %v1779
        %1812 = vst [vmem:[%s284 + $0x20] sm:$0xff] %v1780
        %1813 = vst [vmem:[%s284 + $0x28] sm:$0xff] %v1781
        %1814 = vst [vmem:[%s284 + $0x30] sm:$0xff] %v1782
        %1815 = vst [vmem:[%s284 + $0x38] sm:$0xff] %v1783
        %1816 = vst [vmem:[%s284 + $0x40] sm:$0xff] %v1784
        %1817 = vst [vmem:[%s284 + $0x48] sm:$0xff] %v1785
        %1818 = vst [vmem:[%s284 + $0x50] sm:$0xff] %v1786
        %1819 = vst [vmem:[%s284 + $0x58] sm:$0xff] %v1787
        %1820 = vst [vmem:[%s284 + $0x60] sm:$0xff] %v1788
        %1821 = vst [vmem:[%s284 + $0x68] sm:$0xff] %v1789
        %1822 = vst [vmem:[%s284 + $0x70] sm:$0xff] %v1790
        %1823 = vst [vmem:[%s284 + $0x78] sm:$0xff] %v1791
        %1824 = vst [vmem:[%s284 + $0x80] sm:$0xff] %v1792
        %1825 = vst [vmem:[%s284 + $0x88] sm:$0xff] %v1793
        %1826 = vst [vmem:[%s284 + $0x90] sm:$0xff] %v1794
        %1827 = vst [vmem:[%s284 + $0x98] sm:$0xff] %v1795
        %1828 = vst [vmem:[%s284 + $0xa0] sm:$0xff] %v1796
        %1829 = vst [vmem:[%s284 + $0xa8] sm:$0xff] %v1797
        %1830 = vst [vmem:[%s284 + $0xb0] sm:$0xff] %v1798
        %1831 = vst [vmem:[%s284 + $0xb8] sm:$0xff] %v1799
        %1832 = vst [vmem:[%s284 + $0xc0] sm:$0xff] %v1800
        %1833 = vst [vmem:[%s284 + $0xc8] sm:$0xff] %v1801
        %1834 = vst [vmem:[%s284 + $0xd0] sm:$0xff] %v1802
        %1835 = vst [vmem:[%s284 + $0xd8] sm:$0xff] %v1803
        %1836 = vst [vmem:[%s284 + $0xe0] sm:$0xff] %v1804
        %1837 = vst [vmem:[%s284 + $0xe8] sm:$0xff] %v1805
        %1838 = vst [vmem:[%s284 + $0xf0] sm:$0xff] %v1806
        %1839 = vst [vmem:[%s284 + $0xf8] sm:$0xff] %v1807
      $region40: #{_lambda_.2} parent=31 // pred_fallthru
        _
      %s1840 = smul.u32 32, %s20
      %p1841 = scmp.lt.s32.totalorder %s19, 0
      %s1842 = scalar_select %p1841, %s19, 0
      %p1843 = scmp.lt.s32.totalorder %s1840, 63
      %s1844 = scalar_select %p1843, %s1840, 63
      %s1845 = smul.addr %s1842, 64
      %s1846 = sadd.s32 %s1844, %s1845
      %s1847 = smul.addr %s1846, 8
      %s1848 = scalar_lea.vmem %s3, %s1847
      // Predicated region
      $region41: #{_lambda_.2} parent=31 // pred_check
        %p1849 = pneg %p137
      $region42: #{_lambda_.2} parent=31 // pred_check_branch
        %1851 = sbr.rel (%p1849) target = $region44
      $region43: #{_lambda_.2} parent=31 // pred_region
        %s1852 = smul.u32 32, %s20
      $region44: #{_lambda_.2} parent=31 // pred_fallthru
        _
    $region32: #{_lambda_.2} parent=5 // pred_fallthru
      _
    %p1853 = scmp.le.s32.totalorder 2, %s9
    // Predicated region
    $region45: #{_lambda_.2} parent=5 // pred_check
      %p1854 = pneg %p1853
    $region46: #{_lambda_.2} parent=5 // pred_check_branch
      %1856 = sbr.rel (%p1854) target = $region48
    $region47: #{_lambda_.2} parent=5 // pred_region
      %s1857 = ssub.s32 %s9, 2
      // Predicated region
      $region49: #{_lambda_.2} parent=47 // pred_check
        %p1858 = pneg %p143
      $region50: #{_lambda_.2} parent=47 // pred_check_branch
        %1860 = sbr.rel (%p1858) target = $region52
      $region51: #{_lambda_.2} parent=47 // pred_region
        %s1861 = smul.u32 32, %s23
        %p1862 = scmp.lt.s32.totalorder %s22, 0
        %s1863 = scalar_select %p1862, %s22, 0
        %p1864 = scmp.lt.s32.totalorder %s1861, 63
        %s1865 = scalar_select %p1864, %s1861, 63
        %s1866 = smul.addr %s1863, 64
        %s1867 = sadd.s32 %s1865, %s1866
        %s1868 = smul.addr %s1867, 8
        %s1869 = scalar_lea.vmem %s3, %s1868
      $region52: #{_lambda_.2} parent=47 // pred_fallthru
        _
    $region48: #{_lambda_.2} parent=5 // pred_fallthru
      _
  $region6: #{_lambda_.2} parent=0 // loop_footer
    %s13 = sadd.s32 1, %s9
  $region7: #{_lambda_.2} parent=0 // loop_footer_branch
    %8 = sbr.rel target = $region3
  $region8: #{_lambda_.2} parent=0 // loop_exit
    _

// kernel: _lambda_.3
$region0: #{_lambda_.3}
  #allocation0 [shape = 'u32[]', space=smem, size = 0x4, offset = 0x4, fixed_abs, tag = 'smem constant byte address 0x4 - core index']
  #allocation1 [shape = 'u32[144,128]{1,0:T(1,128)}', space=vmem, size = 0x12000, scoped, tag = 'internal scratch']
  #allocation2 [shape = 'f32[256,128]{1,0:T(8,128)}', space=vmem, size = 0x20000, scoped, tag = 'scratch operand']
  %s0 = inlined_call_operand.vmem [shape: bf16[2,512,384], index: 0, kind: input, shape index: {}]
  %s1 = inlined_call_operand.vmem [shape: bf16[2,384,128], index: 1, kind: input, shape index: {}]
  %s2 = inlined_call_operand.vmem [shape: f32[2,1,128], index: 2, kind: input, shape index: {}]
  %s3 = inlined_call_operand.vmem [shape: f32[2,512,128], index: 3, kind: output, shape index: {}]
  %s4 = sld [smem:[#allocation0]]
  $region53: #{_lambda_.3} parent=0
    _
  %s6 = ssub.s32 1, %s4
  %s7 = scalar_select 0, %s6, %s4
  loop: start=0, step=1, limit=6
  $region2: #{_lambda_.3} parent=0 // loop_pre_header
    _
  $region3: #{_lambda_.3} parent=0 // loop_header
    %s9 = sphi 0, %s13
    %p10 = scmp.ge.s32.totalorder %s9, 6
    %s16 = sphi 0, %s35
    %s17 = sphi 0, %s31
    %s18 = sphi 0, %s27
    %s19 = sphi 0, %s16
    %s20 = sphi 0, %s17
    %s21 = sphi 0, %s18
    %s22 = sphi 0, %s19
    %s23 = sphi 0, %s20
    %s24 = sphi 0, %s21
    %s42 = sphi 0, %s44
    %s45 = sphi 0, %s42
    %s46 = sphi 0, %s45
    %s62 = sphi 0, %s46
    %s70 = sphi 0, %s72
    %s73 = sphi 0, %s70
    %s74 = sphi 0, %s73
    %s90 = sphi 0, %s74
    %s96 = sphi 0, %s98
    %s99 = sphi 0, %s96
    %s100 = sphi 0, %s99
    %s116 = sphi 0, %s100
    %s124 = sphi 0, %s126
    %s127 = sphi 0, %s124
    %s128 = sphi 0, %s127
    %s144 = sphi 0, %s128
  $region4: #{_lambda_.3} parent=0 // loop_header_branch
    %12 = sbr.rel (%p10) target = $region8
  $region5: #{_lambda_.3} parent=0 // loop_body
    %s14 = ssub.s32 %s9, 1
    %s15 = ssub.s32 %s9, 2
    %s25 = sadd.s32 1, %s18
    %p26 = scmp.ge.s32.totalorder %s25, 1
    %s27 = scalar_select %p26, 0, %s25
    %s28 = sadd.s32 1, %s17
    %s29 = scalar_select %p26, %s28, %s17
    %p30 = scmp.ge.s32.totalorder %s29, 2
    %s31 = scalar_select %p30, 0, %s29
    %s32 = sadd.s32 1, %s16
    %s33 = scalar_select %p30, %s32, %s16
    %p34 = scmp.ge.s32.totalorder %s33, 2
    %s35 = scalar_select %p34, 0, %s33
    %s36 = ssub.s32 %s16, %s35
    %s37 = ssub.s32 %s17, %s31
    %s38 = sor.u32 %s36, %s37
    %s39 = ssub.s32 %s18, %s27
    %s40 = sor.u32 %s38, %s39
    %p41 = scmp.eq.s32.totalorder %s40, 0
    %s43 = sadd.s32 %s42, 1
    %s44 = scalar_select %p41, %s42, %s43
    %p47 = pneg %p41
    %p48 = scmp.eq.s32.totalorder %s9, 3
    %p49 = por %p47, %p48
    %p50 = scmp.ne.s32.totalorder %s42, %s45
    %p51 = scmp.eq.s32.totalorder %s9, 0
    %p52 = por %p50, %p51
    %p53 = scmp.ne.s32.totalorder %s42, %s45
    %p54 = scmp.eq.s32.totalorder %s14, 3
    %p55 = por %p53, %p54
    %p56 = scmp.ne.s32.totalorder %s45, %s46
    %p57 = scmp.eq.s32.totalorder %s14, 0
    %p58 = por %p56, %p57
    %p59 = scmp.ne.s32.totalorder %s45, %s46
    %p60 = scmp.eq.s32.totalorder %s15, 3
    %p61 = por %p59, %p60
    %p63 = scmp.ne.s32.totalorder %s46, %s62
    %p64 = scmp.eq.s32.totalorder %s15, 0
    %p65 = por %p63, %p64
    %s66 = ssub.s32 %s16, %s35
    %s67 = ssub.s32 %s18, %s27
    %s68 = sor.u32 %s66, %s67
    %p69 = scmp.eq.s32.totalorder %s68, 0
    %s71 = sadd.s32 %s70, 1
    %s72 = scalar_select %p69, %s70, %s71
    %p75 = pneg %p69
    %p76 = scmp.eq.s32.totalorder %s9, 3
    %p77 = por %p75, %p76
    %p78 = scmp.ne.s32.totalorder %s70, %s73
    %p79 = scmp.eq.s32.totalorder %s9, 0
    %p80 = por %p78, %p79
    %p81 = scmp.ne.s32.totalorder %s70, %s73
    %p82 = scmp.eq.s32.totalorder %s14, 3
    %p83 = por %p81, %p82
    %p84 = scmp.ne.s32.totalorder %s73, %s74
    %p85 = scmp.eq.s32.totalorder %s14, 0
    %p86 = por %p84, %p85
    %p87 = scmp.ne.s32.totalorder %s73, %s74
    %p88 = scmp.eq.s32.totalorder %s15, 3
    %p89 = por %p87, %p88
    %p91 = scmp.ne.s32.totalorder %s74, %s90
    %p92 = scmp.eq.s32.totalorder %s15, 0
    %p93 = por %p91, %p92
    %s94 = ssub.s32 %s16, %s35
    %p95 = scmp.eq.s32.totalorder %s94, 0
    %s97 = sadd.s32 %s96, 1
    %s98 = scalar_select %p95, %s96, %s97
    %p101 = pneg %p95
    %p102 = scmp.eq.s32.totalorder %s9, 3
    %p103 = por %p101, %p102
    %p104 = scmp.ne.s32.totalorder %s96, %s99
    %p105 = scmp.eq.s32.totalorder %s9, 0
    %p106 = por %p104, %p105
    %p107 = scmp.ne.s32.totalorder %s96, %s99
    %p108 = scmp.eq.s32.totalorder %s14, 3
    %p109 = por %p107, %p108
    %p110 = scmp.ne.s32.totalorder %s99, %s100
    %p111 = scmp.eq.s32.totalorder %s14, 0
    %p112 = por %p110, %p111
    %p113 = scmp.ne.s32.totalorder %s99, %s100
    %p114 = scmp.eq.s32.totalorder %s15, 3
    %p115 = por %p113, %p114
    %p117 = scmp.ne.s32.totalorder %s100, %s116
    %p118 = scmp.eq.s32.totalorder %s15, 0
    %p119 = por %p117, %p118
    %s120 = ssub.s32 %s16, %s35
    %s121 = ssub.s32 %s17, %s31
    %s122 = sor.u32 %s120, %s121
    %p123 = scmp.eq.s32.totalorder %s122, 0
    %s125 = sadd.s32 %s124, 1
    %s126 = scalar_select %p123, %s124, %s125
    %p129 = pneg %p123
    %p130 = scmp.eq.s32.totalorder %s9, 3
    %p131 = por %p129, %p130
    %p132 = scmp.ne.s32.totalorder %s124, %s127
    %p133 = scmp.eq.s32.totalorder %s9, 0
    %p134 = por %p132, %p133
    %p135 = scmp.ne.s32.totalorder %s124, %s127
    %p136 = scmp.eq.s32.totalorder %s14, 3
    %p137 = por %p135, %p136
    %p138 = scmp.ne.s32.totalorder %s127, %s128
    %p139 = scmp.eq.s32.totalorder %s14, 0
    %p140 = por %p138, %p139
    %p141 = scmp.ne.s32.totalorder %s127, %s128
    %p142 = scmp.eq.s32.totalorder %s15, 3
    %p143 = por %p141, %p142
    %p145 = scmp.ne.s32.totalorder %s128, %s144
    %p146 = scmp.eq.s32.totalorder %s15, 0
    %p147 = por %p145, %p146
    %p148 = scmp.le.s32.totalorder 1, %s9
    %p149 = scmp.lt.s32.totalorder %s9, 5
    %p150 = pnand %p148, %p149
    %p151 = pneg %p150
    // Predicated region
    $region9: #{_lambda_.3} parent=5 // pred_check
      _
    $region10: #{_lambda_.3} parent=5 // pred_check_branch
      %153 = sbr.rel (%p150) target = $region12
    $region11: #{_lambda_.3} parent=5 // pred_region
      %s154 = ssub.s32 %s9, 1
    $region12: #{_lambda_.3} parent=5 // pred_fallthru
      _
    %p155 = scmp.lt.s32.totalorder %s9, 4
    // Predicated region
    $region13: #{_lambda_.3} parent=5 // pred_check
      %p156 = pneg %p155
    $region14: #{_lambda_.3} parent=5 // pred_check_branch
      %158 = sbr.rel (%p156) target = $region16
    $region15: #{_lambda_.3} parent=5 // pred_region
      // Predicated region
      $region17: #{_lambda_.3} parent=15 // pred_check
        %p159 = pneg %p52
      $region18: #{_lambda_.3} parent=15 // pred_check_branch
        %161 = sbr.rel (%p159) target = $region20
      $region19: #{_lambda_.3} parent=15 // pred_region
        %s162 = smul.u32 32, %s17
        %s163 = smul.u32 3, %s18
        %p164 = scmp.lt.s32.totalorder %s16, 1
        %s165 = scalar_select %p164, %s16, 1
        %p166 = scmp.lt.s32.totalorder %s162, 63
        %s167 = scalar_select %p166, %s162, 63
        %p168 = scmp.lt.s32.totalorder %s163, 2
        %s169 = scalar_select %p168, %s163, 2
        %s170 = smul.addr %s167, 3
        %s171 = sadd.s32 %s169, %s170
        %s172 = smul.addr %s165, 192
        %s173 = sadd.s32 %s171, %s172
        %s174 = smul.addr %s173, 4
        %s175 = scalar_lea.vmem %s0, %s174
        %s176 = smul.u32 32, %s17
        %s177 = smul.u32 3, %s18
      $region20: #{_lambda_.3} parent=15 // pred_fallthru
        _
      // Predicated region
      $region21: #{_lambda_.3} parent=15 // pred_check
        %p178 = pneg %p80
      $region22: #{_lambda_.3} parent=15 // pred_check_branch
        %180 = sbr.rel (%p178) target = $region24
      $region23: #{_lambda_.3} parent=15 // pred_region
        %s181 = smul.u32 48, %s18
        %p182 = scmp.lt.s32.totalorder %s16, 1
        %s183 = scalar_select %p182, %s16, 1
        %p184 = scmp.lt.s32.totalorder %s181, 47
        %s185 = scalar_select %p184, %s181, 47
        %s186 = smul.addr %s183, 48
        %s187 = sadd.s32 %s185, %s186
        %s188 = smul.addr %s187, 4
        %s189 = scalar_lea.vmem %s1, %s188
        %s190 = smul.u32 48, %s18
      $region24: #{_lambda_.3} parent=15 // pred_fallthru
        _
      // Predicated region
      $region25: #{_lambda_.3} parent=15 // pred_check
        %p191 = pneg %p106
      $region26: #{_lambda_.3} parent=15 // pred_check_branch
        %193 = sbr.rel (%p191) target = $region28
      $region27: #{_lambda_.3} parent=15 // pred_region
        %p194 = scmp.lt.s32.totalorder %s16, 1
        %s195 = scalar_select %p194, %s16, 1
        %s196 = scalar_lea.vmem %s2, %s195
      $region28: #{_lambda_.3} parent=15 // pred_fallthru
        _
    $region16: #{_lambda_.3} parent=5 // pred_fallthru
      _
    %p197 = scmp.le.s32.totalorder 1, %s9
    %p198 = scmp.lt.s32.totalorder %s9, 5
    %p199 = pnand %p197, %p198
    %p200 = pneg %p199
    // Predicated region
    $region29: #{_lambda_.3} parent=5 // pred_check
      _
    $region30: #{_lambda_.3} parent=5 // pred_check_branch
      %202 = sbr.rel (%p199) target = $region32
    $region31: #{_lambda_.3} parent=5 // pred_region
      %s203 = ssub.s32 %s9, 1
      %s204 = smul.u32 32, %s20
      %s205 = smul.u32 3, %s21
      %p206 = scmp.lt.s32.totalorder %s19, 1
      %s207 = scalar_select %p206, %s19, 1
      %p208 = scmp.lt.s32.totalorder %s204, 63
      %s209 = scalar_select %p208, %s204, 63
      %p210 = scmp.lt.s32.totalorder %s205, 2
      %s211 = scalar_select %p210, %s205, 2
      %s212 = smul.addr %s209, 3
      %s213 = sadd.s32 %s211, %s212
      %s214 = smul.addr %s207, 192
      %s215 = sadd.s32 %s213, %s214
      %s216 = smul.addr %s215, 4
      %s217 = scalar_lea.vmem %s0, %s216
      %p218 = pneg %p58
      %p219 = pneg %p55
      %s220 = smul.u32 48, %s21
      %p221 = scmp.lt.s32.totalorder %s19, 1
      %s222 = scalar_select %p221, %s19, 1
      %p223 = scmp.lt.s32.totalorder %s220, 47
      %s224 = scalar_select %p223, %s220, 47
      %s225 = smul.addr %s222, 48
      %s226 = sadd.s32 %s224, %s225
      %s227 = smul.addr %s226, 4
      %s228 = scalar_lea.vmem %s1, %s227
      %p229 = pneg %p86
      %p230 = pneg %p83
      %p231 = scmp.lt.s32.totalorder %s19, 1
      %s232 = scalar_select %p231, %s19, 1
      %s233 = scalar_lea.vmem %s2, %s232
      %p234 = pneg %p112
      %p235 = pneg %p109
      %p236 = pneg %p140
      %p237 = pneg %p137
      %s238 = smul.u32 32, %s20
      %p239 = scmp.lt.s32.totalorder %s19, 1
      %s240 = scalar_select %p239, %s19, 1
      %p241 = scmp.lt.s32.totalorder %s238, 63
      %s242 = scalar_select %p241, %s238, 63
      %s243 = smul.addr %s240, 64
      %s244 = sadd.s32 %s242, %s243
      %s245 = smul.addr %s244, 8
      %s246 = scalar_lea.vmem %s3, %s245
      %s247 = smul.u32 32, %s20
      %s248 = smul.u32 3, %s21
      %p249 = scmp.lt.s32.totalorder %s19, 1
      %s250 = scalar_select %p249, %s19, 1
      %p251 = scmp.lt.s32.totalorder %s247, 63
      %s252 = scalar_select %p251, %s247, 63
      %p253 = scmp.lt.s32.totalorder %s248, 2
      %s254 = scalar_select %p253, %s248, 2
      %s255 = smul.addr %s252, 3
      %s256 = sadd.s32 %s254, %s255
      %s257 = smul.addr %s250, 192
      %s258 = sadd.s32 %s256, %s257
      %s259 = smul.addr %s258, 4
      %s260 = scalar_lea.vmem %s0, %s259
      %s261 = smul.u32 32, %s20
      %s262 = smul.u32 3, %s21
      %s263 = smul.u32 48, %s21
      %p264 = scmp.lt.s32.totalorder %s19, 1
      %s265 = scalar_select %p264, %s19, 1
      %p266 = scmp.lt.s32.totalorder %s263, 47
      %s267 = scalar_select %p266, %s263, 47
      %s268 = smul.addr %s265, 48
      %s269 = sadd.s32 %s267, %s268
      %s270 = smul.addr %s269, 4
      %s271 = scalar_lea.vmem %s1, %s270
      %s272 = smul.u32 48, %s21
      %p273 = scmp.lt.s32.totalorder %s19, 1
      %s274 = scalar_select %p273, %s19, 1
      %s275 = scalar_lea.vmem %s2, %s274
      %s276 = smul.u32 32, %s20
      %p277 = scmp.lt.s32.totalorder %s19, 1
      %s278 = scalar_select %p277, %s19, 1
      %p279 = scmp.lt.s32.totalorder %s276, 63
      %s280 = scalar_select %p279, %s276, 63
      %s281 = smul.addr %s278, 64
      %s282 = sadd.s32 %s280, %s281
      %s283 = smul.addr %s282, 8
      %s284 = scalar_lea.vmem %s3, %s283
      %s285 = smul.u32 32, %s20
      %p287 = scmp.eq.s32.totalorder %s21, 0
      // Predicated region
      $region33: #{_lambda_.3} parent=31 // pred_check
        %p288 = pneg %p287
      $region34: #{_lambda_.3} parent=31 // pred_check_branch
        %290 = sbr.rel (%p288) target = $region36
      $region35: #{_lambda_.3} parent=31 // pred_region
        %291 = vst [vmem:[#allocation2] sm:$0xff] 0.0
        %292 = vst [vmem:[#allocation2 + $0x8] sm:$0xff] 0.0
        %293 = vst [vmem:[#allocation2 + $0x10] sm:$0xff] 0.0
        %294 = vst [vmem:[#allocation2 + $0x18] sm:$0xff] 0.0
        %295 = vst [vmem:[#allocation2 + $0x20] sm:$0xff] 0.0
        %296 = vst [vmem:[#allocation2 + $0x28] sm:$0xff] 0.0
        %297 = vst [vmem:[#allocation2 + $0x30] sm:$0xff] 0.0
        %298 = vst [vmem:[#allocation2 + $0x38] sm:$0xff] 0.0
        %299 = vst [vmem:[#allocation2 + $0x40] sm:$0xff] 0.0
        %300 = vst [vmem:[#allocation2 + $0x48] sm:$0xff] 0.0
        %301 = vst [vmem:[#allocation2 + $0x50] sm:$0xff] 0.0
        %302 = vst [vmem:[#allocation2 + $0x58] sm:$0xff] 0.0
        %303 = vst [vmem:[#allocation2 + $0x60] sm:$0xff] 0.0
        %304 = vst [vmem:[#allocation2 + $0x68] sm:$0xff] 0.0
        %305 = vst [vmem:[#allocation2 + $0x70] sm:$0xff] 0.0
        %306 = vst [vmem:[#allocation2 + $0x78] sm:$0xff] 0.0
        %307 = vst [vmem:[#allocation2 + $0x80] sm:$0xff] 0.0
        %308 = vst [vmem:[#allocation2 + $0x88] sm:$0xff] 0.0
        %309 = vst [vmem:[#allocation2 + $0x90] sm:$0xff] 0.0
        %310 = vst [vmem:[#allocation2 + $0x98] sm:$0xff] 0.0
        %311 = vst [vmem:[#allocation2 + $0xa0] sm:$0xff] 0.0
        %312 = vst [vmem:[#allocation2 + $0xa8] sm:$0xff] 0.0
        %313 = vst [vmem:[#allocation2 + $0xb0] sm:$0xff] 0.0
        %314 = vst [vmem:[#allocation2 + $0xb8] sm:$0xff] 0.0
        %315 = vst [vmem:[#allocation2 + $0xc0] sm:$0xff] 0.0
        %316 = vst [vmem:[#allocation2 + $0xc8] sm:$0xff] 0.0
        %317 = vst [vmem:[#allocation2 + $0xd0] sm:$0xff] 0.0
        %318 = vst [vmem:[#allocation2 + $0xd8] sm:$0xff] 0.0
        %319 = vst [vmem:[#allocation2 + $0xe0] sm:$0xff] 0.0
        %320 = vst [vmem:[#allocation2 + $0xe8] sm:$0xff] 0.0
        %321 = vst [vmem:[#allocation2 + $0xf0] sm:$0xff] 0.0
        %322 = vst [vmem:[#allocation2 + $0xf8] sm:$0xff] 0.0
      $region36: #{_lambda_.3} parent=31 // pred_fallthru
        _
      %v323 = vld [vmem:[#allocation2] sm:$0xff]
      %v324 = vld [vmem:[#allocation2 + $0x8] sm:$0xff]
      %v325 = vld [vmem:[#allocation2 + $0x10] sm:$0xff]
      %v326 = vld [vmem:[#allocation2 + $0x18] sm:$0xff]
      %v327 = vld [vmem:[#allocation2 + $0x20] sm:$0xff]
      %v328 = vld [vmem:[#allocation2 + $0x28] sm:$0xff]
      %v329 = vld [vmem:[#allocation2 + $0x30] sm:$0xff]
      %v330 = vld [vmem:[#allocation2 + $0x38] sm:$0xff]
      %v331 = vld [vmem:[#allocation2 + $0x40] sm:$0xff]
      %v332 = vld [vmem:[#allocation2 + $0x48] sm:$0xff]
      %v333 = vld [vmem:[#allocation2 + $0x50] sm:$0xff]
      %v334 = vld [vmem:[#allocation2 + $0x58] sm:$0xff]
      %v335 = vld [vmem:[#allocation2 + $0x60] sm:$0xff]
      %v336 = vld [vmem:[#allocation2 + $0x68] sm:$0xff]
      %v337 = vld [vmem:[#allocation2 + $0x70] sm:$0xff]
      %v338 = vld [vmem:[#allocation2 + $0x78] sm:$0xff]
      %v339 = vld [vmem:[#allocation2 + $0x80] sm:$0xff]
      %v340 = vld [vmem:[#allocation2 + $0x88] sm:$0xff]
      %v341 = vld [vmem:[#allocation2 + $0x90] sm:$0xff]
      %v342 = vld [vmem:[#allocation2 + $0x98] sm:$0xff]
      %v343 = vld [vmem:[#allocation2 + $0xa0] sm:$0xff]
      %v344 = vld [vmem:[#allocation2 + $0xa8] sm:$0xff]
      %v345 = vld [vmem:[#allocation2 + $0xb0] sm:$0xff]
      %v346 = vld [vmem:[#allocation2 + $0xb8] sm:$0xff]
      %v347 = vld [vmem:[#allocation2 + $0xc0] sm:$0xff]
      %v348 = vld [vmem:[#allocation2 + $0xc8] sm:$0xff]
      %v349 = vld [vmem:[#allocation2 + $0xd0] sm:$0xff]
      %v350 = vld [vmem:[#allocation2 + $0xd8] sm:$0xff]
      %v351 = vld [vmem:[#allocation2 + $0xe0] sm:$0xff]
      %v352 = vld [vmem:[#allocation2 + $0xe8] sm:$0xff]
      %v353 = vld [vmem:[#allocation2 + $0xf0] sm:$0xff]
      %v354 = vld [vmem:[#allocation2 + $0xf8] sm:$0xff]
      %v355 = vld [vmem:[%s260] sm:$0xff]
      %v356 = vld [vmem:[%s260 + $0x8] sm:$0xf]
      %v357 = vld [vmem:[%s260 + $0xc] sm:$0xff]
      %v358 = vld [vmem:[%s260 + $0x14] sm:$0xf]
      %v359 = vld [vmem:[%s260 + $0x18] sm:$0xff]
      %v360 = vld [vmem:[%s260 + $0x20] sm:$0xf]
      %v361 = vld [vmem:[%s260 + $0x24] sm:$0xff]
      %v362 = vld [vmem:[%s260 + $0x2c] sm:$0xf]
      %v363 = vld [vmem:[%s260 + $0x30] sm:$0xff]
      %v364 = vld [vmem:[%s260 + $0x38] sm:$0xf]
      %v365 = vld [vmem:[%s260 + $0x3c] sm:$0xff]
      %v366 = vld [vmem:[%s260 + $0x44] sm:$0xf]
      %v367 = vld [vmem:[%s260 + $0x48] sm:$0xff]
      %v368 = vld [vmem:[%s260 + $0x50] sm:$0xf]
      %v369 = vld [vmem:[%s260 + $0x54] sm:$0xff]
      %v370 = vld [vmem:[%s260 + $0x5c] sm:$0xf]
      %v371 = vld [vmem:[%s260 + $0x60] sm:$0xff]
      %v372 = vld [vmem:[%s260 + $0x68] sm:$0xf]
      %v373 = vld [vmem:[%s260 + $0x6c] sm:$0xff]
      %v374 = vld [vmem:[%s260 + $0x74] sm:$0xf]
      %v375 = vld [vmem:[%s260 + $0x78] sm:$0xff]
      %v376 = vld [vmem:[%s260 + $0x80] sm:$0xf]
      %v377 = vld [vmem:[%s260 + $0x84] sm:$0xff]
      %v378 = vld [vmem:[%s260 + $0x8c] sm:$0xf]
      %v379 = vld [vmem:[%s260 + $0x90] sm:$0xff]
      %v380 = vld [vmem:[%s260 + $0x98] sm:$0xf]
      %v381 = vld [vmem:[%s260 + $0x9c] sm:$0xff]
      %v382 = vld [vmem:[%s260 + $0xa4] sm:$0xf]
      %v383 = vld [vmem:[%s260 + $0xa8] sm:$0xff]
      %v384 = vld [vmem:[%s260 + $0xb0] sm:$0xf]
      %v385 = vld [vmem:[%s260 + $0xb4] sm:$0xff]
      %v386 = vld [vmem:[%s260 + $0xbc] sm:$0xf]
      %v387 = vld [vmem:[%s260 + $0xc0] sm:$0xff]
      %v388 = vld [vmem:[%s260 + $0xc8] sm:$0xf]
      %v389 = vld [vmem:[%s260 + $0xcc] sm:$0xff]
      %v390 = vld [vmem:[%s260 + $0xd4] sm:$0xf]
      %v391 = vld [vmem:[%s260 + $0xd8] sm:$0xff]
      %v392 = vld [vmem:[%s260 + $0xe0] sm:$0xf]
      %v393 = vld [vmem:[%s260 + $0xe4] sm:$0xff]
      %v394 = vld [vmem:[%s260 + $0xec] sm:$0xf]
      %v395 = vld [vmem:[%s260 + $0xf0] sm:$0xff]
      %v396 = vld [vmem:[%s260 + $0xf8] sm:$0xf]
      %v397 = vld [vmem:[%s260 + $0xfc] sm:$0xff]
      %v398 = vld [vmem:[%s260 + $0x104] sm:$0xf]
      %v399 = vld [vmem:[%s260 + $0x108] sm:$0xff]
      %v400 = vld [vmem:[%s260 + $0x110] sm:$0xf]
      %v401 = vld [vmem:[%s260 + $0x114] sm:$0xff]
      %v402 = vld [vmem:[%s260 + $0x11c] sm:$0xf]
      %v403 = vld [vmem:[%s260 + $0x120] sm:$0xff]
      %v404 = vld [vmem:[%s260 + $0x128] sm:$0xf]
      %v405 = vld [vmem:[%s260 + $0x12c] sm:$0xff]
      %v406 = vld [vmem:[%s260 + $0x134] sm:$0xf]
      %v407 = vld [vmem:[%s260 + $0x138] sm:$0xff]
      %v408 = vld [vmem:[%s260 + $0x140] sm:$0xf]
      %v409 = vld [vmem:[%s260 + $0x144] sm:$0xff]
      %v410 = vld [vmem:[%s260 + $0x14c] sm:$0xf]
      %v411 = vld [vmem:[%s260 + $0x150] sm:$0xff]
      %v412 = vld [vmem:[%s260 + $0x158] sm:$0xf]
      %v413 = vld [vmem:[%s260 + $0x15c] sm:$0xff]
      %v414 = vld [vmem:[%s260 + $0x164] sm:$0xf]
      %v415 = vld [vmem:[%s260 + $0x168] sm:$0xff]
      %v416 = vld [vmem:[%s260 + $0x170] sm:$0xf]
      %v417 = vld [vmem:[%s260 + $0x174] sm:$0xff]
      %v418 = vld [vmem:[%s260 + $0x17c] sm:$0xf]
      %v419 = vld [vmem:[%s271] sm:$0xf]
      %v420 = vld [vmem:[%s271 + $0x4] sm:$0xf]
      %v421 = vld [vmem:[%s271 + $0x8] sm:$0xf]
      %v422 = vld [vmem:[%s271 + $0xc] sm:$0xf]
      %v423 = vld [vmem:[%s271 + $0x10] sm:$0xf]
      %v424 = vld [vmem:[%s271 + $0x14] sm:$0xf]
      %v425 = vld [vmem:[%s271 + $0x18] sm:$0xf]
      %v426 = vld [vmem:[%s271 + $0x1c] sm:$0xf]
      %v427 = vld [vmem:[%s271 + $0x20] sm:$0xf]
      %v428 = vld [vmem:[%s271 + $0x24] sm:$0xf]
      %v429 = vld [vmem:[%s271 + $0x28] sm:$0xf]
      %v430 = vld [vmem:[%s271 + $0x2c] sm:$0xf]
      %v431 = vld [vmem:[%s271 + $0x30] sm:$0xf]
      %v432 = vld [vmem:[%s271 + $0x34] sm:$0xf]
      %v433 = vld [vmem:[%s271 + $0x38] sm:$0xf]
      %v434 = vld [vmem:[%s271 + $0x3c] sm:$0xf]
      %v435 = vld [vmem:[%s271 + $0x40] sm:$0xf]
      %v436 = vld [vmem:[%s271 + $0x44] sm:$0xf]
      %v437 = vld [vmem:[%s271 + $0x48] sm:$0xf]
      %v438 = vld [vmem:[%s271 + $0x4c] sm:$0xf]
      %v439 = vld [vmem:[%s271 + $0x50] sm:$0xf]
      %v440 = vld [vmem:[%s271 + $0x54] sm:$0xf]
      %v441 = vld [vmem:[%s271 + $0x58] sm:$0xf]
      %v442 = vld [vmem:[%s271 + $0x5c] sm:$0xf]
      %v443 = vld [vmem:[%s271 + $0x60] sm:$0xf]
      %v444 = vld [vmem:[%s271 + $0x64] sm:$0xf]
      %v445 = vld [vmem:[%s271 + $0x68] sm:$0xf]
      %v446 = vld [vmem:[%s271 + $0x6c] sm:$0xf]
      %v447 = vld [vmem:[%s271 + $0x70] sm:$0xf]
      %v448 = vld [vmem:[%s271 + $0x74] sm:$0xf]
      %v449 = vld [vmem:[%s271 + $0x78] sm:$0xf]
      %v450 = vld [vmem:[%s271 + $0x7c] sm:$0xf]
      %v451 = vld [vmem:[%s271 + $0x80] sm:$0xf]
      %v452 = vld [vmem:[%s271 + $0x84] sm:$0xf]
      %v453 = vld [vmem:[%s271 + $0x88] sm:$0xf]
      %v454 = vld [vmem:[%s271 + $0x8c] sm:$0xf]
      %v455 = vld [vmem:[%s271 + $0x90] sm:$0xf]
      %v456 = vld [vmem:[%s271 + $0x94] sm:$0xf]
      %v457 = vld [vmem:[%s271 + $0x98] sm:$0xf]
      %v458 = vld [vmem:[%s271 + $0x9c] sm:$0xf]
      %v459 = vld [vmem:[%s271 + $0xa0] sm:$0xf]
      %v460 = vld [vmem:[%s271 + $0xa4] sm:$0xf]
      %v461 = vld [vmem:[%s271 + $0xa8] sm:$0xf]
      %v462 = vld [vmem:[%s271 + $0xac] sm:$0xf]
      %v463 = vld [vmem:[%s271 + $0xb0] sm:$0xf]
      %v464 = vld [vmem:[%s271 + $0xb4] sm:$0xf]
      %v465 = vld [vmem:[%s271 + $0xb8] sm:$0xf]
      %v466 = vld [vmem:[%s271 + $0xbc] sm:$0xf]
      %v531 = vunpack.c.l.b16 %v355
      %v532 = vunpack.c.h.b16 %v355
      %v533 = vunpack.c.l.b16 %v356
      %v534 = vunpack.c.l.b16 %v357
      %v535 = vunpack.c.h.b16 %v357
      %v536 = vunpack.c.l.b16 %v358
      %v537 = vunpack.c.l.b16 %v359
      %v538 = vunpack.c.h.b16 %v359
      %v539 = vunpack.c.l.b16 %v360
      %v540 = vunpack.c.l.b16 %v361
      %v541 = vunpack.c.h.b16 %v361
      %v542 = vunpack.c.l.b16 %v362
      %v543 = vunpack.c.l.b16 %v363
      %v544 = vunpack.c.h.b16 %v363
      %v545 = vunpack.c.l.b16 %v364
      %v546 = vunpack.c.l.b16 %v365
      %v547 = vunpack.c.h.b16 %v365
      %v548 = vunpack.c.l.b16 %v366
      %v549 = vunpack.c.l.b16 %v367
      %v550 = vunpack.c.h.b16 %v367
      %v551 = vunpack.c.l.b16 %v368
      %v552 = vunpack.c.l.b16 %v369
      %v553 = vunpack.c.h.b16 %v369
      %v554 = vunpack.c.l.b16 %v370
      %v555 = vunpack.c.l.b16 %v371
      %v556 = vunpack.c.h.b16 %v371
      %v557 = vunpack.c.l.b16 %v372
      %v558 = vunpack.c.l.b16 %v373
      %v559 = vunpack.c.h.b16 %v373
      %v560 = vunpack.c.l.b16 %v374
      %v561 = vunpack.c.l.b16 %v375
      %v562 = vunpack.c.h.b16 %v375
      %v563 = vunpack.c.l.b16 %v376
      %v564 = vunpack.c.l.b16 %v377
      %v565 = vunpack.c.h.b16 %v377
      %v566 = vunpack.c.l.b16 %v378
      %v567 = vunpack.c.l.b16 %v379
      %v568 = vunpack.c.h.b16 %v379
      %v569 = vunpack.c.l.b16 %v380
      %v570 = vunpack.c.l.b16 %v381
      %v571 = vunpack.c.h.b16 %v381
      %v572 = vunpack.c.l.b16 %v382
      %v573 = vunpack.c.l.b16 %v383
      %v574 = vunpack.c.h.b16 %v383
      %v575 = vunpack.c.l.b16 %v384
      %v576 = vunpack.c.l.b16 %v385
      %v577 = vunpack.c.h.b16 %v385
      %v578 = vunpack.c.l.b16 %v386
      %v579 = vunpack.c.l.b16 %v387
      %v580 = vunpack.c.h.b16 %v387
      %v581 = vunpack.c.l.b16 %v388
      %v582 = vunpack.c.l.b16 %v389
      %v583 = vunpack.c.h.b16 %v389
      %v584 = vunpack.c.l.b16 %v390
      %v585 = vunpack.c.l.b16 %v391
      %v586 = vunpack.c.h.b16 %v391
      %v587 = vunpack.c.l.b16 %v392
      %v588 = vunpack.c.l.b16 %v393
      %v589 = vunpack.c.h.b16 %v393
      %v590 = vunpack.c.l.b16 %v394
      %v591 = vunpack.c.l.b16 %v395
      %v592 = vunpack.c.h.b16 %v395
      %v593 = vunpack.c.l.b16 %v396
      %v594 = vunpack.c.l.b16 %v397
      %v595 = vunpack.c.h.b16 %v397
      %v596 = vunpack.c.l.b16 %v398
      %v597 = vunpack.c.l.b16 %v399
      %v598 = vunpack.c.h.b16 %v399
      %v599 = vunpack.c.l.b16 %v400
      %v600 = vunpack.c.l.b16 %v401
      %v601 = vunpack.c.h.b16 %v401
      %v602 = vunpack.c.l.b16 %v402
      %v603 = vunpack.c.l.b16 %v403
      %v604 = vunpack.c.h.b16 %v403
      %v605 = vunpack.c.l.b16 %v404
      %v606 = vunpack.c.l.b16 %v405
      %v607 = vunpack.c.h.b16 %v405
      %v608 = vunpack.c.l.b16 %v406
      %v609 = vunpack.c.l.b16 %v407
      %v610 = vunpack.c.h.b16 %v407
      %v611 = vunpack.c.l.b16 %v408
      %v612 = vunpack.c.l.b16 %v409
      %v613 = vunpack.c.h.b16 %v409
      %v614 = vunpack.c.l.b16 %v410
      %v615 = vunpack.c.l.b16 %v411
      %v616 = vunpack.c.h.b16 %v411
      %v617 = vunpack.c.l.b16 %v412
      %v618 = vunpack.c.l.b16 %v413
      %v619 = vunpack.c.h.b16 %v413
      %v620 = vunpack.c.l.b16 %v414
      %v621 = vunpack.c.l.b16 %v415
      %v622 = vunpack.c.h.b16 %v415
      %v623 = vunpack.c.l.b16 %v416
      %v624 = vunpack.c.l.b16 %v417
      %v625 = vunpack.c.h.b16 %v417
      %v626 = vunpack.c.l.b16 %v418
      %v627 = vpack.c.b16 %v534, %v531
      %v628 = vpack.c.b16 %v535, %v532
      %v629 = vpack.c.b16 %v536, %v533
      %v630 = vpack.c.b16 %v540, %v537
      %v631 = vpack.c.b16 %v541, %v538
      %v632 = vpack.c.b16 %v542, %v539
      %v633 = vpack.c.b16 %v546, %v543
      %v634 = vpack.c.b16 %v547, %v544
      %v635 = vpack.c.b16 %v548, %v545
      %v636 = vpack.c.b16 %v552, %v549
      %v637 = vpack.c.b16 %v553, %v550
      %v638 = vpack.c.b16 %v554, %v551
      %v639 = vpack.c.b16 %v558, %v555
      %v640 = vpack.c.b16 %v559, %v556
      %v641 = vpack.c.b16 %v560, %v557
      %v642 = vpack.c.b16 %v564, %v561
      %v643 = vpack.c.b16 %v565, %v562
      %v644 = vpack.c.b16 %v566, %v563
      %v645 = vpack.c.b16 %v570, %v567
      %v646 = vpack.c.b16 %v571, %v568
      %v647 = vpack.c.b16 %v572, %v569
      %v648 = vpack.c.b16 %v576, %v573
      %v649 = vpack.c.b16 %v577, %v574
      %v650 = vpack.c.b16 %v578, %v575
      %v651 = vpack.c.b16 %v582, %v579
      %v652 = vpack.c.b16 %v583, %v580
      %v653 = vpack.c.b16 %v584, %v581
      %v654 = vpack.c.b16 %v588, %v585
      %v655 = vpack.c.b16 %v589, %v586
      %v656 = vpack.c.b16 %v590, %v587
      %v657 = vpack.c.b16 %v594, %v591
      %v658 = vpack.c.b16 %v595, %v592
      %v659 = vpack.c.b16 %v596, %v593
      %v660 = vpack.c.b16 %v600, %v597
      %v661 = vpack.c.b16 %v601, %v598
      %v662 = vpack.c.b16 %v602, %v599
      %v663 = vpack.c.b16 %v606, %v603
      %v664 = vpack.c.b16 %v607, %v604
      %v665 = vpack.c.b16 %v608, %v605
      %v666 = vpack.c.b16 %v612, %v609
      %v667 = vpack.c.b16 %v613, %v610
      %v668 = vpack.c.b16 %v614, %v611
      %v669 = vpack.c.b16 %v618, %v615
      %v670 = vpack.c.b16 %v619, %v616
      %v671 = vpack.c.b16 %v620, %v617
      %v672 = vpack.c.b16 %v624, %v621
      %v673 = vpack.c.b16 %v625, %v622
      %v674 = vpack.c.b16 %v626, %v623
      %v771 = vunpack.c.l.b16 %v419
      %v772 = vunpack.c.l.b16 %v420
      %v773 = vunpack.c.l.b16 %v421
      %v774 = vunpack.c.l.b16 %v422
      %v775 = vunpack.c.l.b16 %v423
      %v776 = vunpack.c.l.b16 %v424
      %v777 = vunpack.c.l.b16 %v425
      %v778 = vunpack.c.l.b16 %v426
      %v779 = vunpack.c.l.b16 %v427
      %v780 = vunpack.c.l.b16 %v428
      %v781 = vunpack.c.l.b16 %v429
      %v782 = vunpack.c.l.b16 %v430
      %v783 = vunpack.c.l.b16 %v431
      %v784 = vunpack.c.l.b16 %v432
      %v785 = vunpack.c.l.b16 %v433
      %v786 = vunpack.c.l.b16 %v434
      %v787 = vunpack.c.l.b16 %v435
      %v788 = vunpack.c.l.b16 %v436
      %v789 = vunpack.c.l.b16 %v437
      %v790 = vunpack.c.l.b16 %v438
      %v791 = vunpack.c.l.b16 %v439
      %v792 = vunpack.c.l.b16 %v440
      %v793 = vunpack.c.l.b16 %v441
      %v794 = vunpack.c.l.b16 %v442
      %v795 = vunpack.c.l.b16 %v443
      %v796 = vunpack.c.l.b16 %v444
      %v797 = vunpack.c.l.b16 %v445
      %v798 = vunpack.c.l.b16 %v446
      %v799 = vunpack.c.l.b16 %v447
      %v800 = vunpack.c.l.b16 %v448
      %v801 = vunpack.c.l.b16 %v449
      %v802 = vunpack.c.l.b16 %v450
      %v803 = vunpack.c.l.b16 %v451
      %v804 = vunpack.c.l.b16 %v452
      %v805 = vunpack.c.l.b16 %v453
      %v806 = vunpack.c.l.b16 %v454
      %v807 = vunpack.c.l.b16 %v455
      %v808 = vunpack.c.l.b16 %v456
      %v809 = vunpack.c.l.b16 %v457
      %v810 = vunpack.c.l.b16 %v458
      %v811 = vunpack.c.l.b16 %v459
      %v812 = vunpack.c.l.b16 %v460
      %v813 = vunpack.c.l.b16 %v461
      %v814 = vunpack.c.l.b16 %v462
      %v815 = vunpack.c.l.b16 %v463
      %v816 = vunpack.c.l.b16 %v464
      %v817 = vunpack.c.l.b16 %v465
      %v818 = vunpack.c.l.b16 %v466
      %v819 = vpack.c.b16 %v772, %v771
      %v820 = vpack.c.b16 %v774, %v773
      %v821 = vpack.c.b16 %v776, %v775
      %v822 = vpack.c.b16 %v778, %v777
      %v823 = vpack.c.b16 %v780, %v779
      %v824 = vpack.c.b16 %v782, %v781
      %v825 = vpack.c.b16 %v784, %v783
      %v826 = vpack.c.b16 %v786, %v785
      %v827 = vpack.c.b16 %v788, %v787
      %v828 = vpack.c.b16 %v790, %v789
      %v829 = vpack.c.b16 %v792, %v791
      %v830 = vpack.c.b16 %v794, %v793
      %v831 = vpack.c.b16 %v796, %v795
      %v832 = vpack.c.b16 %v798, %v797
      %v833 = vpack.c.b16 %v800, %v799
      %v834 = vpack.c.b16 %v802, %v801
      %v835 = vpack.c.b16 %v804, %v803
      %v836 = vpack.c.b16 %v806, %v805
      %v837 = vpack.c.b16 %v808, %v807
      %v838 = vpack.c.b16 %v810, %v809
      %v839 = vpack.c.b16 %v812, %v811
      %v840 = vpack.c.b16 %v814, %v813
      %v841 = vpack.c.b16 %v816, %v815
      %v842 = vpack.c.b16 %v818, %v817
      %867 = vmatprep.subr.bf16.mxu0 0
      %868 = vmatpush1.bf16.msra.mxu0 %v819
      %869 = vmatprep.subr.bf16.mxu0 0
      %870 = vmatpush1.bf16.msra.mxu0 %v820
      %871 = vmatprep.subr.bf16.mxu0 0
      %872 = vmatpush1.bf16.msra.mxu0 %v821
      %873 = vmatprep.subr.bf16.mxu0 0
      %874 = vmatpush1.bf16.msra.mxu0 %v822
      %875 = vmatprep.subr.bf16.mxu0 0
      %876 = vmatpush1.bf16.msra.mxu0 %v823
      %877 = vmatprep.subr.bf16.mxu0 0
      %878 = vmatpush1.bf16.msra.mxu0 %v824
      %879 = vmatprep.subr.bf16.mxu0 0
      %880 = vmatpush1.bf16.msra.mxu0 %v825
      %881 = vmatprep.subr.bf16.mxu0 0
      %882 = vmatpush1.bf16.msra.mxu0 %v826
      %883 = vmatprep.subr.bf16.mxu0 0
      %884 = vmatpush1.bf16.msra.mxu0 %v827
      %885 = vmatprep.subr.bf16.mxu0 0
      %886 = vmatpush1.bf16.msra.mxu0 %v828
      %887 = vmatprep.subr.bf16.mxu0 0
      %888 = vmatpush1.bf16.msra.mxu0 %v829
      %889 = vmatprep.subr.bf16.mxu0 0
      %890 = vmatpush1.bf16.msra.mxu0 %v830
      %891 = vmatprep.subr.bf16.mxu0 0
      %892 = vmatpush1.bf16.msra.mxu0 %v831
      %893 = vmatprep.subr.bf16.mxu0 0
      %894 = vmatpush1.bf16.msra.mxu0 %v832
      %895 = vmatprep.subr.bf16.mxu0 0
      %896 = vmatpush1.bf16.msra.mxu0 %v833
      %897 = vmatprep.subr.bf16.mxu0 0
      %898 = vmatpush1.bf16.msra.mxu0 %v834
      %899 = vmatprep.mubr.bf16.mxu0 %v628
      %900 = vmatmul.mubr.bf16.gmra.mrb[0].mxu0 %v627
      %v901 = vpop.f32.mrb[0].mxu0
      %v902 = vadd.f32 0.0, %v901
      %v903 = vpop.f32.mrb[0].mxu0
      %v904 = vpop.f32.mrb[0].mxu0
      %v905 = vadd.f32 0.0, %v904
      %v906 = vpop.f32.mrb[0].mxu0
      %907 = vmatprep.mubr.bf16.mxu0 %v631
      %908 = vmatmul.mubr.bf16.gmra.mrb[0].mxu0 %v630
      %v909 = vpop.f32.mrb[0].mxu0
      %v910 = vadd.f32 0.0, %v909
      %v911 = vpop.f32.mrb[0].mxu0
      %v912 = vpop.f32.mrb[0].mxu0
      %v913 = vadd.f32 0.0, %v912
      %v914 = vpop.f32.mrb[0].mxu0
      %915 = vmatprep.mubr.bf16.mxu0 %v634
      %916 = vmatmul.mubr.bf16.gmra.mrb[0].mxu0 %v633
      %v917 = vpop.f32.mrb[0].mxu0
      %v918 = vadd.f32 0.0, %v917
      %v919 = vpop.f32.mrb[0].mxu0
      %v920 = vpop.f32.mrb[0].mxu0
      %v921 = vadd.f32 0.0, %v920
      %v922 = vpop.f32.mrb[0].mxu0
      %923 = vmatprep.mubr.bf16.mxu0 %v637
      %924 = vmatmul.mubr.bf16.gmra.mrb[0].mxu0 %v636
      %v925 = vpop.f32.mrb[0].mxu0
      %v926 = vadd.f32 0.0, %v925
      %v927 = vpop.f32.mrb[0].mxu0
      %v928 = vpop.f32.mrb[0].mxu0
      %v929 = vadd.f32 0.0, %v928
      %v930 = vpop.f32.mrb[0].mxu0
      %931 = vmatprep.mubr.bf16.mxu0 %v640
      %932 = vmatmul.mubr.bf16.gmra.mrb[0].mxu0 %v639
      %v933 = vpop.f32.mrb[0].mxu0
      %v934 = vadd.f32 0.0, %v933
      %v935 = vpop.f32.mrb[0].mxu0
      %v936 = vpop.f32.mrb[0].mxu0
      %v937 = vadd.f32 0.0, %v936
      %v938 = vpop.f32.mrb[0].mxu0
      %939 = vmatprep.mubr.bf16.mxu0 %v643
      %940 = vmatmul.mubr.bf16.gmra.mrb[0].mxu0 %v642
      %v941 = vpop.f32.mrb[0].mxu0
      %v942 = vadd.f32 0.0, %v941
      %v943 = vpop.f32.mrb[0].mxu0
      %v944 = vpop.f32.mrb[0].mxu0
      %v945 = vadd.f32 0.0, %v944
      %v946 = vpop.f32.mrb[0].mxu0
      %947 = vmatprep.mubr.bf16.mxu0 %v646
      %948 = vmatmul.mubr.bf16.gmra.mrb[0].mxu0 %v645
      %v949 = vpop.f32.mrb[0].mxu0
      %v950 = vadd.f32 0.0, %v949
      %v951 = vpop.f32.mrb[0].mxu0
      %v952 = vpop.f32.mrb[0].mxu0
      %v953 = vadd.f32 0.0, %v952
      %v954 = vpop.f32.mrb[0].mxu0
      %955 = vmatprep.mubr.bf16.mxu0 %v649
      %956 = vmatmul.mubr.bf16.gmra.mrb[0].mxu0 %v648
      %v957 = vpop.f32.mrb[0].mxu0
      %v958 = vadd.f32 0.0, %v957
      %v959 = vpop.f32.mrb[0].mxu0
      %v960 = vpop.f32.mrb[0].mxu0
      %v961 = vadd.f32 0.0, %v960
      %v962 = vpop.f32.mrb[0].mxu0
      %963 = vmatprep.mubr.bf16.mxu0 %v652
      %964 = vmatmul.mubr.bf16.gmra.mrb[0].mxu0 %v651
      %v965 = vpop.f32.mrb[0].mxu0
      %v966 = vadd.f32 0.0, %v965
      %v967 = vpop.f32.mrb[0].mxu0
      %v968 = vpop.f32.mrb[0].mxu0
      %v969 = vadd.f32 0.0, %v968
      %v970 = vpop.f32.mrb[0].mxu0
      %971 = vmatprep.mubr.bf16.mxu0 %v655
      %972 = vmatmul.mubr.bf16.gmra.mrb[0].mxu0 %v654
      %v973 = vpop.f32.mrb[0].mxu0
      %v974 = vadd.f32 0.0, %v973
      %v975 = vpop.f32.mrb[0].mxu0
      %v976 = vpop.f32.mrb[0].mxu0
      %v977 = vadd.f32 0.0, %v976
      %v978 = vpop.f32.mrb[0].mxu0
      %979 = vmatprep.mubr.bf16.mxu0 %v658
      %980 = vmatmul.mubr.bf16.gmra.mrb[0].mxu0 %v657
      %v981 = vpop.f32.mrb[0].mxu0
      %v982 = vadd.f32 0.0, %v981
      %v983 = vpop.f32.mrb[0].mxu0
      %v984 = vpop.f32.mrb[0].mxu0
      %v985 = vadd.f32 0.0, %v984
      %v986 = vpop.f32.mrb[0].mxu0
      %987 = vmatprep.mubr.bf16.mxu0 %v661
      %988 = vmatmul.mubr.bf16.gmra.mrb[0].mxu0 %v660
      %v989 = vpop.f32.mrb[0].mxu0
      %v990 = vadd.f32 0.0, %v989
      %v991 = vpop.f32.mrb[0].mxu0
      %v992 = vpop.f32.mrb[0].mxu0
      %v993 = vadd.f32 0.0, %v992
      %v994 = vpop.f32.mrb[0].mxu0
      %995 = vmatprep.mubr.bf16.mxu0 %v664
      %996 = vmatmul.mubr.bf16.gmra.mrb[0].mxu0 %v663
      %v997 = vpop.f32.mrb[0].mxu0
      %v998 = vadd.f32 0.0, %v997
      %v999 = vpop.f32.mrb[0].mxu0
      %v1000 = vpop.f32.mrb[0].mxu0
      %v1001 = vadd.f32 0.0, %v1000
      %v1002 = vpop.f32.mrb[0].mxu0
      %1003 = vmatprep.mubr.bf16.mxu0 %v667
      %1004 = vmatmul.mubr.bf16.gmra.mrb[0].mxu0 %v666
      %v1005 = vpop.f32.mrb[0].mxu0
      %v1006 = vadd.f32 0.0, %v1005
      %v1007 = vpop.f32.mrb[0].mxu0
      %v1008 = vpop.f32.mrb[0].mxu0
      %v1009 = vadd.f32 0.0, %v1008
      %v1010 = vpop.f32.mrb[0].mxu0
      %1011 = vmatprep.mubr.bf16.mxu0 %v670
      %1012 = vmatmul.mubr.bf16.gmra.mrb[0].mxu0 %v669
      %v1013 = vpop.f32.mrb[0].mxu0
      %v1014 = vadd.f32 0.0, %v1013
      %v1015 = vpop.f32.mrb[0].mxu0
      %v1016 = vpop.f32.mrb[0].mxu0
      %v1017 = vadd.f32 0.0, %v1016
      %v1018 = vpop.f32.mrb[0].mxu0
      %1019 = vmatprep.mubr.bf16.mxu0 %v673
      %1020 = vmatmul.mubr.bf16.gmra.mrb[0].mxu0 %v672
      %v1021 = vpop.f32.mrb[0].mxu0
      %v1022 = vadd.f32 0.0, %v1021
      %v1023 = vpop.f32.mrb[0].mxu0
      %v1024 = vpop.f32.mrb[0].mxu0
      %v1025 = vadd.f32 0.0, %v1024
      %v1026 = vpop.f32.mrb[0].mxu0
      %1027 = vdwg.mxu0
      %1028 = vmatprep.subr.bf16.mxu0 0
      %1029 = vmatpush1.bf16.msra.mxu0 %v835
      %1030 = vmatprep.subr.bf16.mxu0 0
      %1031 = vmatpush1.bf16.msra.mxu0 %v836
      %1032 = vmatprep.subr.bf16.mxu0 0
      %1033 = vmatpush1.bf16.msra.mxu0 %v837
      %1034 = vmatprep.subr.bf16.mxu0 0
      %1035 = vmatpush1.bf16.msra.mxu0 %v838
      %1036 = vmatprep.subr.bf16.mxu0 0
      %1037 = vmatpush1.bf16.msra.mxu0 %v839
      %1038 = vmatprep.subr.bf16.mxu0 0
      %1039 = vmatpush1.bf16.msra.mxu0 %v840
      %1040 = vmatprep.subr.bf16.mxu0 0
      %1041 = vmatpush1.bf16.msra.mxu0 %v841
      %1042 = vmatprep.subr.bf16.mxu0 0
      %1043 = vmatpush1.bf16.msra.mxu0 %v842
      %1044 = vmatprep.subr.bf16.mxu0 0
      %1045 = vmatpush1.bf16.msra.mxu0 0
      %1046 = vmatprep.subr.bf16.mxu0 0
      %1047 = vmatpush1.bf16.msra.mxu0 0
      %1048 = vmatprep.subr.bf16.mxu0 0
      %1049 = vmatpush1.bf16.msra.mxu0 0
      %1050 = vmatprep.subr.bf16.mxu0 0
      %1051 = vmatpush1.bf16.msra.mxu0 0
      %1052 = vmatprep.subr.bf16.mxu0 0
      %1053 = vmatpush1.bf16.msra.mxu0 0
      %1054 = vmatprep.subr.bf16.mxu0 0
      %1055 = vmatpush1.bf16.msra.mxu0 0
      %1056 = vmatprep.subr.bf16.mxu0 0
      %1057 = vmatpush1.bf16.msra.mxu0 0
      %1058 = vmatprep.subr.bf16.mxu0 0
      %1059 = vmatpush1.bf16.msra.mxu0 0
      %1060 = vmatprep.mubr.bf16.mxu0 0
      %1061 = vmatmul.mubr.bf16.gmra.mrb[0].mxu0 %v629
      %v1062 = vpop.f32.mrb[0].mxu0
      %v1063 = vadd.f32 %v902, %v1062
      %v1064 = vpop.f32.mrb[0].mxu0
      %v1065 = vpop.f32.mrb[0].mxu0
      %v1066 = vadd.f32 %v905, %v1065
      %v1067 = vpop.f32.mrb[0].mxu0
      %1068 = vmatprep.mubr.bf16.mxu0 0
      %1069 = vmatmul.mubr.bf16.gmra.mrb[0].mxu0 %v632
      %v1070 = vpop.f32.mrb[0].mxu0
      %v1071 = vadd.f32 %v910, %v1070
      %v1072 = vpop.f32.mrb[0].mxu0
      %v1073 = vpop.f32.mrb[0].mxu0
      %v1074 = vadd.f32 %v913, %v1073
      %v1075 = vpop.f32.mrb[0].mxu0
      %1076 = vmatprep.mubr.bf16.mxu0 0
      %1077 = vmatmul.mubr.bf16.gmra.mrb[0].mxu0 %v635
      %v1078 = vpop.f32.mrb[0].mxu0
      %v1079 = vadd.f32 %v918, %v1078
      %v1080 = vpop.f32.mrb[0].mxu0
      %v1081 = vpop.f32.mrb[0].mxu0
      %v1082 = vadd.f32 %v921, %v1081
      %v1083 = vpop.f32.mrb[0].mxu0
      %1084 = vmatprep.mubr.bf16.mxu0 0
      %1085 = vmatmul.mubr.bf16.gmra.mrb[0].mxu0 %v638
      %v1086 = vpop.f32.mrb[0].mxu0
      %v1087 = vadd.f32 %v926, %v1086
      %v1088 = vpop.f32.mrb[0].mxu0
      %v1089 = vpop.f32.mrb[0].mxu0
      %v1090 = vadd.f32 %v929, %v1089
      %v1091 = vpop.f32.mrb[0].mxu0
      %1092 = vmatprep.mubr.bf16.mxu0 0
      %1093 = vmatmul.mubr.bf16.gmra.mrb[0].mxu0 %v641
      %v1094 = vpop.f32.mrb[0].mxu0
      %v1095 = vadd.f32 %v934, %v1094
      %v1096 = vpop.f32.mrb[0].mxu0
      %v1097 = vpop.f32.mrb[0].mxu0
      %v1098 = vadd.f32 %v937, %v1097
      %v1099 = vpop.f32.mrb[0].mxu0
      %1100 = vmatprep.mubr.bf16.mxu0 0
      %1101 = vmatmul.mubr.bf16.gmra.mrb[0].mxu0 %v644
      %v1102 = vpop.f32.mrb[0].mxu0
      %v1103 = vadd.f32 %v942, %v1102
      %v1104 = vpop.f32.mrb[0].mxu0
      %v1105 = vpop.f32.mrb[0].mxu0
      %v1106 = vadd.f32 %v945, %v1105
      %v1107 = vpop.f32.mrb[0].mxu0
      %1108 = vmatprep.mubr.bf16.mxu0 0
      %1109 = vmatmul.mubr.bf16.gmra.mrb[0].mxu0 %v647
      %v1110 = vpop.f32.mrb[0].mxu0
      %v1111 = vadd.f32 %v950, %v1110
      %v1112 = vpop.f32.mrb[0].mxu0
      %v1113 = vpop.f32.mrb[0].mxu0
      %v1114 = vadd.f32 %v953, %v1113
      %v1115 = vpop.f32.mrb[0].mxu0
      %1116 = vmatprep.mubr.bf16.mxu0 0
      %1117 = vmatmul.mubr.bf16.gmra.mrb[0].mxu0 %v650
      %v1118 = vpop.f32.mrb[0].mxu0
      %v1119 = vadd.f32 %v958, %v1118
      %v1120 = vpop.f32.mrb[0].mxu0
      %v1121 = vpop.f32.mrb[0].mxu0
      %v1122 = vadd.f32 %v961, %v1121
      %v1123 = vpop.f32.mrb[0].mxu0
      %1124 = vmatprep.mubr.bf16.mxu0 0
      %1125 = vmatmul.mubr.bf16.gmra.mrb[0].mxu0 %v653
      %v1126 = vpop.f32.mrb[0].mxu0
      %v1127 = vadd.f32 %v966, %v1126
      %v1128 = vpop.f32.mrb[0].mxu0
      %v1129 = vpop.f32.mrb[0].mxu0
      %v1130 = vadd.f32 %v969, %v1129
      %v1131 = vpop.f32.mrb[0].mxu0
      %1132 = vmatprep.mubr.bf16.mxu0 0
      %1133 = vmatmul.mubr.bf16.gmra.mrb[0].mxu0 %v656
      %v1134 = vpop.f32.mrb[0].mxu0
      %v1135 = vadd.f32 %v974, %v1134
      %v1136 = vpop.f32.mrb[0].mxu0
      %v1137 = vpop.f32.mrb[0].mxu0
      %v1138 = vadd.f32 %v977, %v1137
      %v1139 = vpop.f32.mrb[0].mxu0
      %1140 = vmatprep.mubr.bf16.mxu0 0
      %1141 = vmatmul.mubr.bf16.gmra.mrb[0].mxu0 %v659
      %v1142 = vpop.f32.mrb[0].mxu0
      %v1143 = vadd.f32 %v982, %v1142
      %v1144 = vpop.f32.mrb[0].mxu0
      %v1145 = vpop.f32.mrb[0].mxu0
      %v1146 = vadd.f32 %v985, %v1145
      %v1147 = vpop.f32.mrb[0].mxu0
      %1148 = vmatprep.mubr.bf16.mxu0 0
      %1149 = vmatmul.mubr.bf16.gmra.mrb[0].mxu0 %v662
      %v1150 = vpop.f32.mrb[0].mxu0
      %v1151 = vadd.f32 %v990, %v1150
      %v1152 = vpop.f32.mrb[0].mxu0
      %v1153 = vpop.f32.mrb[0].mxu0
      %v1154 = vadd.f32 %v993, %v1153
      %v1155 = vpop.f32.mrb[0].mxu0
      %1156 = vmatprep.mubr.bf16.mxu0 0
      %1157 = vmatmul.mubr.bf16.gmra.mrb[0].mxu0 %v665
      %v1158 = vpop.f32.mrb[0].mxu0
      %v1159 = vadd.f32 %v998, %v1158
      %v1160 = vpop.f32.mrb[0].mxu0
      %v1161 = vpop.f32.mrb[0].mxu0
      %v1162 = vadd.f32 %v1001, %v1161
      %v1163 = vpop.f32.mrb[0].mxu0
      %1164 = vmatprep.mubr.bf16.mxu0 0
      %1165 = vmatmul.mubr.bf16.gmra.mrb[0].mxu0 %v668
      %v1166 = vpop.f32.mrb[0].mxu0
      %v1167 = vadd.f32 %v1006, %v1166
      %v1168 = vpop.f32.mrb[0].mxu0
      %v1169 = vpop.f32.mrb[0].mxu0
      %v1170 = vadd.f32 %v1009, %v1169
      %v1171 = vpop.f32.mrb[0].mxu0
      %1172 = vmatprep.mubr.bf16.mxu0 0
      %1173 = vmatmul.mubr.bf16.gmra.mrb[0].mxu0 %v671
      %v1174 = vpop.f32.mrb[0].mxu0
      %v1175 = vadd.f32 %v1014, %v1174
      %v1176 = vpop.f32.mrb[0].mxu0
      %v1177 = vpop.f32.mrb[0].mxu0
      %v1178 = vadd.f32 %v1017, %v1177
      %v1179 = vpop.f32.mrb[0].mxu0
      %1180 = vmatprep.mubr.bf16.mxu0 0
      %1181 = vmatmul.mubr.bf16.gmra.mrb[0].mxu0 %v674
      %v1182 = vpop.f32.mrb[0].mxu0
      %v1183 = vadd.f32 %v1022, %v1182
      %v1184 = vpop.f32.mrb[0].mxu0
      %v1185 = vpop.f32.mrb[0].mxu0
      %v1186 = vadd.f32 %v1025, %v1185
      %v1187 = vpop.f32.mrb[0].mxu0
      %1188 = vdwg.mxu0
      %v1189 = vadd.f32 %v323, %v1063
      %v1190 = vadd.f32 %v324, %v1066
      %v1191 = vadd.f32 %v325, %v1071
      %v1192 = vadd.f32 %v326, %v1074
      %v1193 = vadd.f32 %v327, %v1079
      %v1194 = vadd.f32 %v328, %v1082
      %v1195 = vadd.f32 %v329, %v1087
      %v1196 = vadd.f32 %v330, %v1090
      %v1197 = vadd.f32 %v331, %v1095
      %v1198 = vadd.f32 %v332, %v1098
      %v1199 = vadd.f32 %v333, %v1103
      %v1200 = vadd.f32 %v334, %v1106
      %v1201 = vadd.f32 %v335, %v1111
      %v1202 = vadd.f32 %v336, %v1114
      %v1203 = vadd.f32 %v337, %v1119
      %v1204 = vadd.f32 %v338, %v1122
      %v1205 = vadd.f32 %v339, %v1127
      %v1206 = vadd.f32 %v340, %v1130
      %v1207 = vadd.f32 %v341, %v1135
      %v1208 = vadd.f32 %v342, %v1138
      %v1209 = vadd.f32 %v343, %v1143
      %v1210 = vadd.f32 %v344, %v1146
      %v1211 = vadd.f32 %v345, %v1151
      %v1212 = vadd.f32 %v346, %v1154
      %v1213 = vadd.f32 %v347, %v1159
      %v1214 = vadd.f32 %v348, %v1162
      %v1215 = vadd.f32 %v349, %v1167
      %v1216 = vadd.f32 %v350, %v1170
      %v1217 = vadd.f32 %v351, %v1175
      %v1218 = vadd.f32 %v352, %v1178
      %v1219 = vadd.f32 %v353, %v1183
      %v1220 = vadd.f32 %v354, %v1186
      %1221 = vst [vmem:[#allocation2] sm:$0xff] %v1189
      %1222 = vst [vmem:[#allocation2 + $0x8] sm:$0xff] %v1190
      %1223 = vst [vmem:[#allocation2 + $0x10] sm:$0xff] %v1191
      %1224 = vst [vmem:[#allocation2 + $0x18] sm:$0xff] %v1192
      %1225 = vst [vmem:[#allocation2 + $0x20] sm:$0xff] %v1193
      %1226 = vst [vmem:[#allocation2 + $0x28] sm:$0xff] %v1194
      %1227 = vst [vmem:[#allocation2 + $0x30] sm:$0xff] %v1195
      %1228 = vst [vmem:[#allocation2 + $0x38] sm:$0xff] %v1196
      %1229 = vst [vmem:[#allocation2 + $0x40] sm:$0xff] %v1197
      %1230 = vst [vmem:[#allocation2 + $0x48] sm:$0xff] %v1198
      %1231 = vst [vmem:[#allocation2 + $0x50] sm:$0xff] %v1199
      %1232 = vst [vmem:[#allocation2 + $0x58] sm:$0xff] %v1200
      %1233 = vst [vmem:[#allocation2 + $0x60] sm:$0xff] %v1201
      %1234 = vst [vmem:[#allocation2 + $0x68] sm:$0xff] %v1202
      %1235 = vst [vmem:[#allocation2 + $0x70] sm:$0xff] %v1203
      %1236 = vst [vmem:[#allocation2 + $0x78] sm:$0xff] %v1204
      %1237 = vst [vmem:[#allocation2 + $0x80] sm:$0xff] %v1205
      %1238 = vst [vmem:[#allocation2 + $0x88] sm:$0xff] %v1206
      %1239 = vst [vmem:[#allocation2 + $0x90] sm:$0xff] %v1207
      %1240 = vst [vmem:[#allocation2 + $0x98] sm:$0xff] %v1208
      %1241 = vst [vmem:[#allocation2 + $0xa0] sm:$0xff] %v1209
      %1242 = vst [vmem:[#allocation2 + $0xa8] sm:$0xff] %v1210
      %1243 = vst [vmem:[#allocation2 + $0xb0] sm:$0xff] %v1211
      %1244 = vst [vmem:[#allocation2 + $0xb8] sm:$0xff] %v1212
      %1245 = vst [vmem:[#allocation2 + $0xc0] sm:$0xff] %v1213
      %1246 = vst [vmem:[#allocation2 + $0xc8] sm:$0xff] %v1214
      %1247 = vst [vmem:[#allocation2 + $0xd0] sm:$0xff] %v1215
      %1248 = vst [vmem:[#allocation2 + $0xd8] sm:$0xff] %v1216
      %1249 = vst [vmem:[#allocation2 + $0xe0] sm:$0xff] %v1217
      %1250 = vst [vmem:[#allocation2 + $0xe8] sm:$0xff] %v1218
      %1251 = vst [vmem:[#allocation2 + $0xf0] sm:$0xff] %v1219
      %1252 = vst [vmem:[#allocation2 + $0xf8] sm:$0xff] %v1220
      // Predicated region
      $region37: #{_lambda_.3} parent=31 // pred_check
        %p1253 = pneg %p287
      $region38: #{_lambda_.3} parent=31 // pred_check_branch
        %1255 = sbr.rel (%p1253) target = $region40
      $region39: #{_lambda_.3} parent=31 // pred_region
        %v1256 = vld [vmem:[#allocation2] sm:$0xff]
        %v1257 = vld [vmem:[#allocation2 + $0x8] sm:$0xff]
        %v1258 = vld [vmem:[#allocation2 + $0x10] sm:$0xff]
        %v1259 = vld [vmem:[#allocation2 + $0x18] sm:$0xff]
        %v1260 = vld [vmem:[#allocation2 + $0x20] sm:$0xff]
        %v1261 = vld [vmem:[#allocation2 + $0x28] sm:$0xff]
        %v1262 = vld [vmem:[#allocation2 + $0x30] sm:$0xff]
        %v1263 = vld [vmem:[#allocation2 + $0x38] sm:$0xff]
        %v1264 = vld [vmem:[#allocation2 + $0x40] sm:$0xff]
        %v1265 = vld [vmem:[#allocation2 + $0x48] sm:$0xff]
        %v1266 = vld [vmem:[#allocation2 + $0x50] sm:$0xff]
        %v1267 = vld [vmem:[#allocation2 + $0x58] sm:$0xff]
        %v1268 = vld [vmem:[#allocation2 + $0x60] sm:$0xff]
        %v1269 = vld [vmem:[#allocation2 + $0x68] sm:$0xff]
        %v1270 = vld [vmem:[#allocation2 + $0x70] sm:$0xff]
        %v1271 = vld [vmem:[#allocation2 + $0x78] sm:$0xff]
        %v1272 = vld [vmem:[#allocation2 + $0x80] sm:$0xff]
        %v1273 = vld [vmem:[#allocation2 + $0x88] sm:$0xff]
        %v1274 = vld [vmem:[#allocation2 + $0x90] sm:$0xff]
        %v1275 = vld [vmem:[#allocation2 + $0x98] sm:$0xff]
        %v1276 = vld [vmem:[#allocation2 + $0xa0] sm:$0xff]
        %v1277 = vld [vmem:[#allocation2 + $0xa8] sm:$0xff]
        %v1278 = vld [vmem:[#allocation2 + $0xb0] sm:$0xff]
        %v1279 = vld [vmem:[#allocation2 + $0xb8] sm:$0xff]
        %v1280 = vld [vmem:[#allocation2 + $0xc0] sm:$0xff]
        %v1281 = vld [vmem:[#allocation2 + $0xc8] sm:$0xff]
        %v1282 = vld [vmem:[#allocation2 + $0xd0] sm:$0xff]
        %v1283 = vld [vmem:[#allocation2 + $0xd8] sm:$0xff]
        %v1284 = vld [vmem:[#allocation2 + $0xe0] sm:$0xff]
        %v1285 = vld [vmem:[#allocation2 + $0xe8] sm:$0xff]
        %v1286 = vld [vmem:[#allocation2 + $0xf0] sm:$0xff]
        %v1287 = vld [vmem:[#allocation2 + $0xf8] sm:$0xff]
        %v1288 = vld [vmem:[%s275] sm:$0x1]
        %v1290 = vlaneseq
        %v1291 = vshrl.u32 %v1290, 7
        %v1292 = vsub.s32 0, %v1291
        %v1293 = vrot.slane %v1288, %v1292
        %v1295 = vadd.f32 %v1256, %v1293
        %v1296 = vadd.f32 %v1257, %v1293
        %v1297 = vadd.f32 %v1258, %v1293
        %v1298 = vadd.f32 %v1259, %v1293
        %v1299 = vadd.f32 %v1260, %v1293
        %v1300 = vadd.f32 %v1261, %v1293
        %v1301 = vadd.f32 %v1262, %v1293
        %v1302 = vadd.f32 %v1263, %v1293
        %v1303 = vadd.f32 %v1264, %v1293
        %v1304 = vadd.f32 %v1265, %v1293
        %v1305 = vadd.f32 %v1266, %v1293
        %v1306 = vadd.f32 %v1267, %v1293
        %v1307 = vadd.f32 %v1268, %v1293
        %v1308 = vadd.f32 %v1269, %v1293
        %v1309 = vadd.f32 %v1270, %v1293
        %v1310 = vadd.f32 %v1271, %v1293
        %v1311 = vadd.f32 %v1272, %v1293
        %v1312 = vadd.f32 %v1273, %v1293
        %v1313 = vadd.f32 %v1274, %v1293
        %v1314 = vadd.f32 %v1275, %v1293
        %v1315 = vadd.f32 %v1276, %v1293
        %v1316 = vadd.f32 %v1277, %v1293
        %v1317 = vadd.f32 %v1278, %v1293
        %v1318 = vadd.f32 %v1279, %v1293
        %v1319 = vadd.f32 %v1280, %v1293
        %v1320 = vadd.f32 %v1281, %v1293
        %v1321 = vadd.f32 %v1282, %v1293
        %v1322 = vadd.f32 %v1283, %v1293
        %v1323 = vadd.f32 %v1284, %v1293
        %v1324 = vadd.f32 %v1285, %v1293
        %v1325 = vadd.f32 %v1286, %v1293
        %v1326 = vadd.f32 %v1287, %v1293
        %1327 = vst [vmem:[%s284] sm:$0xff] %v1295
        %1328 = vst [vmem:[%s284 + $0x8] sm:$0xff] %v1296
        %1329 = vst [vmem:[%s284 + $0x10] sm:$0xff] %v1297
        %1330 = vst [vmem:[%s284 + $0x18] sm:$0xff] %v1298
        %1331 = vst [vmem:[%s284 + $0x20] sm:$0xff] %v1299
        %1332 = vst [vmem:[%s284 + $0x28] sm:$0xff] %v1300
        %1333 = vst [vmem:[%s284 + $0x30] sm:$0xff] %v1301
        %1334 = vst [vmem:[%s284 + $0x38] sm:$0xff] %v1302
        %1335 = vst [vmem:[%s284 + $0x40] sm:$0xff] %v1303
        %1336 = vst [vmem:[%s284 + $0x48] sm:$0xff] %v1304
        %1337 = vst [vmem:[%s284 + $0x50] sm:$0xff] %v1305
        %1338 = vst [vmem:[%s284 + $0x58] sm:$0xff] %v1306
        %1339 = vst [vmem:[%s284 + $0x60] sm:$0xff] %v1307
        %1340 = vst [vmem:[%s284 + $0x68] sm:$0xff] %v1308
        %1341 = vst [vmem:[%s284 + $0x70] sm:$0xff] %v1309
        %1342 = vst [vmem:[%s284 + $0x78] sm:$0xff] %v1310
        %1343 = vst [vmem:[%s284 + $0x80] sm:$0xff] %v1311
        %1344 = vst [vmem:[%s284 + $0x88] sm:$0xff] %v1312
        %1345 = vst [vmem:[%s284 + $0x90] sm:$0xff] %v1313
        %1346 = vst [vmem:[%s284 + $0x98] sm:$0xff] %v1314
        %1347 = vst [vmem:[%s284 + $0xa0] sm:$0xff] %v1315
        %1348 = vst [vmem:[%s284 + $0xa8] sm:$0xff] %v1316
        %1349 = vst [vmem:[%s284 + $0xb0] sm:$0xff] %v1317
        %1350 = vst [vmem:[%s284 + $0xb8] sm:$0xff] %v1318
        %1351 = vst [vmem:[%s284 + $0xc0] sm:$0xff] %v1319
        %1352 = vst [vmem:[%s284 + $0xc8] sm:$0xff] %v1320
        %1353 = vst [vmem:[%s284 + $0xd0] sm:$0xff] %v1321
        %1354 = vst [vmem:[%s284 + $0xd8] sm:$0xff] %v1322
        %1355 = vst [vmem:[%s284 + $0xe0] sm:$0xff] %v1323
        %1356 = vst [vmem:[%s284 + $0xe8] sm:$0xff] %v1324
        %1357 = vst [vmem:[%s284 + $0xf0] sm:$0xff] %v1325
        %1358 = vst [vmem:[%s284 + $0xf8] sm:$0xff] %v1326
      $region40: #{_lambda_.3} parent=31 // pred_fallthru
        _
      %s1359 = smul.u32 32, %s20
      %p1360 = scmp.lt.s32.totalorder %s19, 1
      %s1361 = scalar_select %p1360, %s19, 1
      %p1362 = scmp.lt.s32.totalorder %s1359, 63
      %s1363 = scalar_select %p1362, %s1359, 63
      %s1364 = smul.addr %s1361, 64
      %s1365 = sadd.s32 %s1363, %s1364
      %s1366 = smul.addr %s1365, 8
      %s1367 = scalar_lea.vmem %s3, %s1366
      // Predicated region
      $region41: #{_lambda_.3} parent=31 // pred_check
        %p1368 = pneg %p137
      $region42: #{_lambda_.3} parent=31 // pred_check_branch
        %1370 = sbr.rel (%p1368) target = $region44
      $region43: #{_lambda_.3} parent=31 // pred_region
        %s1371 = smul.u32 32, %s20
      $region44: #{_lambda_.3} parent=31 // pred_fallthru
        _
    $region32: #{_lambda_.3} parent=5 // pred_fallthru
      _
    %p1372 = scmp.le.s32.totalorder 2, %s9
    // Predicated region
    $region45: #{_lambda_.3} parent=5 // pred_check
      %p1373 = pneg %p1372
    $region46: #{_lambda_.3} parent=5 // pred_check_branch
      %1375 = sbr.rel (%p1373) target = $region48
    $region47: #{_lambda_.3} parent=5 // pred_region
      %s1376 = ssub.s32 %s9, 2
      // Predicated region
      $region49: #{_lambda_.3} parent=47 // pred_check
        %p1377 = pneg %p143
      $region50: #{_lambda_.3} parent=47 // pred_check_branch
        %1379 = sbr.rel (%p1377) target = $region52
      $region51: #{_lambda_.3} parent=47 // pred_region
        %s1380 = smul.u32 32, %s23
        %p1381 = scmp.lt.s32.totalorder %s22, 1
        %s1382 = scalar_select %p1381, %s22, 1
        %p1383 = scmp.lt.s32.totalorder %s1380, 63
        %s1384 = scalar_select %p1383, %s1380, 63
        %s1385 = smul.addr %s1382, 64
        %s1386 = sadd.s32 %s1384, %s1385
        %s1387 = smul.addr %s1386, 8
        %s1388 = scalar_lea.vmem %s3, %s1387
      $region52: #{_lambda_.3} parent=47 // pred_fallthru
        _
    $region48: #{_lambda_.3} parent=5 // pred_fallthru
      _
  $region6: #{_lambda_.3} parent=0 // loop_footer
    %s13 = sadd.s32 1, %s9
  $region7: #{_lambda_.3} parent=0 // loop_footer_branch
    %8 = sbr.rel target = $region3
  $region8: #{_lambda_.3} parent=0 // loop_exit
    _

</llo_original>
